<compile_context>
chip_gen: v7x
topology: tpu7x:2x2x1
jax: 0.10.0
libtpu: 0.0.40
codegen_flags: <defaults>
</compile_context>

<pallas_src>
import math
import functools

import jax
import jax.numpy as jnp
from jax.experimental import pallas as pl
from jax.experimental.pallas import tpu as pltpu

# ----------------------------- tiny BERT config -----------------------------
VOCAB = 50
MAX_POS = 16
HIDDEN = 32
NUM_HEADS = 4
HEAD_DIM = HIDDEN // NUM_HEADS
INTERMEDIATE = 64
NUM_LAYERS = 2
LN_EPS = 1e-12


# ------------------------------ kernel helpers ------------------------------
def _layer_norm(x, gamma, beta, eps=LN_EPS):
    # f32 elementwise (VPU); matches HF BERT LayerNorm (eps=1e-12).
    mean = jnp.mean(x, axis=-1, keepdims=True)
    var = jnp.mean((x - mean) ** 2, axis=-1, keepdims=True)
    return (x - mean) * jax.lax.rsqrt(var + eps) * gamma + beta


# --------------------------- fully fused BERT kernel -------------------------
def _bert_forward_kernel(emb_ref, mask_ref, emb_ln_ref,
                         wqkvo_ref, bqkvo_ref,
                         wff1_ref, bff1_ref,
                         wff2_ref, bff2_ref,
                         lnp_ref,
                         out_ref,
                         ctx_ref):
    H = HIDDEN
    B = mask_ref.shape[0]
    S = mask_ref.shape[2]
    scale = 1.0 / math.sqrt(HEAD_DIM)

    # BERT-style extended attention mask: (1 - mask) * -10000, shape (B, 1, S)
    mask_bias = (1.0 - mask_ref[...]) * -10000.0

    # ---- embeddings LayerNorm (f32) ----
    h = _layer_norm(emb_ref[...], emb_ln_ref[0:1, :], emb_ln_ref[1:2, :])  # (B*S, H)

    # ---- NUM_LAYERS encoder layers, statically unrolled, weights resident ----
    for l in range(NUM_LAYERS):
        w_all = wqkvo_ref[l]          # (H, 4H) bf16  [Wq | Wk | Wv | Wo]
        b_all = bqkvo_ref[l]          # (1, 4H) f32   [bq | bk | bv | bo]
        ln_all = lnp_ref[l]           # (4, H)  f32   [ln1_g, ln1_b, ln2_g, ln2_b]

        x = h                                                       # (B*S, H) f32
        xb = x.astype(jnp.bfloat16)

        # One wide matmul produces Q|K|V (the Wo columns ride along in the same
        # 128-lane MXU pass for free and are simply not read).
        qkv = jnp.dot(xb, w_all, preferred_element_type=jnp.float32) + b_all
        q = qkv[:, 0 * H:1 * H]
        k = qkv[:, 1 * H:2 * H]
        v = qkv[:, 2 * H:3 * H]

        # Attention: batch folded into the einsum batch dim, no .T, no concat.
        for hd in range(NUM_HEADS):                  # static, tiny head loop
            sl = slice(hd * HEAD_DIM, (hd + 1) * HEAD_DIM)
            qh = q[:, sl].reshape(B, S, HEAD_DIM).astype(jnp.bfloat16)
            kh = k[:, sl].reshape(B, S, HEAD_DIM).astype(jnp.bfloat16)
            vh = v[:, sl].reshape(B, S, HEAD_DIM).astype(jnp.bfloat16)

            s = jnp.einsum('bqd,bkd->bqk', qh, kh,
                           preferred_element_type=jnp.float32)       # (B, S, S)
            s = s * scale + mask_bias
            s = s - jnp.max(s, axis=-1, keepdims=True)
            p = jnp.exp(s)
            p = p * pl.reciprocal(jnp.sum(p, axis=-1, keepdims=True), approx=True)

            ctx_h = jnp.einsum('bqk,bkd->bqd', p.astype(jnp.bfloat16), vh,
                               preferred_element_type=jnp.float32)   # (B, S, HD)
            ctx_ref[:, sl] = ctx_h.reshape(B * S, HEAD_DIM)

        ctx = ctx_ref[...]                                            # (B*S, H)
        attn = jnp.dot(ctx.astype(jnp.bfloat16), w_all[:, 3 * H:],
                       preferred_element_type=jnp.float32) + b_all[:, 3 * H:]
        h1 = _layer_norm(x + attn, ln_all[0:1, :], ln_all[1:2, :])

        # ---- FFN ----
        f = jnp.dot(h1.astype(jnp.bfloat16), wff1_ref[l],
                    preferred_element_type=jnp.float32) + bff1_ref[l]
        # tanh-gelu ("gelu_new"); swap to exact-erf gelu if the reference config
        # uses HF's default hidden_act="gelu".
        f = jax.nn.gelu(f, approximate=True)
        f = jnp.dot(f.astype(jnp.bfloat16), wff2_ref[l],
                    preferred_element_type=jnp.float32) + bff2_ref[l]

        h = _layer_norm(h1 + f, ln_all[2:3, :], ln_all[3:4, :])

    out_ref[...] = h


def _bert_fused_call(emb2d, mask, p):
    BS, H = emb2d.shape
    vspec = pl.BlockSpec(memory_space=pltpu.MemorySpace.VMEM)
    return pl.pallas_call(
        _bert_forward_kernel,
        out_shape=jax.ShapeDtypeStruct((BS, H), jnp.float32),
        in_specs=[vspec] * 10,
        out_specs=vspec,
        scratch_shapes=[pltpu.VMEM((BS, H), jnp.float32)],   # per-layer attn context
    )(emb2d, mask,
      p["emb_ln"], p["w_qkvo"], p["b_qkvo"],
      p["w_ff1"], p["b_ff1"], p["w_ff2"], p["b_ff2"], p["ln_p"])


# ----------------------------- parameter init --------------------------------
def init_params(key):
    def normal(k, shape, std=0.02):
        return (std * jax.random.normal(k, shape)).astype(jnp.float32)

    keys = jax.random.split(key, 3 + NUM_LAYERS)
    params = {
        "word_emb": normal(keys[0], (VOCAB, HIDDEN)),
        "pos_emb": normal(keys[1], (MAX_POS, HIDDEN)),
        "type_emb": normal(keys[2], (2, HIDDEN)),
        "emb_ln": jnp.concatenate(
            [jnp.ones((1, HIDDEN), jnp.float32),
             jnp.zeros((1, HIDDEN), jnp.float32)], axis=0),          # (2, H)
    }

    w_qkvo, b_qkvo, w_ff1, b_ff1, w_ff2, b_ff2, ln_p = [], [], [], [], [], [], []
    for l in range(NUM_LAYERS):
        lk = jax.random.split(keys[3 + l], 6)
        wq = normal(lk[0], (HIDDEN, HIDDEN))
        wk = normal(lk[1], (HIDDEN, HIDDEN))
        wv = normal(lk[2], (HIDDEN, HIDDEN))
        wo = normal(lk[3], (HIDDEN, HIDDEN))
        w1 = normal(lk[4], (HIDDEN, INTERMEDIATE))
        w2 = normal(lk[5], (INTERMEDIATE, HIDDEN))

        w_qkvo.append(jnp.concatenate([wq, wk, wv, wo], axis=1))     # (H, 4H)
        b_qkvo.append(jnp.zeros((1, 4 * HIDDEN), jnp.float32))
        w_ff1.append(w1)
        b_ff1.append(jnp.zeros((1, INTERMEDIATE), jnp.float32))
        w_ff2.append(w2)
        b_ff2.append(jnp.zeros((1, HIDDEN), jnp.float32))
        ln_p.append(jnp.stack([jnp.ones((HIDDEN,), jnp.float32),
                               jnp.zeros((HIDDEN,), jnp.float32),
                               jnp.ones((HIDDEN,), jnp.float32),
                               jnp.zeros((HIDDEN,), jnp.float32)]))  # (4, H)

    # bf16 weights for the MXU, f32 biases / LN params for the VPU.
    params.update(
        w_qkvo=jnp.stack(w_qkvo).astype(jnp.bfloat16),   # (L, H, 4H)
        b_qkvo=jnp.stack(b_qkvo),                        # (L, 1, 4H)
        w_ff1=jnp.stack(w_ff1).astype(jnp.bfloat16),     # (L, H, I)
        b_ff1=jnp.stack(b_ff1),                          # (L, 1, I)
        w_ff2=jnp.stack(w_ff2).astype(jnp.bfloat16),     # (L, I, H)
        b_ff2=jnp.stack(b_ff2),                          # (L, 1, H)
        ln_p=jnp.stack(ln_p),                            # (L, 4, H)
    )
    return params


# ------------------------------ full forward ---------------------------------
@functools.partial(jax.jit, static_argnums=())
def bert_model_wrapper_forward(input_ids, attention_mask, params):
    """Equivalent of BertModelWrapper.forward: returns last_hidden_state (B,S,H)."""
    B, S = input_ids.shape
    # Embedding gathers are glue (plain JAX); everything after runs in ONE Pallas kernel.
    word = params["word_emb"][input_ids]                     # (B, S, H)
    pos = params["pos_emb"][:S][None, :, :]                  # (1, S, H)
    tok = params["type_emb"][0][None, None, :]               # (1, 1, H)  (token_type=0)
    emb = (word + pos + tok).astype(jnp.float32).reshape(B * S, HIDDEN)

    mask = attention_mask.astype(jnp.float32).reshape(B, 1, S)

    out = _bert_fused_call(emb, mask, params)                # (B*S, H)
    return out.reshape(B, S, HIDDEN)


if __name__ == "__main__":
    B, S = 2, 8
    key = jax.random.PRNGKey(0)
    k_param, k_ids = jax.random.split(key)

    params = init_params(k_param)
    input_ids = jax.random.randint(k_ids, (B, S), 0, VOCAB, dtype=jnp.int32)
    attention_mask = jnp.ones((B, S), jnp.float32).at[1, 5:].set(0.0)

    out = bert_model_wrapper_forward(input_ids, attention_mask, params)
    jax.block_until_ready(out)
    assert out.shape == (B, S, HIDDEN), out.shape
    assert bool(jnp.all(jnp.isfinite(out)))
    print("KERNEL_OK")
</pallas_src>

<mosaic_0001>
module attributes {stable_mosaic.version = 11 : i64} {
  func.func @_bert_forward_kernel(%arg0: memref<16x32xf32, #tpu.memory_space<vmem>>, %arg1: memref<2x1x8xf32, #tpu.memory_space<vmem>>, %arg2: memref<2x32xf32, #tpu.memory_space<vmem>>, %arg3: memref<2x32x128xbf16, #tpu.memory_space<vmem>>, %arg4: memref<2x1x128xf32, #tpu.memory_space<vmem>>, %arg5: memref<2x32x64xbf16, #tpu.memory_space<vmem>>, %arg6: memref<2x1x64xf32, #tpu.memory_space<vmem>>, %arg7: memref<2x64x32xbf16, #tpu.memory_space<vmem>>, %arg8: memref<2x1x32xf32, #tpu.memory_space<vmem>>, %arg9: memref<2x4x32xf32, #tpu.memory_space<vmem>>, %arg10: memref<16x32xf32, #tpu.memory_space<vmem>>, %arg11: memref<16x32xf32, #tpu.memory_space<vmem>>) attributes {dimension_semantics = [], scalar_prefetch = 0 : i64, scratch_operands = 1 : i64, tpu.core_type = #tpu.core_type<tc>} {
    %c0 = arith.constant 0 : index
    %c0_0 = arith.constant 0 : index
    %c0_1 = arith.constant 0 : index
    %0 = vector.load %arg1[%c0, %c0_0, %c0_1] : memref<2x1x8xf32, #tpu.memory_space<vmem>>, vector<2x1x8xf32>
    %cst = arith.constant 1.000000e+00 : f32
    %1 = vector.broadcast %cst : f32 to vector<2x1x8xf32>
    %2 = arith.subf %1, %0 : vector<2x1x8xf32>
    %cst_2 = arith.constant -1.000000e+04 : f32
    %3 = vector.broadcast %cst_2 : f32 to vector<2x1x8xf32>
    %4 = arith.mulf %2, %3 : vector<2x1x8xf32>
    %c0_3 = arith.constant 0 : index
    %c0_4 = arith.constant 0 : index
    %5 = vector.load %arg0[%c0_3, %c0_4] : memref<16x32xf32, #tpu.memory_space<vmem>>, vector<16x32xf32>
    %c0_5 = arith.constant 0 : index
    %c0_6 = arith.constant 0 : index
    %6 = vector.load %arg2[%c0_5, %c0_6] : memref<2x32xf32, #tpu.memory_space<vmem>>, vector<1x32xf32>
    %c1 = arith.constant 1 : index
    %c0_7 = arith.constant 0 : index
    %7 = vector.load %arg2[%c1, %c0_7] : memref<2x32xf32, #tpu.memory_space<vmem>>, vector<1x32xf32>
    %cst_8 = arith.constant dense<0.000000e+00> : vector<16xf32>
    %8 = vector.multi_reduction <add>, %5, %cst_8 [1] : vector<16x32xf32> to vector<16xf32>
    %9 = vector.shape_cast %8 : vector<16xf32> to vector<16x1xf32>
    %cst_9 = arith.constant 3.200000e+01 : f32
    %10 = vector.broadcast %cst_9 : f32 to vector<16x1xf32>
    %11 = arith.divf %9, %10 : vector<16x1xf32>
    %12 = vector.broadcast %11 : vector<16x1xf32> to vector<16x32xf32>
    %13 = arith.subf %5, %12 : vector<16x32xf32>
    %14 = arith.mulf %13, %13 : vector<16x32xf32>
    %cst_10 = arith.constant dense<0.000000e+00> : vector<16xf32>
    %15 = vector.multi_reduction <add>, %14, %cst_10 [1] : vector<16x32xf32> to vector<16xf32>
    %16 = vector.shape_cast %15 : vector<16xf32> to vector<16x1xf32>
    %cst_11 = arith.constant 3.200000e+01 : f32
    %17 = vector.broadcast %cst_11 : f32 to vector<16x1xf32>
    %18 = arith.divf %16, %17 : vector<16x1xf32>
    %19 = vector.broadcast %11 : vector<16x1xf32> to vector<16x32xf32>
    %20 = arith.subf %5, %19 : vector<16x32xf32>
    %cst_12 = arith.constant 9.99999996E-13 : f32
    %21 = vector.broadcast %cst_12 : f32 to vector<16x1xf32>
    %22 = arith.addf %18, %21 : vector<16x1xf32>
    %23 = math.rsqrt %22 : vector<16x1xf32>
    %24 = vector.broadcast %23 : vector<16x1xf32> to vector<16x32xf32>
    %25 = arith.mulf %20, %24 : vector<16x32xf32>
    %26 = vector.broadcast %6 : vector<1x32xf32> to vector<16x32xf32>
    %27 = arith.mulf %25, %26 : vector<16x32xf32>
    %28 = vector.broadcast %7 : vector<1x32xf32> to vector<16x32xf32>
    %29 = arith.addf %27, %28 : vector<16x32xf32>
    %c0_13 = arith.constant 0 : index
    %c0_14 = arith.constant 0 : index
    %c0_15 = arith.constant 0 : index
    %30 = vector.load %arg3[%c0_13, %c0_14, %c0_15] : memref<2x32x128xbf16, #tpu.memory_space<vmem>>, vector<1x32x128xbf16>
    %31 = vector.shape_cast %30 : vector<1x32x128xbf16> to vector<32x128xbf16>
    %c0_16 = arith.constant 0 : index
    %c0_17 = arith.constant 0 : index
    %c0_18 = arith.constant 0 : index
    %32 = vector.load %arg4[%c0_16, %c0_17, %c0_18] : memref<2x1x128xf32, #tpu.memory_space<vmem>>, vector<1x1x128xf32>
    %33 = vector.shape_cast %32 : vector<1x1x128xf32> to vector<1x128xf32>
    %c0_19 = arith.constant 0 : index
    %c0_20 = arith.constant 0 : index
    %c0_21 = arith.constant 0 : index
    %34 = vector.load %arg9[%c0_19, %c0_20, %c0_21] : memref<2x4x32xf32, #tpu.memory_space<vmem>>, vector<1x4x32xf32>
    %35 = vector.shape_cast %34 : vector<1x4x32xf32> to vector<4x32xf32>
    %36 = arith.truncf %29 : vector<16x32xf32> to vector<16x32xbf16>
    %cst_22 = arith.constant dense<0.000000e+00> : vector<16x128xf32>
    %37 = tpu.matmul %36, %31, %cst_22 {dimension_numbers = #tpu.dot_dimension_numbers<[1], [0], [0], [1], [0, 0, 1, 1], [], []>} : vector<16x32xbf16>, vector<32x128xbf16>, vector<16x128xf32> -> vector<16x128xf32>
    %38 = vector.broadcast %33 : vector<1x128xf32> to vector<16x128xf32>
    %39 = arith.addf %37, %38 : vector<16x128xf32>
    %40 = vector.extract_strided_slice %39 {offsets = [0, 0], sizes = [16, 32], strides = [1, 1]} : vector<16x128xf32> to vector<16x32xf32>
    %41 = vector.extract_strided_slice %39 {offsets = [0, 32], sizes = [16, 32], strides = [1, 1]} : vector<16x128xf32> to vector<16x32xf32>
    %42 = vector.extract_strided_slice %39 {offsets = [0, 64], sizes = [16, 32], strides = [1, 1]} : vector<16x128xf32> to vector<16x32xf32>
    %43 = vector.extract_strided_slice %40 {offsets = [0, 0], sizes = [16, 8], strides = [1, 1]} : vector<16x32xf32> to vector<16x8xf32>
    %44 = vector.shape_cast %43 : vector<16x8xf32> to vector<2x8x8xf32>
    %45 = arith.truncf %44 : vector<2x8x8xf32> to vector<2x8x8xbf16>
    %46 = vector.extract_strided_slice %41 {offsets = [0, 0], sizes = [16, 8], strides = [1, 1]} : vector<16x32xf32> to vector<16x8xf32>
    %47 = vector.shape_cast %46 : vector<16x8xf32> to vector<2x8x8xf32>
    %48 = arith.truncf %47 : vector<2x8x8xf32> to vector<2x8x8xbf16>
    %49 = vector.extract_strided_slice %42 {offsets = [0, 0], sizes = [16, 8], strides = [1, 1]} : vector<16x32xf32> to vector<16x8xf32>
    %50 = vector.shape_cast %49 : vector<16x8xf32> to vector<2x8x8xf32>
    %51 = arith.truncf %50 : vector<2x8x8xf32> to vector<2x8x8xbf16>
    "tpu.trace_start"() <{level = 10 : i32, message = "bqd,bkd->bqk"}> : () -> ()
    %cst_23 = arith.constant dense<0.000000e+00> : vector<2x8x8xf32>
    %52 = tpu.matmul %45, %48, %cst_23 {dimension_numbers = #tpu.dot_dimension_numbers<[2], [2], [1], [1], [0, 0, 0, 1, 1, 1], [0], [0]>} : vector<2x8x8xbf16>, vector<2x8x8xbf16>, vector<2x8x8xf32> -> vector<2x8x8xf32>
    "tpu.trace_stop"() : () -> ()
    %cst_24 = arith.constant 0.353553385 : f32
    %53 = vector.broadcast %cst_24 : f32 to vector<2x8x8xf32>
    %54 = arith.mulf %52, %53 : vector<2x8x8xf32>
    %55 = vector.broadcast %4 : vector<2x1x8xf32> to vector<2x8x8xf32>
    %56 = arith.addf %54, %55 : vector<2x8x8xf32>
    %cst_25 = arith.constant dense<0xFF800000> : vector<2x8xf32>
    %57 = vector.multi_reduction <maximumf>, %56, %cst_25 [2] : vector<2x8x8xf32> to vector<2x8xf32>
    %58 = vector.shape_cast %57 : vector<2x8xf32> to vector<2x8x1xf32>
    %59 = vector.broadcast %58 : vector<2x8x1xf32> to vector<2x8x8xf32>
    %60 = arith.subf %56, %59 : vector<2x8x8xf32>
    %61 = math.exp %60 : vector<2x8x8xf32>
    %cst_26 = arith.constant dense<0.000000e+00> : vector<2x8xf32>
    %62 = vector.multi_reduction <add>, %61, %cst_26 [2] : vector<2x8x8xf32> to vector<2x8xf32>
    %63 = vector.shape_cast %62 : vector<2x8xf32> to vector<2x8x1xf32>
    %64 = tpu.reciprocal %63 {approx = true} : vector<2x8x1xf32> -> vector<2x8x1xf32>
    %65 = vector.broadcast %64 : vector<2x8x1xf32> to vector<2x8x8xf32>
    %66 = arith.mulf %61, %65 : vector<2x8x8xf32>
    %67 = arith.truncf %66 : vector<2x8x8xf32> to vector<2x8x8xbf16>
    "tpu.trace_start"() <{level = 10 : i32, message = "bqk,bkd->bqd"}> : () -> ()
    %cst_27 = arith.constant dense<0.000000e+00> : vector<2x8x8xf32>
    %68 = tpu.matmul %67, %51, %cst_27 {dimension_numbers = #tpu.dot_dimension_numbers<[2], [1], [1], [2], [0, 0, 0, 1, 1, 2], [0], [0]>} : vector<2x8x8xbf16>, vector<2x8x8xbf16>, vector<2x8x8xf32> -> vector<2x8x8xf32>
    "tpu.trace_stop"() : () -> ()
    %69 = vector.shape_cast %68 : vector<2x8x8xf32> to vector<16x8xf32>
    %c0_28 = arith.constant 0 : index
    %c0_29 = arith.constant 0 : index
    %70 = vector.load %arg11[%c0_28, %c0_29] : memref<16x32xf32, #tpu.memory_space<vmem>>, vector<16x8xf32>
    tpu.vector_store %arg11[%c0_28, %c0_29], %69 {strides = array<i32>} : memref<16x32xf32, #tpu.memory_space<vmem>>, vector<16x8xf32>,
    %71 = vector.extract_strided_slice %40 {offsets = [0, 8], sizes = [16, 8], strides = [1, 1]} : vector<16x32xf32> to vector<16x8xf32>
    %72 = vector.shape_cast %71 : vector<16x8xf32> to vector<2x8x8xf32>
    %73 = arith.truncf %72 : vector<2x8x8xf32> to vector<2x8x8xbf16>
    %74 = vector.extract_strided_slice %41 {offsets = [0, 8], sizes = [16, 8], strides = [1, 1]} : vector<16x32xf32> to vector<16x8xf32>
    %75 = vector.shape_cast %74 : vector<16x8xf32> to vector<2x8x8xf32>
    %76 = arith.truncf %75 : vector<2x8x8xf32> to vector<2x8x8xbf16>
    %77 = vector.extract_strided_slice %42 {offsets = [0, 8], sizes = [16, 8], strides = [1, 1]} : vector<16x32xf32> to vector<16x8xf32>
    %78 = vector.shape_cast %77 : vector<16x8xf32> to vector<2x8x8xf32>
    %79 = arith.truncf %78 : vector<2x8x8xf32> to vector<2x8x8xbf16>
    "tpu.trace_start"() <{level = 10 : i32, message = "bqd,bkd->bqk"}> : () -> ()
    %cst_30 = arith.constant dense<0.000000e+00> : vector<2x8x8xf32>
    %80 = tpu.matmul %73, %76, %cst_30 {dimension_numbers = #tpu.dot_dimension_numbers<[2], [2], [1], [1], [0, 0, 0, 1, 1, 1], [0], [0]>} : vector<2x8x8xbf16>, vector<2x8x8xbf16>, vector<2x8x8xf32> -> vector<2x8x8xf32>
    "tpu.trace_stop"() : () -> ()
    %cst_31 = arith.constant 0.353553385 : f32
    %81 = vector.broadcast %cst_31 : f32 to vector<2x8x8xf32>
    %82 = arith.mulf %80, %81 : vector<2x8x8xf32>
    %83 = vector.broadcast %4 : vector<2x1x8xf32> to vector<2x8x8xf32>
    %84 = arith.addf %82, %83 : vector<2x8x8xf32>
    %cst_32 = arith.constant dense<0xFF800000> : vector<2x8xf32>
    %85 = vector.multi_reduction <maximumf>, %84, %cst_32 [2] : vector<2x8x8xf32> to vector<2x8xf32>
    %86 = vector.shape_cast %85 : vector<2x8xf32> to vector<2x8x1xf32>
    %87 = vector.broadcast %86 : vector<2x8x1xf32> to vector<2x8x8xf32>
    %88 = arith.subf %84, %87 : vector<2x8x8xf32>
    %89 = math.exp %88 : vector<2x8x8xf32>
    %cst_33 = arith.constant dense<0.000000e+00> : vector<2x8xf32>
    %90 = vector.multi_reduction <add>, %89, %cst_33 [2] : vector<2x8x8xf32> to vector<2x8xf32>
    %91 = vector.shape_cast %90 : vector<2x8xf32> to vector<2x8x1xf32>
    %92 = tpu.reciprocal %91 {approx = true} : vector<2x8x1xf32> -> vector<2x8x1xf32>
    %93 = vector.broadcast %92 : vector<2x8x1xf32> to vector<2x8x8xf32>
    %94 = arith.mulf %89, %93 : vector<2x8x8xf32>
    %95 = arith.truncf %94 : vector<2x8x8xf32> to vector<2x8x8xbf16>
    "tpu.trace_start"() <{level = 10 : i32, message = "bqk,bkd->bqd"}> : () -> ()
    %cst_34 = arith.constant dense<0.000000e+00> : vector<2x8x8xf32>
    %96 = tpu.matmul %95, %79, %cst_34 {dimension_numbers = #tpu.dot_dimension_numbers<[2], [1], [1], [2], [0, 0, 0, 1, 1, 2], [0], [0]>} : vector<2x8x8xbf16>, vector<2x8x8xbf16>, vector<2x8x8xf32> -> vector<2x8x8xf32>
    "tpu.trace_stop"() : () -> ()
    %97 = vector.shape_cast %96 : vector<2x8x8xf32> to vector<16x8xf32>
    %c0_35 = arith.constant 0 : index
    %c8 = arith.constant 8 : index
    %98 = vector.load %arg11[%c0_35, %c8] : memref<16x32xf32, #tpu.memory_space<vmem>>, vector<16x8xf32>
    tpu.vector_store %arg11[%c0_35, %c8], %97 {strides = array<i32>} : memref<16x32xf32, #tpu.memory_space<vmem>>, vector<16x8xf32>,
    %99 = vector.extract_strided_slice %40 {offsets = [0, 16], sizes = [16, 8], strides = [1, 1]} : vector<16x32xf32> to vector<16x8xf32>
    %100 = vector.shape_cast %99 : vector<16x8xf32> to vector<2x8x8xf32>
    %101 = arith.truncf %100 : vector<2x8x8xf32> to vector<2x8x8xbf16>
    %102 = vector.extract_strided_slice %41 {offsets = [0, 16], sizes = [16, 8], strides = [1, 1]} : vector<16x32xf32> to vector<16x8xf32>
    %103 = vector.shape_cast %102 : vector<16x8xf32> to vector<2x8x8xf32>
    %104 = arith.truncf %103 : vector<2x8x8xf32> to vector<2x8x8xbf16>
    %105 = vector.extract_strided_slice %42 {offsets = [0, 16], sizes = [16, 8], strides = [1, 1]} : vector<16x32xf32> to vector<16x8xf32>
    %106 = vector.shape_cast %105 : vector<16x8xf32> to vector<2x8x8xf32>
    %107 = arith.truncf %106 : vector<2x8x8xf32> to vector<2x8x8xbf16>
    "tpu.trace_start"() <{level = 10 : i32, message = "bqd,bkd->bqk"}> : () -> ()
    %cst_36 = arith.constant dense<0.000000e+00> : vector<2x8x8xf32>
    %108 = tpu.matmul %101, %104, %cst_36 {dimension_numbers = #tpu.dot_dimension_numbers<[2], [2], [1], [1], [0, 0, 0, 1, 1, 1], [0], [0]>} : vector<2x8x8xbf16>, vector<2x8x8xbf16>, vector<2x8x8xf32> -> vector<2x8x8xf32>
    "tpu.trace_stop"() : () -> ()
    %cst_37 = arith.constant 0.353553385 : f32
    %109 = vector.broadcast %cst_37 : f32 to vector<2x8x8xf32>
    %110 = arith.mulf %108, %109 : vector<2x8x8xf32>
    %111 = vector.broadcast %4 : vector<2x1x8xf32> to vector<2x8x8xf32>
    %112 = arith.addf %110, %111 : vector<2x8x8xf32>
    %cst_38 = arith.constant dense<0xFF800000> : vector<2x8xf32>
    %113 = vector.multi_reduction <maximumf>, %112, %cst_38 [2] : vector<2x8x8xf32> to vector<2x8xf32>
    %114 = vector.shape_cast %113 : vector<2x8xf32> to vector<2x8x1xf32>
    %115 = vector.broadcast %114 : vector<2x8x1xf32> to vector<2x8x8xf32>
    %116 = arith.subf %112, %115 : vector<2x8x8xf32>
    %117 = math.exp %116 : vector<2x8x8xf32>
    %cst_39 = arith.constant dense<0.000000e+00> : vector<2x8xf32>
    %118 = vector.multi_reduction <add>, %117, %cst_39 [2] : vector<2x8x8xf32> to vector<2x8xf32>
    %119 = vector.shape_cast %118 : vector<2x8xf32> to vector<2x8x1xf32>
    %120 = tpu.reciprocal %119 {approx = true} : vector<2x8x1xf32> -> vector<2x8x1xf32>
    %121 = vector.broadcast %120 : vector<2x8x1xf32> to vector<2x8x8xf32>
    %122 = arith.mulf %117, %121 : vector<2x8x8xf32>
    %123 = arith.truncf %122 : vector<2x8x8xf32> to vector<2x8x8xbf16>
    "tpu.trace_start"() <{level = 10 : i32, message = "bqk,bkd->bqd"}> : () -> ()
    %cst_40 = arith.constant dense<0.000000e+00> : vector<2x8x8xf32>
    %124 = tpu.matmul %123, %107, %cst_40 {dimension_numbers = #tpu.dot_dimension_numbers<[2], [1], [1], [2], [0, 0, 0, 1, 1, 2], [0], [0]>} : vector<2x8x8xbf16>, vector<2x8x8xbf16>, vector<2x8x8xf32> -> vector<2x8x8xf32>
    "tpu.trace_stop"() : () -> ()
    %125 = vector.shape_cast %124 : vector<2x8x8xf32> to vector<16x8xf32>
    %c0_41 = arith.constant 0 : index
    %c16 = arith.constant 16 : index
    %126 = vector.load %arg11[%c0_41, %c16] : memref<16x32xf32, #tpu.memory_space<vmem>>, vector<16x8xf32>
    tpu.vector_store %arg11[%c0_41, %c16], %125 {strides = array<i32>} : memref<16x32xf32, #tpu.memory_space<vmem>>, vector<16x8xf32>,
    %127 = vector.extract_strided_slice %40 {offsets = [0, 24], sizes = [16, 8], strides = [1, 1]} : vector<16x32xf32> to vector<16x8xf32>
    %128 = vector.shape_cast %127 : vector<16x8xf32> to vector<2x8x8xf32>
    %129 = arith.truncf %128 : vector<2x8x8xf32> to vector<2x8x8xbf16>
    %130 = vector.extract_strided_slice %41 {offsets = [0, 24], sizes = [16, 8], strides = [1, 1]} : vector<16x32xf32> to vector<16x8xf32>
    %131 = vector.shape_cast %130 : vector<16x8xf32> to vector<2x8x8xf32>
    %132 = arith.truncf %131 : vector<2x8x8xf32> to vector<2x8x8xbf16>
    %133 = vector.extract_strided_slice %42 {offsets = [0, 24], sizes = [16, 8], strides = [1, 1]} : vector<16x32xf32> to vector<16x8xf32>
    %134 = vector.shape_cast %133 : vector<16x8xf32> to vector<2x8x8xf32>
    %135 = arith.truncf %134 : vector<2x8x8xf32> to vector<2x8x8xbf16>
    "tpu.trace_start"() <{level = 10 : i32, message = "bqd,bkd->bqk"}> : () -> ()
    %cst_42 = arith.constant dense<0.000000e+00> : vector<2x8x8xf32>
    %136 = tpu.matmul %129, %132, %cst_42 {dimension_numbers = #tpu.dot_dimension_numbers<[2], [2], [1], [1], [0, 0, 0, 1, 1, 1], [0], [0]>} : vector<2x8x8xbf16>, vector<2x8x8xbf16>, vector<2x8x8xf32> -> vector<2x8x8xf32>
    "tpu.trace_stop"() : () -> ()
    %cst_43 = arith.constant 0.353553385 : f32
    %137 = vector.broadcast %cst_43 : f32 to vector<2x8x8xf32>
    %138 = arith.mulf %136, %137 : vector<2x8x8xf32>
    %139 = vector.broadcast %4 : vector<2x1x8xf32> to vector<2x8x8xf32>
    %140 = arith.addf %138, %139 : vector<2x8x8xf32>
    %cst_44 = arith.constant dense<0xFF800000> : vector<2x8xf32>
    %141 = vector.multi_reduction <maximumf>, %140, %cst_44 [2] : vector<2x8x8xf32> to vector<2x8xf32>
    %142 = vector.shape_cast %141 : vector<2x8xf32> to vector<2x8x1xf32>
    %143 = vector.broadcast %142 : vector<2x8x1xf32> to vector<2x8x8xf32>
    %144 = arith.subf %140, %143 : vector<2x8x8xf32>
    %145 = math.exp %144 : vector<2x8x8xf32>
    %cst_45 = arith.constant dense<0.000000e+00> : vector<2x8xf32>
    %146 = vector.multi_reduction <add>, %145, %cst_45 [2] : vector<2x8x8xf32> to vector<2x8xf32>
    %147 = vector.shape_cast %146 : vector<2x8xf32> to vector<2x8x1xf32>
    %148 = tpu.reciprocal %147 {approx = true} : vector<2x8x1xf32> -> vector<2x8x1xf32>
    %149 = vector.broadcast %148 : vector<2x8x1xf32> to vector<2x8x8xf32>
    %150 = arith.mulf %145, %149 : vector<2x8x8xf32>
    %151 = arith.truncf %150 : vector<2x8x8xf32> to vector<2x8x8xbf16>
    "tpu.trace_start"() <{level = 10 : i32, message = "bqk,bkd->bqd"}> : () -> ()
    %cst_46 = arith.constant dense<0.000000e+00> : vector<2x8x8xf32>
    %152 = tpu.matmul %151, %135, %cst_46 {dimension_numbers = #tpu.dot_dimension_numbers<[2], [1], [1], [2], [0, 0, 0, 1, 1, 2], [0], [0]>} : vector<2x8x8xbf16>, vector<2x8x8xbf16>, vector<2x8x8xf32> -> vector<2x8x8xf32>
    "tpu.trace_stop"() : () -> ()
    %153 = vector.shape_cast %152 : vector<2x8x8xf32> to vector<16x8xf32>
    %c0_47 = arith.constant 0 : index
    %c24 = arith.constant 24 : index
    %154 = vector.load %arg11[%c0_47, %c24] : memref<16x32xf32, #tpu.memory_space<vmem>>, vector<16x8xf32>
    tpu.vector_store %arg11[%c0_47, %c24], %153 {strides = array<i32>} : memref<16x32xf32, #tpu.memory_space<vmem>>, vector<16x8xf32>,
    %c0_48 = arith.constant 0 : index
    %c0_49 = arith.constant 0 : index
    %155 = vector.load %arg11[%c0_48, %c0_49] : memref<16x32xf32, #tpu.memory_space<vmem>>, vector<16x32xf32>
    %156 = arith.truncf %155 : vector<16x32xf32> to vector<16x32xbf16>
    %157 = vector.extract_strided_slice %31 {offsets = [0, 96], sizes = [32, 32], strides = [1, 1]} : vector<32x128xbf16> to vector<32x32xbf16>
    %cst_50 = arith.constant dense<0.000000e+00> : vector<16x32xf32>
    %158 = tpu.matmul %156, %157, %cst_50 {dimension_numbers = #tpu.dot_dimension_numbers<[1], [0], [0], [1], [0, 0, 1, 1], [], []>} : vector<16x32xbf16>, vector<32x32xbf16>, vector<16x32xf32> -> vector<16x32xf32>
    %159 = vector.extract_strided_slice %33 {offsets = [0, 96], sizes = [1, 32], strides = [1, 1]} : vector<1x128xf32> to vector<1x32xf32>
    %160 = vector.broadcast %159 : vector<1x32xf32> to vector<16x32xf32>
    %161 = arith.addf %158, %160 : vector<16x32xf32>
    %162 = arith.addf %29, %161 : vector<16x32xf32>
    %163 = vector.extract_strided_slice %35 {offsets = [0, 0], sizes = [1, 32], strides = [1, 1]} : vector<4x32xf32> to vector<1x32xf32>
    %164 = vector.extract_strided_slice %35 {offsets = [1, 0], sizes = [1, 32], strides = [1, 1]} : vector<4x32xf32> to vector<1x32xf32>
    %cst_51 = arith.constant dense<0.000000e+00> : vector<16xf32>
    %165 = vector.multi_reduction <add>, %162, %cst_51 [1] : vector<16x32xf32> to vector<16xf32>
    %166 = vector.shape_cast %165 : vector<16xf32> to vector<16x1xf32>
    %cst_52 = arith.constant 3.200000e+01 : f32
    %167 = vector.broadcast %cst_52 : f32 to vector<16x1xf32>
    %168 = arith.divf %166, %167 : vector<16x1xf32>
    %169 = vector.broadcast %168 : vector<16x1xf32> to vector<16x32xf32>
    %170 = arith.subf %162, %169 : vector<16x32xf32>
    %171 = arith.mulf %170, %170 : vector<16x32xf32>
    %cst_53 = arith.constant dense<0.000000e+00> : vector<16xf32>
    %172 = vector.multi_reduction <add>, %171, %cst_53 [1] : vector<16x32xf32> to vector<16xf32>
    %173 = vector.shape_cast %172 : vector<16xf32> to vector<16x1xf32>
    %cst_54 = arith.constant 3.200000e+01 : f32
    %174 = vector.broadcast %cst_54 : f32 to vector<16x1xf32>
    %175 = arith.divf %173, %174 : vector<16x1xf32>
    %176 = vector.broadcast %168 : vector<16x1xf32> to vector<16x32xf32>
    %177 = arith.subf %162, %176 : vector<16x32xf32>
    %cst_55 = arith.constant 9.99999996E-13 : f32
    %178 = vector.broadcast %cst_55 : f32 to vector<16x1xf32>
    %179 = arith.addf %175, %178 : vector<16x1xf32>
    %180 = math.rsqrt %179 : vector<16x1xf32>
    %181 = vector.broadcast %180 : vector<16x1xf32> to vector<16x32xf32>
    %182 = arith.mulf %177, %181 : vector<16x32xf32>
    %183 = vector.broadcast %163 : vector<1x32xf32> to vector<16x32xf32>
    %184 = arith.mulf %182, %183 : vector<16x32xf32>
    %185 = vector.broadcast %164 : vector<1x32xf32> to vector<16x32xf32>
    %186 = arith.addf %184, %185 : vector<16x32xf32>
    %187 = arith.truncf %186 : vector<16x32xf32> to vector<16x32xbf16>
    %c0_56 = arith.constant 0 : index
    %c0_57 = arith.constant 0 : index
    %c0_58 = arith.constant 0 : index
    %188 = vector.load %arg5[%c0_56, %c0_57, %c0_58] : memref<2x32x64xbf16, #tpu.memory_space<vmem>>, vector<1x32x64xbf16>
    %189 = vector.shape_cast %188 : vector<1x32x64xbf16> to vector<32x64xbf16>
    %cst_59 = arith.constant dense<0.000000e+00> : vector<16x64xf32>
    %190 = tpu.matmul %187, %189, %cst_59 {dimension_numbers = #tpu.dot_dimension_numbers<[1], [0], [0], [1], [0, 0, 1, 1], [], []>} : vector<16x32xbf16>, vector<32x64xbf16>, vector<16x64xf32> -> vector<16x64xf32>
    %c0_60 = arith.constant 0 : index
    %c0_61 = arith.constant 0 : index
    %c0_62 = arith.constant 0 : index
    %191 = vector.load %arg6[%c0_60, %c0_61, %c0_62] : memref<2x1x64xf32, #tpu.memory_space<vmem>>, vector<1x1x64xf32>
    %192 = vector.shape_cast %191 : vector<1x1x64xf32> to vector<1x64xf32>
    %193 = vector.broadcast %192 : vector<1x64xf32> to vector<16x64xf32>
    %194 = arith.addf %190, %193 : vector<16x64xf32>
    %195 = arith.mulf %194, %194 : vector<16x64xf32>
    %196 = arith.mulf %194, %195 : vector<16x64xf32>
    %cst_63 = arith.constant 4.471500e-02 : f32
    %197 = vector.broadcast %cst_63 : f32 to vector<16x64xf32>
    %198 = arith.mulf %197, %196 : vector<16x64xf32>
    %199 = arith.addf %194, %198 : vector<16x64xf32>
    %cst_64 = arith.constant 0.797884583 : f32
    %200 = vector.broadcast %cst_64 : f32 to vector<16x64xf32>
    %201 = arith.mulf %200, %199 : vector<16x64xf32>
    %202 = math.tanh %201 : vector<16x64xf32>
    %cst_65 = arith.constant 1.000000e+00 : f32
    %203 = vector.broadcast %cst_65 : f32 to vector<16x64xf32>
    %204 = arith.addf %203, %202 : vector<16x64xf32>
    %cst_66 = arith.constant 5.000000e-01 : f32
    %205 = vector.broadcast %cst_66 : f32 to vector<16x64xf32>
    %206 = arith.mulf %205, %204 : vector<16x64xf32>
    %207 = arith.mulf %194, %206 : vector<16x64xf32>
    %208 = arith.truncf %207 : vector<16x64xf32> to vector<16x64xbf16>
    %c0_67 = arith.constant 0 : index
    %c0_68 = arith.constant 0 : index
    %c0_69 = arith.constant 0 : index
    %209 = vector.load %arg7[%c0_67, %c0_68, %c0_69] : memref<2x64x32xbf16, #tpu.memory_space<vmem>>, vector<1x64x32xbf16>
    %210 = vector.shape_cast %209 : vector<1x64x32xbf16> to vector<64x32xbf16>
    %cst_70 = arith.constant dense<0.000000e+00> : vector<16x32xf32>
    %211 = tpu.matmul %208, %210, %cst_70 {dimension_numbers = #tpu.dot_dimension_numbers<[1], [0], [0], [1], [0, 0, 1, 1], [], []>} : vector<16x64xbf16>, vector<64x32xbf16>, vector<16x32xf32> -> vector<16x32xf32>
    %c0_71 = arith.constant 0 : index
    %c0_72 = arith.constant 0 : index
    %c0_73 = arith.constant 0 : index
    %212 = vector.load %arg8[%c0_71, %c0_72, %c0_73] : memref<2x1x32xf32, #tpu.memory_space<vmem>>, vector<1x1x32xf32>
    %213 = vector.shape_cast %212 : vector<1x1x32xf32> to vector<1x32xf32>
    %214 = vector.broadcast %213 : vector<1x32xf32> to vector<16x32xf32>
    %215 = arith.addf %211, %214 : vector<16x32xf32>
    %216 = arith.addf %186, %215 : vector<16x32xf32>
    %217 = vector.extract_strided_slice %35 {offsets = [2, 0], sizes = [1, 32], strides = [1, 1]} : vector<4x32xf32> to vector<1x32xf32>
    %218 = vector.extract_strided_slice %35 {offsets = [3, 0], sizes = [1, 32], strides = [1, 1]} : vector<4x32xf32> to vector<1x32xf32>
    %cst_74 = arith.constant dense<0.000000e+00> : vector<16xf32>
    %219 = vector.multi_reduction <add>, %216, %cst_74 [1] : vector<16x32xf32> to vector<16xf32>
    %220 = vector.shape_cast %219 : vector<16xf32> to vector<16x1xf32>
    %cst_75 = arith.constant 3.200000e+01 : f32
    %221 = vector.broadcast %cst_75 : f32 to vector<16x1xf32>
    %222 = arith.divf %220, %221 : vector<16x1xf32>
    %223 = vector.broadcast %222 : vector<16x1xf32> to vector<16x32xf32>
    %224 = arith.subf %216, %223 : vector<16x32xf32>
    %225 = arith.mulf %224, %224 : vector<16x32xf32>
    %cst_76 = arith.constant dense<0.000000e+00> : vector<16xf32>
    %226 = vector.multi_reduction <add>, %225, %cst_76 [1] : vector<16x32xf32> to vector<16xf32>
    %227 = vector.shape_cast %226 : vector<16xf32> to vector<16x1xf32>
    %cst_77 = arith.constant 3.200000e+01 : f32
    %228 = vector.broadcast %cst_77 : f32 to vector<16x1xf32>
    %229 = arith.divf %227, %228 : vector<16x1xf32>
    %230 = vector.broadcast %222 : vector<16x1xf32> to vector<16x32xf32>
    %231 = arith.subf %216, %230 : vector<16x32xf32>
    %cst_78 = arith.constant 9.99999996E-13 : f32
    %232 = vector.broadcast %cst_78 : f32 to vector<16x1xf32>
    %233 = arith.addf %229, %232 : vector<16x1xf32>
    %234 = math.rsqrt %233 : vector<16x1xf32>
    %235 = vector.broadcast %234 : vector<16x1xf32> to vector<16x32xf32>
    %236 = arith.mulf %231, %235 : vector<16x32xf32>
    %237 = vector.broadcast %217 : vector<1x32xf32> to vector<16x32xf32>
    %238 = arith.mulf %236, %237 : vector<16x32xf32>
    %239 = vector.broadcast %218 : vector<1x32xf32> to vector<16x32xf32>
    %240 = arith.addf %238, %239 : vector<16x32xf32>
    %c1_79 = arith.constant 1 : index
    %c0_80 = arith.constant 0 : index
    %c0_81 = arith.constant 0 : index
    %241 = vector.load %arg3[%c1_79, %c0_80, %c0_81] : memref<2x32x128xbf16, #tpu.memory_space<vmem>>, vector<1x32x128xbf16>
    %242 = vector.shape_cast %241 : vector<1x32x128xbf16> to vector<32x128xbf16>
    %c1_82 = arith.constant 1 : index
    %c0_83 = arith.constant 0 : index
    %c0_84 = arith.constant 0 : index
    %243 = vector.load %arg4[%c1_82, %c0_83, %c0_84] : memref<2x1x128xf32, #tpu.memory_space<vmem>>, vector<1x1x128xf32>
    %244 = vector.shape_cast %243 : vector<1x1x128xf32> to vector<1x128xf32>
    %c1_85 = arith.constant 1 : index
    %c0_86 = arith.constant 0 : index
    %c0_87 = arith.constant 0 : index
    %245 = vector.load %arg9[%c1_85, %c0_86, %c0_87] : memref<2x4x32xf32, #tpu.memory_space<vmem>>, vector<1x4x32xf32>
    %246 = vector.shape_cast %245 : vector<1x4x32xf32> to vector<4x32xf32>
    %247 = arith.truncf %240 : vector<16x32xf32> to vector<16x32xbf16>
    %cst_88 = arith.constant dense<0.000000e+00> : vector<16x128xf32>
    %248 = tpu.matmul %247, %242, %cst_88 {dimension_numbers = #tpu.dot_dimension_numbers<[1], [0], [0], [1], [0, 0, 1, 1], [], []>} : vector<16x32xbf16>, vector<32x128xbf16>, vector<16x128xf32> -> vector<16x128xf32>
    %249 = vector.broadcast %244 : vector<1x128xf32> to vector<16x128xf32>
    %250 = arith.addf %248, %249 : vector<16x128xf32>
    %251 = vector.extract_strided_slice %250 {offsets = [0, 0], sizes = [16, 32], strides = [1, 1]} : vector<16x128xf32> to vector<16x32xf32>
    %252 = vector.extract_strided_slice %250 {offsets = [0, 32], sizes = [16, 32], strides = [1, 1]} : vector<16x128xf32> to vector<16x32xf32>
    %253 = vector.extract_strided_slice %250 {offsets = [0, 64], sizes = [16, 32], strides = [1, 1]} : vector<16x128xf32> to vector<16x32xf32>
    %254 = vector.extract_strided_slice %251 {offsets = [0, 0], sizes = [16, 8], strides = [1, 1]} : vector<16x32xf32> to vector<16x8xf32>
    %255 = vector.shape_cast %254 : vector<16x8xf32> to vector<2x8x8xf32>
    %256 = arith.truncf %255 : vector<2x8x8xf32> to vector<2x8x8xbf16>
    %257 = vector.extract_strided_slice %252 {offsets = [0, 0], sizes = [16, 8], strides = [1, 1]} : vector<16x32xf32> to vector<16x8xf32>
    %258 = vector.shape_cast %257 : vector<16x8xf32> to vector<2x8x8xf32>
    %259 = arith.truncf %258 : vector<2x8x8xf32> to vector<2x8x8xbf16>
    %260 = vector.extract_strided_slice %253 {offsets = [0, 0], sizes = [16, 8], strides = [1, 1]} : vector<16x32xf32> to vector<16x8xf32>
    %261 = vector.shape_cast %260 : vector<16x8xf32> to vector<2x8x8xf32>
    %262 = arith.truncf %261 : vector<2x8x8xf32> to vector<2x8x8xbf16>
    "tpu.trace_start"() <{level = 10 : i32, message = "bqd,bkd->bqk"}> : () -> ()
    %cst_89 = arith.constant dense<0.000000e+00> : vector<2x8x8xf32>
    %263 = tpu.matmul %256, %259, %cst_89 {dimension_numbers = #tpu.dot_dimension_numbers<[2], [2], [1], [1], [0, 0, 0, 1, 1, 1], [0], [0]>} : vector<2x8x8xbf16>, vector<2x8x8xbf16>, vector<2x8x8xf32> -> vector<2x8x8xf32>
    "tpu.trace_stop"() : () -> ()
    %cst_90 = arith.constant 0.353553385 : f32
    %264 = vector.broadcast %cst_90 : f32 to vector<2x8x8xf32>
    %265 = arith.mulf %263, %264 : vector<2x8x8xf32>
    %266 = vector.broadcast %4 : vector<2x1x8xf32> to vector<2x8x8xf32>
    %267 = arith.addf %265, %266 : vector<2x8x8xf32>
    %cst_91 = arith.constant dense<0xFF800000> : vector<2x8xf32>
    %268 = vector.multi_reduction <maximumf>, %267, %cst_91 [2] : vector<2x8x8xf32> to vector<2x8xf32>
    %269 = vector.shape_cast %268 : vector<2x8xf32> to vector<2x8x1xf32>
    %270 = vector.broadcast %269 : vector<2x8x1xf32> to vector<2x8x8xf32>
    %271 = arith.subf %267, %270 : vector<2x8x8xf32>
    %272 = math.exp %271 : vector<2x8x8xf32>
    %cst_92 = arith.constant dense<0.000000e+00> : vector<2x8xf32>
    %273 = vector.multi_reduction <add>, %272, %cst_92 [2] : vector<2x8x8xf32> to vector<2x8xf32>
    %274 = vector.shape_cast %273 : vector<2x8xf32> to vector<2x8x1xf32>
    %275 = tpu.reciprocal %274 {approx = true} : vector<2x8x1xf32> -> vector<2x8x1xf32>
    %276 = vector.broadcast %275 : vector<2x8x1xf32> to vector<2x8x8xf32>
    %277 = arith.mulf %272, %276 : vector<2x8x8xf32>
    %278 = arith.truncf %277 : vector<2x8x8xf32> to vector<2x8x8xbf16>
    "tpu.trace_start"() <{level = 10 : i32, message = "bqk,bkd->bqd"}> : () -> ()
    %cst_93 = arith.constant dense<0.000000e+00> : vector<2x8x8xf32>
    %279 = tpu.matmul %278, %262, %cst_93 {dimension_numbers = #tpu.dot_dimension_numbers<[2], [1], [1], [2], [0, 0, 0, 1, 1, 2], [0], [0]>} : vector<2x8x8xbf16>, vector<2x8x8xbf16>, vector<2x8x8xf32> -> vector<2x8x8xf32>
    "tpu.trace_stop"() : () -> ()
    %280 = vector.shape_cast %279 : vector<2x8x8xf32> to vector<16x8xf32>
    %c0_94 = arith.constant 0 : index
    %c0_95 = arith.constant 0 : index
    %281 = vector.load %arg11[%c0_94, %c0_95] : memref<16x32xf32, #tpu.memory_space<vmem>>, vector<16x8xf32>
    tpu.vector_store %arg11[%c0_94, %c0_95], %280 {strides = array<i32>} : memref<16x32xf32, #tpu.memory_space<vmem>>, vector<16x8xf32>,
    %282 = vector.extract_strided_slice %251 {offsets = [0, 8], sizes = [16, 8], strides = [1, 1]} : vector<16x32xf32> to vector<16x8xf32>
    %283 = vector.shape_cast %282 : vector<16x8xf32> to vector<2x8x8xf32>
    %284 = arith.truncf %283 : vector<2x8x8xf32> to vector<2x8x8xbf16>
    %285 = vector.extract_strided_slice %252 {offsets = [0, 8], sizes = [16, 8], strides = [1, 1]} : vector<16x32xf32> to vector<16x8xf32>
    %286 = vector.shape_cast %285 : vector<16x8xf32> to vector<2x8x8xf32>
    %287 = arith.truncf %286 : vector<2x8x8xf32> to vector<2x8x8xbf16>
    %288 = vector.extract_strided_slice %253 {offsets = [0, 8], sizes = [16, 8], strides = [1, 1]} : vector<16x32xf32> to vector<16x8xf32>
    %289 = vector.shape_cast %288 : vector<16x8xf32> to vector<2x8x8xf32>
    %290 = arith.truncf %289 : vector<2x8x8xf32> to vector<2x8x8xbf16>
    "tpu.trace_start"() <{level = 10 : i32, message = "bqd,bkd->bqk"}> : () -> ()
    %cst_96 = arith.constant dense<0.000000e+00> : vector<2x8x8xf32>
    %291 = tpu.matmul %284, %287, %cst_96 {dimension_numbers = #tpu.dot_dimension_numbers<[2], [2], [1], [1], [0, 0, 0, 1, 1, 1], [0], [0]>} : vector<2x8x8xbf16>, vector<2x8x8xbf16>, vector<2x8x8xf32> -> vector<2x8x8xf32>
    "tpu.trace_stop"() : () -> ()
    %cst_97 = arith.constant 0.353553385 : f32
    %292 = vector.broadcast %cst_97 : f32 to vector<2x8x8xf32>
    %293 = arith.mulf %291, %292 : vector<2x8x8xf32>
    %294 = vector.broadcast %4 : vector<2x1x8xf32> to vector<2x8x8xf32>
    %295 = arith.addf %293, %294 : vector<2x8x8xf32>
    %cst_98 = arith.constant dense<0xFF800000> : vector<2x8xf32>
    %296 = vector.multi_reduction <maximumf>, %295, %cst_98 [2] : vector<2x8x8xf32> to vector<2x8xf32>
    %297 = vector.shape_cast %296 : vector<2x8xf32> to vector<2x8x1xf32>
    %298 = vector.broadcast %297 : vector<2x8x1xf32> to vector<2x8x8xf32>
    %299 = arith.subf %295, %298 : vector<2x8x8xf32>
    %300 = math.exp %299 : vector<2x8x8xf32>
    %cst_99 = arith.constant dense<0.000000e+00> : vector<2x8xf32>
    %301 = vector.multi_reduction <add>, %300, %cst_99 [2] : vector<2x8x8xf32> to vector<2x8xf32>
    %302 = vector.shape_cast %301 : vector<2x8xf32> to vector<2x8x1xf32>
    %303 = tpu.reciprocal %302 {approx = true} : vector<2x8x1xf32> -> vector<2x8x1xf32>
    %304 = vector.broadcast %303 : vector<2x8x1xf32> to vector<2x8x8xf32>
    %305 = arith.mulf %300, %304 : vector<2x8x8xf32>
    %306 = arith.truncf %305 : vector<2x8x8xf32> to vector<2x8x8xbf16>
    "tpu.trace_start"() <{level = 10 : i32, message = "bqk,bkd->bqd"}> : () -> ()
    %cst_100 = arith.constant dense<0.000000e+00> : vector<2x8x8xf32>
    %307 = tpu.matmul %306, %290, %cst_100 {dimension_numbers = #tpu.dot_dimension_numbers<[2], [1], [1], [2], [0, 0, 0, 1, 1, 2], [0], [0]>} : vector<2x8x8xbf16>, vector<2x8x8xbf16>, vector<2x8x8xf32> -> vector<2x8x8xf32>
    "tpu.trace_stop"() : () -> ()
    %308 = vector.shape_cast %307 : vector<2x8x8xf32> to vector<16x8xf32>
    %c0_101 = arith.constant 0 : index
    %c8_102 = arith.constant 8 : index
    %309 = vector.load %arg11[%c0_101, %c8_102] : memref<16x32xf32, #tpu.memory_space<vmem>>, vector<16x8xf32>
    tpu.vector_store %arg11[%c0_101, %c8_102], %308 {strides = array<i32>} : memref<16x32xf32, #tpu.memory_space<vmem>>, vector<16x8xf32>,
    %310 = vector.extract_strided_slice %251 {offsets = [0, 16], sizes = [16, 8], strides = [1, 1]} : vector<16x32xf32> to vector<16x8xf32>
    %311 = vector.shape_cast %310 : vector<16x8xf32> to vector<2x8x8xf32>
    %312 = arith.truncf %311 : vector<2x8x8xf32> to vector<2x8x8xbf16>
    %313 = vector.extract_strided_slice %252 {offsets = [0, 16], sizes = [16, 8], strides = [1, 1]} : vector<16x32xf32> to vector<16x8xf32>
    %314 = vector.shape_cast %313 : vector<16x8xf32> to vector<2x8x8xf32>
    %315 = arith.truncf %314 : vector<2x8x8xf32> to vector<2x8x8xbf16>
    %316 = vector.extract_strided_slice %253 {offsets = [0, 16], sizes = [16, 8], strides = [1, 1]} : vector<16x32xf32> to vector<16x8xf32>
    %317 = vector.shape_cast %316 : vector<16x8xf32> to vector<2x8x8xf32>
    %318 = arith.truncf %317 : vector<2x8x8xf32> to vector<2x8x8xbf16>
    "tpu.trace_start"() <{level = 10 : i32, message = "bqd,bkd->bqk"}> : () -> ()
    %cst_103 = arith.constant dense<0.000000e+00> : vector<2x8x8xf32>
    %319 = tpu.matmul %312, %315, %cst_103 {dimension_numbers = #tpu.dot_dimension_numbers<[2], [2], [1], [1], [0, 0, 0, 1, 1, 1], [0], [0]>} : vector<2x8x8xbf16>, vector<2x8x8xbf16>, vector<2x8x8xf32> -> vector<2x8x8xf32>
    "tpu.trace_stop"() : () -> ()
    %cst_104 = arith.constant 0.353553385 : f32
    %320 = vector.broadcast %cst_104 : f32 to vector<2x8x8xf32>
    %321 = arith.mulf %319, %320 : vector<2x8x8xf32>
    %322 = vector.broadcast %4 : vector<2x1x8xf32> to vector<2x8x8xf32>
    %323 = arith.addf %321, %322 : vector<2x8x8xf32>
    %cst_105 = arith.constant dense<0xFF800000> : vector<2x8xf32>
    %324 = vector.multi_reduction <maximumf>, %323, %cst_105 [2] : vector<2x8x8xf32> to vector<2x8xf32>
    %325 = vector.shape_cast %324 : vector<2x8xf32> to vector<2x8x1xf32>
    %326 = vector.broadcast %325 : vector<2x8x1xf32> to vector<2x8x8xf32>
    %327 = arith.subf %323, %326 : vector<2x8x8xf32>
    %328 = math.exp %327 : vector<2x8x8xf32>
    %cst_106 = arith.constant dense<0.000000e+00> : vector<2x8xf32>
    %329 = vector.multi_reduction <add>, %328, %cst_106 [2] : vector<2x8x8xf32> to vector<2x8xf32>
    %330 = vector.shape_cast %329 : vector<2x8xf32> to vector<2x8x1xf32>
    %331 = tpu.reciprocal %330 {approx = true} : vector<2x8x1xf32> -> vector<2x8x1xf32>
    %332 = vector.broadcast %331 : vector<2x8x1xf32> to vector<2x8x8xf32>
    %333 = arith.mulf %328, %332 : vector<2x8x8xf32>
    %334 = arith.truncf %333 : vector<2x8x8xf32> to vector<2x8x8xbf16>
    "tpu.trace_start"() <{level = 10 : i32, message = "bqk,bkd->bqd"}> : () -> ()
    %cst_107 = arith.constant dense<0.000000e+00> : vector<2x8x8xf32>
    %335 = tpu.matmul %334, %318, %cst_107 {dimension_numbers = #tpu.dot_dimension_numbers<[2], [1], [1], [2], [0, 0, 0, 1, 1, 2], [0], [0]>} : vector<2x8x8xbf16>, vector<2x8x8xbf16>, vector<2x8x8xf32> -> vector<2x8x8xf32>
    "tpu.trace_stop"() : () -> ()
    %336 = vector.shape_cast %335 : vector<2x8x8xf32> to vector<16x8xf32>
    %c0_108 = arith.constant 0 : index
    %c16_109 = arith.constant 16 : index
    %337 = vector.load %arg11[%c0_108, %c16_109] : memref<16x32xf32, #tpu.memory_space<vmem>>, vector<16x8xf32>
    tpu.vector_store %arg11[%c0_108, %c16_109], %336 {strides = array<i32>} : memref<16x32xf32, #tpu.memory_space<vmem>>, vector<16x8xf32>,
    %338 = vector.extract_strided_slice %251 {offsets = [0, 24], sizes = [16, 8], strides = [1, 1]} : vector<16x32xf32> to vector<16x8xf32>
    %339 = vector.shape_cast %338 : vector<16x8xf32> to vector<2x8x8xf32>
    %340 = arith.truncf %339 : vector<2x8x8xf32> to vector<2x8x8xbf16>
    %341 = vector.extract_strided_slice %252 {offsets = [0, 24], sizes = [16, 8], strides = [1, 1]} : vector<16x32xf32> to vector<16x8xf32>
    %342 = vector.shape_cast %341 : vector<16x8xf32> to vector<2x8x8xf32>
    %343 = arith.truncf %342 : vector<2x8x8xf32> to vector<2x8x8xbf16>
    %344 = vector.extract_strided_slice %253 {offsets = [0, 24], sizes = [16, 8], strides = [1, 1]} : vector<16x32xf32> to vector<16x8xf32>
    %345 = vector.shape_cast %344 : vector<16x8xf32> to vector<2x8x8xf32>
    %346 = arith.truncf %345 : vector<2x8x8xf32> to vector<2x8x8xbf16>
    "tpu.trace_start"() <{level = 10 : i32, message = "bqd,bkd->bqk"}> : () -> ()
    %cst_110 = arith.constant dense<0.000000e+00> : vector<2x8x8xf32>
    %347 = tpu.matmul %340, %343, %cst_110 {dimension_numbers = #tpu.dot_dimension_numbers<[2], [2], [1], [1], [0, 0, 0, 1, 1, 1], [0], [0]>} : vector<2x8x8xbf16>, vector<2x8x8xbf16>, vector<2x8x8xf32> -> vector<2x8x8xf32>
    "tpu.trace_stop"() : () -> ()
    %cst_111 = arith.constant 0.353553385 : f32
    %348 = vector.broadcast %cst_111 : f32 to vector<2x8x8xf32>
    %349 = arith.mulf %347, %348 : vector<2x8x8xf32>
    %350 = vector.broadcast %4 : vector<2x1x8xf32> to vector<2x8x8xf32>
    %351 = arith.addf %349, %350 : vector<2x8x8xf32>
    %cst_112 = arith.constant dense<0xFF800000> : vector<2x8xf32>
    %352 = vector.multi_reduction <maximumf>, %351, %cst_112 [2] : vector<2x8x8xf32> to vector<2x8xf32>
    %353 = vector.shape_cast %352 : vector<2x8xf32> to vector<2x8x1xf32>
    %354 = vector.broadcast %353 : vector<2x8x1xf32> to vector<2x8x8xf32>
    %355 = arith.subf %351, %354 : vector<2x8x8xf32>
    %356 = math.exp %355 : vector<2x8x8xf32>
    %cst_113 = arith.constant dense<0.000000e+00> : vector<2x8xf32>
    %357 = vector.multi_reduction <add>, %356, %cst_113 [2] : vector<2x8x8xf32> to vector<2x8xf32>
    %358 = vector.shape_cast %357 : vector<2x8xf32> to vector<2x8x1xf32>
    %359 = tpu.reciprocal %358 {approx = true} : vector<2x8x1xf32> -> vector<2x8x1xf32>
    %360 = vector.broadcast %359 : vector<2x8x1xf32> to vector<2x8x8xf32>
    %361 = arith.mulf %356, %360 : vector<2x8x8xf32>
    %362 = arith.truncf %361 : vector<2x8x8xf32> to vector<2x8x8xbf16>
    "tpu.trace_start"() <{level = 10 : i32, message = "bqk,bkd->bqd"}> : () -> ()
    %cst_114 = arith.constant dense<0.000000e+00> : vector<2x8x8xf32>
    %363 = tpu.matmul %362, %346, %cst_114 {dimension_numbers = #tpu.dot_dimension_numbers<[2], [1], [1], [2], [0, 0, 0, 1, 1, 2], [0], [0]>} : vector<2x8x8xbf16>, vector<2x8x8xbf16>, vector<2x8x8xf32> -> vector<2x8x8xf32>
    "tpu.trace_stop"() : () -> ()
    %364 = vector.shape_cast %363 : vector<2x8x8xf32> to vector<16x8xf32>
    %c0_115 = arith.constant 0 : index
    %c24_116 = arith.constant 24 : index
    %365 = vector.load %arg11[%c0_115, %c24_116] : memref<16x32xf32, #tpu.memory_space<vmem>>, vector<16x8xf32>
    tpu.vector_store %arg11[%c0_115, %c24_116], %364 {strides = array<i32>} : memref<16x32xf32, #tpu.memory_space<vmem>>, vector<16x8xf32>,
    %c0_117 = arith.constant 0 : index
    %c0_118 = arith.constant 0 : index
    %366 = vector.load %arg11[%c0_117, %c0_118] : memref<16x32xf32, #tpu.memory_space<vmem>>, vector<16x32xf32>
    %367 = arith.truncf %366 : vector<16x32xf32> to vector<16x32xbf16>
    %368 = vector.extract_strided_slice %242 {offsets = [0, 96], sizes = [32, 32], strides = [1, 1]} : vector<32x128xbf16> to vector<32x32xbf16>
    %cst_119 = arith.constant dense<0.000000e+00> : vector<16x32xf32>
    %369 = tpu.matmul %367, %368, %cst_119 {dimension_numbers = #tpu.dot_dimension_numbers<[1], [0], [0], [1], [0, 0, 1, 1], [], []>} : vector<16x32xbf16>, vector<32x32xbf16>, vector<16x32xf32> -> vector<16x32xf32>
    %370 = vector.extract_strided_slice %244 {offsets = [0, 96], sizes = [1, 32], strides = [1, 1]} : vector<1x128xf32> to vector<1x32xf32>
    %371 = vector.broadcast %370 : vector<1x32xf32> to vector<16x32xf32>
    %372 = arith.addf %369, %371 : vector<16x32xf32>
    %373 = arith.addf %240, %372 : vector<16x32xf32>
    %374 = vector.extract_strided_slice %246 {offsets = [0, 0], sizes = [1, 32], strides = [1, 1]} : vector<4x32xf32> to vector<1x32xf32>
    %375 = vector.extract_strided_slice %246 {offsets = [1, 0], sizes = [1, 32], strides = [1, 1]} : vector<4x32xf32> to vector<1x32xf32>
    %cst_120 = arith.constant dense<0.000000e+00> : vector<16xf32>
    %376 = vector.multi_reduction <add>, %373, %cst_120 [1] : vector<16x32xf32> to vector<16xf32>
    %377 = vector.shape_cast %376 : vector<16xf32> to vector<16x1xf32>
    %cst_121 = arith.constant 3.200000e+01 : f32
    %378 = vector.broadcast %cst_121 : f32 to vector<16x1xf32>
    %379 = arith.divf %377, %378 : vector<16x1xf32>
    %380 = vector.broadcast %379 : vector<16x1xf32> to vector<16x32xf32>
    %381 = arith.subf %373, %380 : vector<16x32xf32>
    %382 = arith.mulf %381, %381 : vector<16x32xf32>
    %cst_122 = arith.constant dense<0.000000e+00> : vector<16xf32>
    %383 = vector.multi_reduction <add>, %382, %cst_122 [1] : vector<16x32xf32> to vector<16xf32>
    %384 = vector.shape_cast %383 : vector<16xf32> to vector<16x1xf32>
    %cst_123 = arith.constant 3.200000e+01 : f32
    %385 = vector.broadcast %cst_123 : f32 to vector<16x1xf32>
    %386 = arith.divf %384, %385 : vector<16x1xf32>
    %387 = vector.broadcast %379 : vector<16x1xf32> to vector<16x32xf32>
    %388 = arith.subf %373, %387 : vector<16x32xf32>
    %cst_124 = arith.constant 9.99999996E-13 : f32
    %389 = vector.broadcast %cst_124 : f32 to vector<16x1xf32>
    %390 = arith.addf %386, %389 : vector<16x1xf32>
    %391 = math.rsqrt %390 : vector<16x1xf32>
    %392 = vector.broadcast %391 : vector<16x1xf32> to vector<16x32xf32>
    %393 = arith.mulf %388, %392 : vector<16x32xf32>
    %394 = vector.broadcast %374 : vector<1x32xf32> to vector<16x32xf32>
    %395 = arith.mulf %393, %394 : vector<16x32xf32>
    %396 = vector.broadcast %375 : vector<1x32xf32> to vector<16x32xf32>
    %397 = arith.addf %395, %396 : vector<16x32xf32>
    %398 = arith.truncf %397 : vector<16x32xf32> to vector<16x32xbf16>
    %c1_125 = arith.constant 1 : index
    %c0_126 = arith.constant 0 : index
    %c0_127 = arith.constant 0 : index
    %399 = vector.load %arg5[%c1_125, %c0_126, %c0_127] : memref<2x32x64xbf16, #tpu.memory_space<vmem>>, vector<1x32x64xbf16>
    %400 = vector.shape_cast %399 : vector<1x32x64xbf16> to vector<32x64xbf16>
    %cst_128 = arith.constant dense<0.000000e+00> : vector<16x64xf32>
    %401 = tpu.matmul %398, %400, %cst_128 {dimension_numbers = #tpu.dot_dimension_numbers<[1], [0], [0], [1], [0, 0, 1, 1], [], []>} : vector<16x32xbf16>, vector<32x64xbf16>, vector<16x64xf32> -> vector<16x64xf32>
    %c1_129 = arith.constant 1 : index
    %c0_130 = arith.constant 0 : index
    %c0_131 = arith.constant 0 : index
    %402 = vector.load %arg6[%c1_129, %c0_130, %c0_131] : memref<2x1x64xf32, #tpu.memory_space<vmem>>, vector<1x1x64xf32>
    %403 = vector.shape_cast %402 : vector<1x1x64xf32> to vector<1x64xf32>
    %404 = vector.broadcast %403 : vector<1x64xf32> to vector<16x64xf32>
    %405 = arith.addf %401, %404 : vector<16x64xf32>
    %406 = arith.mulf %405, %405 : vector<16x64xf32>
    %407 = arith.mulf %405, %406 : vector<16x64xf32>
    %cst_132 = arith.constant 4.471500e-02 : f32
    %408 = vector.broadcast %cst_132 : f32 to vector<16x64xf32>
    %409 = arith.mulf %408, %407 : vector<16x64xf32>
    %410 = arith.addf %405, %409 : vector<16x64xf32>
    %cst_133 = arith.constant 0.797884583 : f32
    %411 = vector.broadcast %cst_133 : f32 to vector<16x64xf32>
    %412 = arith.mulf %411, %410 : vector<16x64xf32>
    %413 = math.tanh %412 : vector<16x64xf32>
    %cst_134 = arith.constant 1.000000e+00 : f32
    %414 = vector.broadcast %cst_134 : f32 to vector<16x64xf32>
    %415 = arith.addf %414, %413 : vector<16x64xf32>
    %cst_135 = arith.constant 5.000000e-01 : f32
    %416 = vector.broadcast %cst_135 : f32 to vector<16x64xf32>
    %417 = arith.mulf %416, %415 : vector<16x64xf32>
    %418 = arith.mulf %405, %417 : vector<16x64xf32>
    %419 = arith.truncf %418 : vector<16x64xf32> to vector<16x64xbf16>
    %c1_136 = arith.constant 1 : index
    %c0_137 = arith.constant 0 : index
    %c0_138 = arith.constant 0 : index
    %420 = vector.load %arg7[%c1_136, %c0_137, %c0_138] : memref<2x64x32xbf16, #tpu.memory_space<vmem>>, vector<1x64x32xbf16>
    %421 = vector.shape_cast %420 : vector<1x64x32xbf16> to vector<64x32xbf16>
    %cst_139 = arith.constant dense<0.000000e+00> : vector<16x32xf32>
    %422 = tpu.matmul %419, %421, %cst_139 {dimension_numbers = #tpu.dot_dimension_numbers<[1], [0], [0], [1], [0, 0, 1, 1], [], []>} : vector<16x64xbf16>, vector<64x32xbf16>, vector<16x32xf32> -> vector<16x32xf32>
    %c1_140 = arith.constant 1 : index
    %c0_141 = arith.constant 0 : index
    %c0_142 = arith.constant 0 : index
    %423 = vector.load %arg8[%c1_140, %c0_141, %c0_142] : memref<2x1x32xf32, #tpu.memory_space<vmem>>, vector<1x1x32xf32>
    %424 = vector.shape_cast %423 : vector<1x1x32xf32> to vector<1x32xf32>
    %425 = vector.broadcast %424 : vector<1x32xf32> to vector<16x32xf32>
    %426 = arith.addf %422, %425 : vector<16x32xf32>
    %427 = arith.addf %397, %426 : vector<16x32xf32>
    %428 = vector.extract_strided_slice %246 {offsets = [2, 0], sizes = [1, 32], strides = [1, 1]} : vector<4x32xf32> to vector<1x32xf32>
    %429 = vector.extract_strided_slice %246 {offsets = [3, 0], sizes = [1, 32], strides = [1, 1]} : vector<4x32xf32> to vector<1x32xf32>
    %cst_143 = arith.constant dense<0.000000e+00> : vector<16xf32>
    %430 = vector.multi_reduction <add>, %427, %cst_143 [1] : vector<16x32xf32> to vector<16xf32>
    %431 = vector.shape_cast %430 : vector<16xf32> to vector<16x1xf32>
    %cst_144 = arith.constant 3.200000e+01 : f32
    %432 = vector.broadcast %cst_144 : f32 to vector<16x1xf32>
    %433 = arith.divf %431, %432 : vector<16x1xf32>
    %434 = vector.broadcast %433 : vector<16x1xf32> to vector<16x32xf32>
    %435 = arith.subf %427, %434 : vector<16x32xf32>
    %436 = arith.mulf %435, %435 : vector<16x32xf32>
    %cst_145 = arith.constant dense<0.000000e+00> : vector<16xf32>
    %437 = vector.multi_reduction <add>, %436, %cst_145 [1] : vector<16x32xf32> to vector<16xf32>
    %438 = vector.shape_cast %437 : vector<16xf32> to vector<16x1xf32>
    %cst_146 = arith.constant 3.200000e+01 : f32
    %439 = vector.broadcast %cst_146 : f32 to vector<16x1xf32>
    %440 = arith.divf %438, %439 : vector<16x1xf32>
    %441 = vector.broadcast %433 : vector<16x1xf32> to vector<16x32xf32>
    %442 = arith.subf %427, %441 : vector<16x32xf32>
    %cst_147 = arith.constant 9.99999996E-13 : f32
    %443 = vector.broadcast %cst_147 : f32 to vector<16x1xf32>
    %444 = arith.addf %440, %443 : vector<16x1xf32>
    %445 = math.rsqrt %444 : vector<16x1xf32>
    %446 = vector.broadcast %445 : vector<16x1xf32> to vector<16x32xf32>
    %447 = arith.mulf %442, %446 : vector<16x32xf32>
    %448 = vector.broadcast %428 : vector<1x32xf32> to vector<16x32xf32>
    %449 = arith.mulf %447, %448 : vector<16x32xf32>
    %450 = vector.broadcast %429 : vector<1x32xf32> to vector<16x32xf32>
    %451 = arith.addf %449, %450 : vector<16x32xf32>
    %c0_148 = arith.constant 0 : index
    %c0_149 = arith.constant 0 : index
    %452 = vector.load %arg10[%c0_148, %c0_149] : memref<16x32xf32, #tpu.memory_space<vmem>>, vector<16x32xf32>
    tpu.vector_store %arg10[%c0_148, %c0_149], %451 {strides = array<i32>} : memref<16x32xf32, #tpu.memory_space<vmem>>, vector<16x32xf32>,
    return
  }
}

</mosaic_0001>

<llo_original>
// kernel: bert_model_wrapper_forward.1
$region0: #{bert_model_wrapper_forward.1}
  #allocation0 [shape = 'u32[]', space=smem, size = 0x4, offset = 0x4, fixed_abs, tag = 'smem constant byte address 0x4 - core index']
  #allocation1 [shape = 'u32[144,128]{1,0:T(1,128)}', space=vmem, size = 0x12000, scoped, tag = 'internal scratch']
  #allocation2 [shape = 'f32[16,32]{1,0:T(8,128)}', space=vmem, size = 0x2000, scoped, tag = 'scratch operand']
  %s0 = inlined_call_operand.vmem [shape: f32[16,32], index: 0, kind: input, shape index: {}]
  %s1 = inlined_call_operand.vmem [shape: f32[2,1,8], index: 1, kind: input, shape index: {}]
  %s2 = inlined_call_operand.vmem [shape: f32[2,32], index: 2, kind: input, shape index: {}]
  %s3 = inlined_call_operand.vmem [shape: bf16[2,32,128], index: 3, kind: input, shape index: {}]
  %s4 = inlined_call_operand.vmem [shape: f32[2,1,128], index: 4, kind: input, shape index: {}]
  %s5 = inlined_call_operand.vmem [shape: bf16[2,32,64], index: 5, kind: input, shape index: {}]
  %s6 = inlined_call_operand.vmem [shape: f32[2,1,64], index: 6, kind: input, shape index: {}]
  %s7 = inlined_call_operand.vmem [shape: bf16[2,64,32], index: 7, kind: input, shape index: {}]
  %s8 = inlined_call_operand.vmem [shape: f32[2,1,32], index: 8, kind: input, shape index: {}]
  %s9 = inlined_call_operand.vmem [shape: f32[2,4,32], index: 9, kind: input, shape index: {}]
  %s10 = inlined_call_operand.hbm [shape: f32[16,32], index: 10, kind: output, shape index: {}]
  %s11 = sld [smem:[#allocation0]]
  $region50: #{bert_model_wrapper_forward.1} parent=0
    _
  %s13 = ssub.s32 1, %s11
  %s14 = scalar_select 0, %s13, %s11
  $region1: #{bert_model_wrapper_forward.1} parent=0
    #allocation3 [shape = 'u8[8192]{0}', space=vmem, size = 0x2000, scoped, tag = 'output window, operand 0, single buffered']
    #allocation4 [shape = 's32[1]{0}', space=sflag, size = 0x4, scoped, tag = 'scoped memory for bert_model_wrapper_forward.1']
    %15 = vsyncpa [#allocation4], 0
    // Predicated region
    $region2: #{bert_model_wrapper_forward.1} parent=1 // pred_check
      _
    $region3: #{bert_model_wrapper_forward.1} parent=1 // pred_check_branch
      %17 = sbr.rel (0) target = $region5
    $region4: #{bert_model_wrapper_forward.1} parent=1 // pred_region
      _
    $region5: #{bert_model_wrapper_forward.1} parent=1 // pred_fallthru
      _
    // Predicated region
    $region6: #{bert_model_wrapper_forward.1} parent=1 // pred_check
      _
    $region7: #{bert_model_wrapper_forward.1} parent=1 // pred_check_branch
      %19 = sbr.rel (0) target = $region9
    $region8: #{bert_model_wrapper_forward.1} parent=1 // pred_region
      _
    $region9: #{bert_model_wrapper_forward.1} parent=1 // pred_fallthru
      _
    // Predicated region
    $region10: #{bert_model_wrapper_forward.1} parent=1 // pred_check
      _
    $region11: #{bert_model_wrapper_forward.1} parent=1 // pred_check_branch
      %21 = sbr.rel (0) target = $region13
    $region12: #{bert_model_wrapper_forward.1} parent=1 // pred_region
      _
    $region13: #{bert_model_wrapper_forward.1} parent=1 // pred_fallthru
      _
    // Predicated region
    $region14: #{bert_model_wrapper_forward.1} parent=1 // pred_check
      _
    $region15: #{bert_model_wrapper_forward.1} parent=1 // pred_check_branch
      %23 = sbr.rel (0) target = $region17
    $region16: #{bert_model_wrapper_forward.1} parent=1 // pred_region
      _
    $region17: #{bert_model_wrapper_forward.1} parent=1 // pred_fallthru
      _
    // Predicated region
    $region18: #{bert_model_wrapper_forward.1} parent=1 // pred_check
      _
    $region19: #{bert_model_wrapper_forward.1} parent=1 // pred_check_branch
      %25 = sbr.rel (0) target = $region21
    $region20: #{bert_model_wrapper_forward.1} parent=1 // pred_region
      _
    $region21: #{bert_model_wrapper_forward.1} parent=1 // pred_fallthru
      _
    // Predicated region
    $region22: #{bert_model_wrapper_forward.1} parent=1 // pred_check
      _
    $region23: #{bert_model_wrapper_forward.1} parent=1 // pred_check_branch
      %27 = sbr.rel (0) target = $region25
    $region24: #{bert_model_wrapper_forward.1} parent=1 // pred_region
      _
    $region25: #{bert_model_wrapper_forward.1} parent=1 // pred_fallthru
      _
    // Predicated region
    $region26: #{bert_model_wrapper_forward.1} parent=1 // pred_check
      _
    $region27: #{bert_model_wrapper_forward.1} parent=1 // pred_check_branch
      %29 = sbr.rel (0) target = $region29
    $region28: #{bert_model_wrapper_forward.1} parent=1 // pred_region
      _
    $region29: #{bert_model_wrapper_forward.1} parent=1 // pred_fallthru
      _
    // Predicated region
    $region30: #{bert_model_wrapper_forward.1} parent=1 // pred_check
      _
    $region31: #{bert_model_wrapper_forward.1} parent=1 // pred_check_branch
      %31 = sbr.rel (0) target = $region33
    $region32: #{bert_model_wrapper_forward.1} parent=1 // pred_region
      _
    $region33: #{bert_model_wrapper_forward.1} parent=1 // pred_fallthru
      _
    // Predicated region
    $region34: #{bert_model_wrapper_forward.1} parent=1 // pred_check
      _
    $region35: #{bert_model_wrapper_forward.1} parent=1 // pred_check_branch
      %33 = sbr.rel (0) target = $region37
    $region36: #{bert_model_wrapper_forward.1} parent=1 // pred_region
      _
    $region37: #{bert_model_wrapper_forward.1} parent=1 // pred_fallthru
      _
    // Predicated region
    $region38: #{bert_model_wrapper_forward.1} parent=1 // pred_check
      _
    $region39: #{bert_model_wrapper_forward.1} parent=1 // pred_check_branch
      %35 = sbr.rel (0) target = $region41
    $region40: #{bert_model_wrapper_forward.1} parent=1 // pred_region
      _
    $region41: #{bert_model_wrapper_forward.1} parent=1 // pred_fallthru
      _
    %v37 = vld [vmem:[%s1] sm:$0x1]
    %v38 = vld [vmem:[%s1 + $0x1] sm:$0x1]
    %v39 = vsub.f32 1.0, %v37
    %v40 = vsub.f32 1.0, %v38
    %v41 = vmul.f32 %v39, -10000.0
    %v42 = vmul.f32 %v40, -10000.0
    %v43 = vld [vmem:[%s0] sm:$0xff]
    %v44 = vld [vmem:[%s0 + $0x8] sm:$0xff]
    %v45 = vld [vmem:[%s2] sm:$0x1]
    %v46 = vld [vmem:[%s2 + $0x1] sm:$0x1]
    %vm47 = vcmask 261120
    %v48 = vsel %vm47, %v43, 0.0
    %49 = vadd.xlane.f32.xlu0 %v48
    %v50 = vpop.xlane.xlu0 %49
    %v51 = vsel %vm47, %v44, 0.0
    %52 = vadd.xlane.f32.xlu0 %v51
    %v53 = vpop.xlane.xlu0 %52
    %v54 = vrcp.pop 32.0
    %v55 = vmul.f32 %v50, %v54
    %v56 = vmul.f32 %v53, %v54
    %v57 = vsub.f32 %v43, %v55
    %v58 = vsub.f32 %v44, %v56
    %v59 = vmul.f32 %v57, %v57
    %v60 = vmul.f32 %v58, %v58
    %v61 = vsel %vm47, %v59, 0.0
    %62 = vadd.xlane.f32.xlu0 %v61
    %v63 = vpop.xlane.xlu0 %62
    %v64 = vsel %vm47, %v60, 0.0
    %65 = vadd.xlane.f32.xlu0 %v64
    %v66 = vpop.xlane.xlu0 %65
    %v67 = vmul.f32 %v63, %v54
    %v68 = vmul.f32 %v66, %v54
    %v69 = vadd.f32 %v67, 1e-12
    %v70 = vadd.f32 %v68, 1e-12
    %v71 = vrsqrt.pop %v69
    %v72 = vrsqrt.pop %v70
    %v73 = vmul.f32 %v57, %v71
    %v74 = vmul.f32 %v58, %v72
    %v75 = vlaneseq
    %v76 = vshrl.u32 %v75, 7
    %v77 = vsub.s32 0, %v76
    %v78 = vrot.slane %v45, %v77
    %v79 = vmul.f32 %v73, %v78
    %v80 = vmul.f32 %v74, %v78
    %v81 = vlaneseq
    %v82 = vshrl.u32 %v81, 7
    %v83 = vsub.s32 0, %v82
    %v84 = vrot.slane %v46, %v83
    %v85 = vadd.f32 %v79, %v84
    %v86 = vadd.f32 %v80, %v84
    %v87 = vld [vmem:[%s3] sm:$0xf]
    %v88 = vld [vmem:[%s3 + $0x4] sm:$0xf]
    %v89 = vld [vmem:[%s3 + $0x8] sm:$0xf]
    %v90 = vld [vmem:[%s3 + $0xc] sm:$0xf]
    %v91 = vld [vmem:[%s4] sm:$0x1]
    %v92 = vld [vmem:[%s9] sm:$0xf]
    %v93 = vpack.c.bf16 %v86, %v85
    %v95 = vlaneseq
    %v96 = vshrl.u32 %v95, 7
    %v97 = vsub.s32 0, %v96
    %v98 = vrot.slane %v91, %v97
    %v104 = vunpack.c.l.b16 %v87
    %v105 = vunpack.c.l.b16 %v88
    %v106 = vunpack.c.l.b16 %v89
    %v107 = vunpack.c.l.b16 %v90
    %v108 = vpack.c.b16 %v105, %v104
    %v109 = vpack.c.b16 %v107, %v106
    %v113 = vsel %vm47, %v93, 0
    %115 = vmatprep.subr.bf16.mxu0 0
    %116 = vmatpush1.bf16.msra.mxu0 %v108
    %117 = vmatprep.subr.bf16.mxu0 0
    %118 = vmatpush1.bf16.msra.mxu0 %v109
    %119 = vmatprep.subr.bf16.mxu0 0
    %120 = vmatpush1.bf16.msra.mxu0 0
    %121 = vmatprep.subr.bf16.mxu0 0
    %122 = vmatpush1.bf16.msra.mxu0 0
    %123 = vmatprep.subr.bf16.mxu0 0
    %124 = vmatpush1.bf16.msra.mxu0 0
    %125 = vmatprep.subr.bf16.mxu0 0
    %126 = vmatpush1.bf16.msra.mxu0 0
    %127 = vmatprep.subr.bf16.mxu0 0
    %128 = vmatpush1.bf16.msra.mxu0 0
    %129 = vmatprep.subr.bf16.mxu0 0
    %130 = vmatpush1.bf16.msra.mxu0 0
    %131 = vmatprep.subr.bf16.mxu0 0
    %132 = vmatpush1.bf16.msra.mxu0 0
    %133 = vmatprep.subr.bf16.mxu0 0
    %134 = vmatpush1.bf16.msra.mxu0 0
    %135 = vmatprep.subr.bf16.mxu0 0
    %136 = vmatpush1.bf16.msra.mxu0 0
    %137 = vmatprep.subr.bf16.mxu0 0
    %138 = vmatpush1.bf16.msra.mxu0 0
    %139 = vmatprep.subr.bf16.mxu0 0
    %140 = vmatpush1.bf16.msra.mxu0 0
    %141 = vmatprep.subr.bf16.mxu0 0
    %142 = vmatpush1.bf16.msra.mxu0 0
    %143 = vmatprep.subr.bf16.mxu0 0
    %144 = vmatpush1.bf16.msra.mxu0 0
    %145 = vmatprep.subr.bf16.mxu0 0
    %146 = vmatpush1.bf16.msra.mxu0 0
    %147 = vmatprep.mubr.bf16.mxu0 0
    %148 = vmatmul.mubr.bf16.gmra.mrb[0].mxu0 %v113
    %v149 = vpop.f32.mrb[0].mxu0
    %v150 = vadd.f32 %v98, %v149
    %v151 = vpop.f32.mrb[0].mxu0
    %v152 = vpop.f32.mrb[0].mxu0
    %v153 = vadd.f32 %v98, %v152
    %v154 = vpop.f32.mrb[0].mxu0
    %155 = vdwg.mxu0
    %v156 = vpack.c.bf16 %v150, %v150
    %v157 = vpack.c.bf16 %v153, %v153
    %159 = vrot.lane.b32.xlu0 %v156, 96
    %v160 = vpop.permute.xlu0 %159
    %vm161 = vcmask 64512
    %v163 = vsel %vm161, %v156, 0
    %v166 = vsel %vm161, %v160, 0
    %168 = vmatprep.subr.bf16.mxu0 0
    %169 = vmatpush1.bf16.xpose.msra.mxu0 %v166
    %170 = vmatprep.subr.bf16.mxu0 0
    %171 = vmatpush1.bf16.xpose.msra.mxu0 0
    %172 = vmatprep.subr.bf16.mxu0 0
    %173 = vmatpush1.bf16.xpose.msra.mxu0 0
    %174 = vmatprep.subr.bf16.mxu0 0
    %175 = vmatpush1.bf16.xpose.msra.mxu0 0
    %176 = vmatprep.subr.bf16.mxu0 0
    %177 = vmatpush1.bf16.xpose.msra.mxu0 0
    %178 = vmatprep.subr.bf16.mxu0 0
    %179 = vmatpush1.bf16.xpose.msra.mxu0 0
    %180 = vmatprep.subr.bf16.mxu0 0
    %181 = vmatpush1.bf16.xpose.msra.mxu0 0
    %182 = vmatprep.subr.bf16.mxu0 0
    %183 = vmatpush1.bf16.xpose.msra.mxu0 0
    %184 = vmatprep.subr.bf16.mxu0 0
    %185 = vmatpush1.bf16.xpose.msra.mxu0 0
    %186 = vmatprep.subr.bf16.mxu0 0
    %187 = vmatpush1.bf16.xpose.msra.mxu0 0
    %188 = vmatprep.subr.bf16.mxu0 0
    %189 = vmatpush1.bf16.xpose.msra.mxu0 0
    %190 = vmatprep.subr.bf16.mxu0 0
    %191 = vmatpush1.bf16.xpose.msra.mxu0 0
    %192 = vmatprep.subr.bf16.mxu0 0
    %193 = vmatpush1.bf16.xpose.msra.mxu0 0
    %194 = vmatprep.subr.bf16.mxu0 0
    %195 = vmatpush1.bf16.xpose.msra.mxu0 0
    %196 = vmatprep.subr.bf16.mxu0 0
    %197 = vmatpush1.bf16.xpose.msra.mxu0 0
    %198 = vmatprep.subr.bf16.mxu0 0
    %199 = vmatpush1.bf16.xpose.msra.mxu0 0
    %200 = vmatprep.mubr.bf16.mxu0 0
    %201 = vmatmul.mubr.bf16.gmra.mrb[0].mxu0 %v163
    %v202 = vpop.f32.mrb[0].mxu0
    %v203 = vadd.f32 0.0, %v202
    %v204 = vpop.f32.mrb[0].mxu0
    %v205 = vpop.f32.mrb[0].mxu0
    %v206 = vpop.f32.mrb[0].mxu0
    %207 = vdwg.mxu0
    %209 = vrot.lane.b32.xlu0 %v157, 96
    %v210 = vpop.permute.xlu0 %209
    %v212 = vsel %vm161, %v157, 0
    %v215 = vsel %vm161, %v210, 0
    %217 = vmatprep.subr.bf16.mxu0 0
    %218 = vmatpush1.bf16.xpose.msra.mxu0 %v215
    %219 = vmatprep.subr.bf16.mxu0 0
    %220 = vmatpush1.bf16.xpose.msra.mxu0 0
    %221 = vmatprep.subr.bf16.mxu0 0
    %222 = vmatpush1.bf16.xpose.msra.mxu0 0
    %223 = vmatprep.subr.bf16.mxu0 0
    %224 = vmatpush1.bf16.xpose.msra.mxu0 0
    %225 = vmatprep.subr.bf16.mxu0 0
    %226 = vmatpush1.bf16.xpose.msra.mxu0 0
    %227 = vmatprep.subr.bf16.mxu0 0
    %228 = vmatpush1.bf16.xpose.msra.mxu0 0
    %229 = vmatprep.subr.bf16.mxu0 0
    %230 = vmatpush1.bf16.xpose.msra.mxu0 0
    %231 = vmatprep.subr.bf16.mxu0 0
    %232 = vmatpush1.bf16.xpose.msra.mxu0 0
    %233 = vmatprep.subr.bf16.mxu0 0
    %234 = vmatpush1.bf16.xpose.msra.mxu0 0
    %235 = vmatprep.subr.bf16.mxu0 0
    %236 = vmatpush1.bf16.xpose.msra.mxu0 0
    %237 = vmatprep.subr.bf16.mxu0 0
    %238 = vmatpush1.bf16.xpose.msra.mxu0 0
    %239 = vmatprep.subr.bf16.mxu0 0
    %240 = vmatpush1.bf16.xpose.msra.mxu0 0
    %241 = vmatprep.subr.bf16.mxu0 0
    %242 = vmatpush1.bf16.xpose.msra.mxu0 0
    %243 = vmatprep.subr.bf16.mxu0 0
    %244 = vmatpush1.bf16.xpose.msra.mxu0 0
    %245 = vmatprep.subr.bf16.mxu0 0
    %246 = vmatpush1.bf16.xpose.msra.mxu0 0
    %247 = vmatprep.subr.bf16.mxu0 0
    %248 = vmatpush1.bf16.xpose.msra.mxu0 0
    %249 = vmatprep.mubr.bf16.mxu0 0
    %250 = vmatmul.mubr.bf16.gmra.mrb[0].mxu0 %v212
    %v251 = vpop.f32.mrb[0].mxu0
    %v252 = vadd.f32 0.0, %v251
    %v253 = vpop.f32.mrb[0].mxu0
    %v254 = vpop.f32.mrb[0].mxu0
    %v255 = vpop.f32.mrb[0].mxu0
    %256 = vdwg.mxu0
    %v257 = vmul.f32 %v203, 0.35355338
    %v258 = vmul.f32 %v252, 0.35355338
    %v261 = vlaneseq
    %v262 = vshrl.u32 %v261, 7
    %v263 = vsub.s32 0, %v262
    %v264 = vrot.slane %v41, %v263
    %v265 = vlaneseq
    %v266 = vshrl.u32 %v265, 7
    %v267 = vsub.s32 0, %v266
    %v268 = vrot.slane %v42, %v267
    %v271 = vadd.f32 %v257, %v264
    %v272 = vadd.f32 %v258, %v268
    %v273 = vsel %vm161, %v271, -inf
    %274 = vmax.xlane.f32.xlu0 %v273
    %v275 = vpop.xlane.xlu0 %274
    %v276 = vsel %vm161, %v272, -inf
    %277 = vmax.xlane.f32.xlu0 %v276
    %v278 = vpop.xlane.xlu0 %277
    %v279 = vsub.f32 %v271, %v275
    %v280 = vsub.f32 %v272, %v278
    %v281 = vmul.f32 %v279, 1.442695
    %v282 = vpow.pop %v281
    %v283 = vmul.f32 %v280, 1.442695
    %v284 = vpow.pop %v283
    %v285 = vsel %vm161, %v282, 0.0
    %286 = vadd.xlane.f32.xlu0 %v285
    %v287 = vpop.xlane.xlu0 %286
    %v288 = vsel %vm161, %v284, 0.0
    %289 = vadd.xlane.f32.xlu0 %v288
    %v290 = vpop.xlane.xlu0 %289
    %v291 = vrcp.pop %v287
    %v292 = vrcp.pop %v290
    %v293 = vmul.f32 %v282, %v291
    %v294 = vmul.f32 %v284, %v292
    %v295 = vpack.c.bf16 %v293, %v293
    %v296 = vpack.c.bf16 %v294, %v294
    %297 = vrot.lane.b32.xlu0 %v156, 64
    %v298 = vpop.permute.xlu0 %297
    %v300 = vsel %vm161, %v295, 0
    %vm302 = vcmask 1043456
    %v304 = vsel %vm302, %v298, 0
    %306 = vmatprep.subr.bf16.mxu0 0
    %307 = vmatpush1.bf16.msra.mxu0 %v304
    %308 = vmatprep.subr.bf16.mxu0 0
    %309 = vmatpush1.bf16.msra.mxu0 0
    %310 = vmatprep.subr.bf16.mxu0 0
    %311 = vmatpush1.bf16.msra.mxu0 0
    %312 = vmatprep.subr.bf16.mxu0 0
    %313 = vmatpush1.bf16.msra.mxu0 0
    %314 = vmatprep.subr.bf16.mxu0 0
    %315 = vmatpush1.bf16.msra.mxu0 0
    %316 = vmatprep.subr.bf16.mxu0 0
    %317 = vmatpush1.bf16.msra.mxu0 0
    %318 = vmatprep.subr.bf16.mxu0 0
    %319 = vmatpush1.bf16.msra.mxu0 0
    %320 = vmatprep.subr.bf16.mxu0 0
    %321 = vmatpush1.bf16.msra.mxu0 0
    %322 = vmatprep.subr.bf16.mxu0 0
    %323 = vmatpush1.bf16.msra.mxu0 0
    %324 = vmatprep.subr.bf16.mxu0 0
    %325 = vmatpush1.bf16.msra.mxu0 0
    %326 = vmatprep.subr.bf16.mxu0 0
    %327 = vmatpush1.bf16.msra.mxu0 0
    %328 = vmatprep.subr.bf16.mxu0 0
    %329 = vmatpush1.bf16.msra.mxu0 0
    %330 = vmatprep.subr.bf16.mxu0 0
    %331 = vmatpush1.bf16.msra.mxu0 0
    %332 = vmatprep.subr.bf16.mxu0 0
    %333 = vmatpush1.bf16.msra.mxu0 0
    %334 = vmatprep.subr.bf16.mxu0 0
    %335 = vmatpush1.bf16.msra.mxu0 0
    %336 = vmatprep.subr.bf16.mxu0 0
    %337 = vmatpush1.bf16.msra.mxu0 0
    %338 = vmatprep.mubr.bf16.mxu0 0
    %339 = vmatmul.mubr.bf16.gmra.mrb[0].mxu0 %v300
    %v340 = vpop.f32.mrb[0].mxu0
    %v341 = vadd.f32 0.0, %v340
    %v342 = vpop.f32.mrb[0].mxu0
    %v343 = vpop.f32.mrb[0].mxu0
    %v344 = vpop.f32.mrb[0].mxu0
    %345 = vdwg.mxu0
    %346 = vrot.lane.b32.xlu0 %v157, 64
    %v347 = vpop.permute.xlu0 %346
    %v349 = vsel %vm161, %v296, 0
    %v352 = vsel %vm302, %v347, 0
    %354 = vmatprep.subr.bf16.mxu0 0
    %355 = vmatpush1.bf16.msra.mxu0 %v352
    %356 = vmatprep.subr.bf16.mxu0 0
    %357 = vmatpush1.bf16.msra.mxu0 0
    %358 = vmatprep.subr.bf16.mxu0 0
    %359 = vmatpush1.bf16.msra.mxu0 0
    %360 = vmatprep.subr.bf16.mxu0 0
    %361 = vmatpush1.bf16.msra.mxu0 0
    %362 = vmatprep.subr.bf16.mxu0 0
    %363 = vmatpush1.bf16.msra.mxu0 0
    %364 = vmatprep.subr.bf16.mxu0 0
    %365 = vmatpush1.bf16.msra.mxu0 0
    %366 = vmatprep.subr.bf16.mxu0 0
    %367 = vmatpush1.bf16.msra.mxu0 0
    %368 = vmatprep.subr.bf16.mxu0 0
    %369 = vmatpush1.bf16.msra.mxu0 0
    %370 = vmatprep.subr.bf16.mxu0 0
    %371 = vmatpush1.bf16.msra.mxu0 0
    %372 = vmatprep.subr.bf16.mxu0 0
    %373 = vmatpush1.bf16.msra.mxu0 0
    %374 = vmatprep.subr.bf16.mxu0 0
    %375 = vmatpush1.bf16.msra.mxu0 0
    %376 = vmatprep.subr.bf16.mxu0 0
    %377 = vmatpush1.bf16.msra.mxu0 0
    %378 = vmatprep.subr.bf16.mxu0 0
    %379 = vmatpush1.bf16.msra.mxu0 0
    %380 = vmatprep.subr.bf16.mxu0 0
    %381 = vmatpush1.bf16.msra.mxu0 0
    %382 = vmatprep.subr.bf16.mxu0 0
    %383 = vmatpush1.bf16.msra.mxu0 0
    %384 = vmatprep.subr.bf16.mxu0 0
    %385 = vmatpush1.bf16.msra.mxu0 0
    %386 = vmatprep.mubr.bf16.mxu0 0
    %387 = vmatmul.mubr.bf16.gmra.mrb[0].mxu0 %v349
    %v388 = vpop.f32.mrb[0].mxu0
    %v389 = vadd.f32 0.0, %v388
    %v390 = vpop.f32.mrb[0].mxu0
    %v391 = vpop.f32.mrb[0].mxu0
    %v392 = vpop.f32.mrb[0].mxu0
    %393 = vdwg.mxu0
    %394 = vst.msk [vmem:[#allocation2] sm:$0xff] %vm161, %v341
    %395 = vst.msk [vmem:[#allocation2 + $0x8] sm:$0xff] %vm161, %v389
    %396 = vrot.lane.b32.xlu0 %v156, 120
    %v397 = vpop.permute.xlu0 %396
    %398 = vrot.lane.b32.xlu0 %v156, 88
    %v399 = vpop.permute.xlu0 %398
    %v401 = vsel %vm161, %v397, 0
    %v404 = vsel %vm161, %v399, 0
    %406 = vmatprep.subr.bf16.mxu0 0
    %407 = vmatpush1.bf16.xpose.msra.mxu0 %v404
    %408 = vmatprep.subr.bf16.mxu0 0
    %409 = vmatpush1.bf16.xpose.msra.mxu0 0
    %410 = vmatprep.subr.bf16.mxu0 0
    %411 = vmatpush1.bf16.xpose.msra.mxu0 0
    %412 = vmatprep.subr.bf16.mxu0 0
    %413 = vmatpush1.bf16.xpose.msra.mxu0 0
    %414 = vmatprep.subr.bf16.mxu0 0
    %415 = vmatpush1.bf16.xpose.msra.mxu0 0
    %416 = vmatprep.subr.bf16.mxu0 0
    %417 = vmatpush1.bf16.xpose.msra.mxu0 0
    %418 = vmatprep.subr.bf16.mxu0 0
    %419 = vmatpush1.bf16.xpose.msra.mxu0 0
    %420 = vmatprep.subr.bf16.mxu0 0
    %421 = vmatpush1.bf16.xpose.msra.mxu0 0
    %422 = vmatprep.subr.bf16.mxu0 0
    %423 = vmatpush1.bf16.xpose.msra.mxu0 0
    %424 = vmatprep.subr.bf16.mxu0 0
    %425 = vmatpush1.bf16.xpose.msra.mxu0 0
    %426 = vmatprep.subr.bf16.mxu0 0
    %427 = vmatpush1.bf16.xpose.msra.mxu0 0
    %428 = vmatprep.subr.bf16.mxu0 0
    %429 = vmatpush1.bf16.xpose.msra.mxu0 0
    %430 = vmatprep.subr.bf16.mxu0 0
    %431 = vmatpush1.bf16.xpose.msra.mxu0 0
    %432 = vmatprep.subr.bf16.mxu0 0
    %433 = vmatpush1.bf16.xpose.msra.mxu0 0
    %434 = vmatprep.subr.bf16.mxu0 0
    %435 = vmatpush1.bf16.xpose.msra.mxu0 0
    %436 = vmatprep.subr.bf16.mxu0 0
    %437 = vmatpush1.bf16.xpose.msra.mxu0 0
    %438 = vmatprep.mubr.bf16.mxu0 0
    %439 = vmatmul.mubr.bf16.gmra.mrb[0].mxu0 %v401
    %v440 = vpop.f32.mrb[0].mxu0
    %v441 = vadd.f32 0.0, %v440
    %v442 = vpop.f32.mrb[0].mxu0
    %v443 = vpop.f32.mrb[0].mxu0
    %v444 = vpop.f32.mrb[0].mxu0
    %445 = vdwg.mxu0
    %446 = vrot.lane.b32.xlu0 %v157, 120
    %v447 = vpop.permute.xlu0 %446
    %448 = vrot.lane.b32.xlu0 %v157, 88
    %v449 = vpop.permute.xlu0 %448
    %v451 = vsel %vm161, %v447, 0
    %v454 = vsel %vm161, %v449, 0
    %456 = vmatprep.subr.bf16.mxu0 0
    %457 = vmatpush1.bf16.xpose.msra.mxu0 %v454
    %458 = vmatprep.subr.bf16.mxu0 0
    %459 = vmatpush1.bf16.xpose.msra.mxu0 0
    %460 = vmatprep.subr.bf16.mxu0 0
    %461 = vmatpush1.bf16.xpose.msra.mxu0 0
    %462 = vmatprep.subr.bf16.mxu0 0
    %463 = vmatpush1.bf16.xpose.msra.mxu0 0
    %464 = vmatprep.subr.bf16.mxu0 0
    %465 = vmatpush1.bf16.xpose.msra.mxu0 0
    %466 = vmatprep.subr.bf16.mxu0 0
    %467 = vmatpush1.bf16.xpose.msra.mxu0 0
    %468 = vmatprep.subr.bf16.mxu0 0
    %469 = vmatpush1.bf16.xpose.msra.mxu0 0
    %470 = vmatprep.subr.bf16.mxu0 0
    %471 = vmatpush1.bf16.xpose.msra.mxu0 0
    %472 = vmatprep.subr.bf16.mxu0 0
    %473 = vmatpush1.bf16.xpose.msra.mxu0 0
    %474 = vmatprep.subr.bf16.mxu0 0
    %475 = vmatpush1.bf16.xpose.msra.mxu0 0
    %476 = vmatprep.subr.bf16.mxu0 0
    %477 = vmatpush1.bf16.xpose.msra.mxu0 0
    %478 = vmatprep.subr.bf16.mxu0 0
    %479 = vmatpush1.bf16.xpose.msra.mxu0 0
    %480 = vmatprep.subr.bf16.mxu0 0
    %481 = vmatpush1.bf16.xpose.msra.mxu0 0
    %482 = vmatprep.subr.bf16.mxu0 0
    %483 = vmatpush1.bf16.xpose.msra.mxu0 0
    %484 = vmatprep.subr.bf16.mxu0 0
    %485 = vmatpush1.bf16.xpose.msra.mxu0 0
    %486 = vmatprep.subr.bf16.mxu0 0
    %487 = vmatpush1.bf16.xpose.msra.mxu0 0
    %488 = vmatprep.mubr.bf16.mxu0 0
    %489 = vmatmul.mubr.bf16.gmra.mrb[0].mxu0 %v451
    %v490 = vpop.f32.mrb[0].mxu0
    %v491 = vadd.f32 0.0, %v490
    %v492 = vpop.f32.mrb[0].mxu0
    %v493 = vpop.f32.mrb[0].mxu0
    %v494 = vpop.f32.mrb[0].mxu0
    %495 = vdwg.mxu0
    %v496 = vmul.f32 %v441, 0.35355338
    %v497 = vmul.f32 %v491, 0.35355338
    %v498 = vadd.f32 %v496, %v264
    %v499 = vadd.f32 %v497, %v268
    %v500 = vsel %vm161, %v498, -inf
    %501 = vmax.xlane.f32.xlu0 %v500
    %v502 = vpop.xlane.xlu0 %501
    %v503 = vsel %vm161, %v499, -inf
    %504 = vmax.xlane.f32.xlu0 %v503
    %v505 = vpop.xlane.xlu0 %504
    %v506 = vsub.f32 %v498, %v502
    %v507 = vsub.f32 %v499, %v505
    %v508 = vmul.f32 %v506, 1.442695
    %v509 = vpow.pop %v508
    %v510 = vmul.f32 %v507, 1.442695
    %v511 = vpow.pop %v510
    %v512 = vsel %vm161, %v509, 0.0
    %513 = vadd.xlane.f32.xlu0 %v512
    %v514 = vpop.xlane.xlu0 %513
    %v515 = vsel %vm161, %v511, 0.0
    %516 = vadd.xlane.f32.xlu0 %v515
    %v517 = vpop.xlane.xlu0 %516
    %v518 = vrcp.pop %v514
    %v519 = vrcp.pop %v517
    %v520 = vmul.f32 %v509, %v518
    %v521 = vmul.f32 %v511, %v519
    %v522 = vpack.c.bf16 %v520, %v520
    %v523 = vpack.c.bf16 %v521, %v521
    %524 = vrot.lane.b32.xlu0 %v156, 56
    %v525 = vpop.permute.xlu0 %524
    %v527 = vsel %vm161, %v522, 0
    %v530 = vsel %vm302, %v525, 0
    %532 = vmatprep.subr.bf16.mxu0 0
    %533 = vmatpush1.bf16.msra.mxu0 %v530
    %534 = vmatprep.subr.bf16.mxu0 0
    %535 = vmatpush1.bf16.msra.mxu0 0
    %536 = vmatprep.subr.bf16.mxu0 0
    %537 = vmatpush1.bf16.msra.mxu0 0
    %538 = vmatprep.subr.bf16.mxu0 0
    %539 = vmatpush1.bf16.msra.mxu0 0
    %540 = vmatprep.subr.bf16.mxu0 0
    %541 = vmatpush1.bf16.msra.mxu0 0
    %542 = vmatprep.subr.bf16.mxu0 0
    %543 = vmatpush1.bf16.msra.mxu0 0
    %544 = vmatprep.subr.bf16.mxu0 0
    %545 = vmatpush1.bf16.msra.mxu0 0
    %546 = vmatprep.subr.bf16.mxu0 0
    %547 = vmatpush1.bf16.msra.mxu0 0
    %548 = vmatprep.subr.bf16.mxu0 0
    %549 = vmatpush1.bf16.msra.mxu0 0
    %550 = vmatprep.subr.bf16.mxu0 0
    %551 = vmatpush1.bf16.msra.mxu0 0
    %552 = vmatprep.subr.bf16.mxu0 0
    %553 = vmatpush1.bf16.msra.mxu0 0
    %554 = vmatprep.subr.bf16.mxu0 0
    %555 = vmatpush1.bf16.msra.mxu0 0
    %556 = vmatprep.subr.bf16.mxu0 0
    %557 = vmatpush1.bf16.msra.mxu0 0
    %558 = vmatprep.subr.bf16.mxu0 0
    %559 = vmatpush1.bf16.msra.mxu0 0
    %560 = vmatprep.subr.bf16.mxu0 0
    %561 = vmatpush1.bf16.msra.mxu0 0
    %562 = vmatprep.subr.bf16.mxu0 0
    %563 = vmatpush1.bf16.msra.mxu0 0
    %564 = vmatprep.mubr.bf16.mxu0 0
    %565 = vmatmul.mubr.bf16.gmra.mrb[0].mxu0 %v527
    %v566 = vpop.f32.mrb[0].mxu0
    %v567 = vadd.f32 0.0, %v566
    %v568 = vpop.f32.mrb[0].mxu0
    %v569 = vpop.f32.mrb[0].mxu0
    %v570 = vpop.f32.mrb[0].mxu0
    %571 = vdwg.mxu0
    %572 = vrot.lane.b32.xlu0 %v157, 56
    %v573 = vpop.permute.xlu0 %572
    %v575 = vsel %vm161, %v523, 0
    %v578 = vsel %vm302, %v573, 0
    %580 = vmatprep.subr.bf16.mxu0 0
    %581 = vmatpush1.bf16.msra.mxu0 %v578
    %582 = vmatprep.subr.bf16.mxu0 0
    %583 = vmatpush1.bf16.msra.mxu0 0
    %584 = vmatprep.subr.bf16.mxu0 0
    %585 = vmatpush1.bf16.msra.mxu0 0
    %586 = vmatprep.subr.bf16.mxu0 0
    %587 = vmatpush1.bf16.msra.mxu0 0
    %588 = vmatprep.subr.bf16.mxu0 0
    %589 = vmatpush1.bf16.msra.mxu0 0
    %590 = vmatprep.subr.bf16.mxu0 0
    %591 = vmatpush1.bf16.msra.mxu0 0
    %592 = vmatprep.subr.bf16.mxu0 0
    %593 = vmatpush1.bf16.msra.mxu0 0
    %594 = vmatprep.subr.bf16.mxu0 0
    %595 = vmatpush1.bf16.msra.mxu0 0
    %596 = vmatprep.subr.bf16.mxu0 0
    %597 = vmatpush1.bf16.msra.mxu0 0
    %598 = vmatprep.subr.bf16.mxu0 0
    %599 = vmatpush1.bf16.msra.mxu0 0
    %600 = vmatprep.subr.bf16.mxu0 0
    %601 = vmatpush1.bf16.msra.mxu0 0
    %602 = vmatprep.subr.bf16.mxu0 0
    %603 = vmatpush1.bf16.msra.mxu0 0
    %604 = vmatprep.subr.bf16.mxu0 0
    %605 = vmatpush1.bf16.msra.mxu0 0
    %606 = vmatprep.subr.bf16.mxu0 0
    %607 = vmatpush1.bf16.msra.mxu0 0
    %608 = vmatprep.subr.bf16.mxu0 0
    %609 = vmatpush1.bf16.msra.mxu0 0
    %610 = vmatprep.subr.bf16.mxu0 0
    %611 = vmatpush1.bf16.msra.mxu0 0
    %612 = vmatprep.mubr.bf16.mxu0 0
    %613 = vmatmul.mubr.bf16.gmra.mrb[0].mxu0 %v575
    %v614 = vpop.f32.mrb[0].mxu0
    %v615 = vadd.f32 0.0, %v614
    %v616 = vpop.f32.mrb[0].mxu0
    %v617 = vpop.f32.mrb[0].mxu0
    %v618 = vpop.f32.mrb[0].mxu0
    %619 = vdwg.mxu0
    %622 = vrot.lane.b32.xlu0 %v567, 8
    %v623 = vpop.permute.xlu0 %622
    %624 = vrot.lane.b32.xlu0 %v615, 8
    %v625 = vpop.permute.xlu0 %624
    %vm628 = vcmask 130112
    %629 = vst.msk [vmem:[#allocation2] sm:$0xff] %vm628, %v623
    %630 = vst.msk [vmem:[#allocation2 + $0x8] sm:$0xff] %vm628, %v625
    %631 = vrot.lane.b32.xlu0 %v156, 112
    %v632 = vpop.permute.xlu0 %631
    %633 = vrot.lane.b32.xlu0 %v156, 80
    %v634 = vpop.permute.xlu0 %633
    %v636 = vsel %vm161, %v632, 0
    %v639 = vsel %vm161, %v634, 0
    %641 = vmatprep.subr.bf16.mxu0 0
    %642 = vmatpush1.bf16.xpose.msra.mxu0 %v639
    %643 = vmatprep.subr.bf16.mxu0 0
    %644 = vmatpush1.bf16.xpose.msra.mxu0 0
    %645 = vmatprep.subr.bf16.mxu0 0
    %646 = vmatpush1.bf16.xpose.msra.mxu0 0
    %647 = vmatprep.subr.bf16.mxu0 0
    %648 = vmatpush1.bf16.xpose.msra.mxu0 0
    %649 = vmatprep.subr.bf16.mxu0 0
    %650 = vmatpush1.bf16.xpose.msra.mxu0 0
    %651 = vmatprep.subr.bf16.mxu0 0
    %652 = vmatpush1.bf16.xpose.msra.mxu0 0
    %653 = vmatprep.subr.bf16.mxu0 0
    %654 = vmatpush1.bf16.xpose.msra.mxu0 0
    %655 = vmatprep.subr.bf16.mxu0 0
    %656 = vmatpush1.bf16.xpose.msra.mxu0 0
    %657 = vmatprep.subr.bf16.mxu0 0
    %658 = vmatpush1.bf16.xpose.msra.mxu0 0
    %659 = vmatprep.subr.bf16.mxu0 0
    %660 = vmatpush1.bf16.xpose.msra.mxu0 0
    %661 = vmatprep.subr.bf16.mxu0 0
    %662 = vmatpush1.bf16.xpose.msra.mxu0 0
    %663 = vmatprep.subr.bf16.mxu0 0
    %664 = vmatpush1.bf16.xpose.msra.mxu0 0
    %665 = vmatprep.subr.bf16.mxu0 0
    %666 = vmatpush1.bf16.xpose.msra.mxu0 0
    %667 = vmatprep.subr.bf16.mxu0 0
    %668 = vmatpush1.bf16.xpose.msra.mxu0 0
    %669 = vmatprep.subr.bf16.mxu0 0
    %670 = vmatpush1.bf16.xpose.msra.mxu0 0
    %671 = vmatprep.subr.bf16.mxu0 0
    %672 = vmatpush1.bf16.xpose.msra.mxu0 0
    %673 = vmatprep.mubr.bf16.mxu0 0
    %674 = vmatmul.mubr.bf16.gmra.mrb[0].mxu0 %v636
    %v675 = vpop.f32.mrb[0].mxu0
    %v676 = vadd.f32 0.0, %v675
    %v677 = vpop.f32.mrb[0].mxu0
    %v678 = vpop.f32.mrb[0].mxu0
    %v679 = vpop.f32.mrb[0].mxu0
    %680 = vdwg.mxu0
    %681 = vrot.lane.b32.xlu0 %v157, 112
    %v682 = vpop.permute.xlu0 %681
    %683 = vrot.lane.b32.xlu0 %v157, 80
    %v684 = vpop.permute.xlu0 %683
    %v686 = vsel %vm161, %v682, 0
    %v689 = vsel %vm161, %v684, 0
    %691 = vmatprep.subr.bf16.mxu0 0
    %692 = vmatpush1.bf16.xpose.msra.mxu0 %v689
    %693 = vmatprep.subr.bf16.mxu0 0
    %694 = vmatpush1.bf16.xpose.msra.mxu0 0
    %695 = vmatprep.subr.bf16.mxu0 0
    %696 = vmatpush1.bf16.xpose.msra.mxu0 0
    %697 = vmatprep.subr.bf16.mxu0 0
    %698 = vmatpush1.bf16.xpose.msra.mxu0 0
    %699 = vmatprep.subr.bf16.mxu0 0
    %700 = vmatpush1.bf16.xpose.msra.mxu0 0
    %701 = vmatprep.subr.bf16.mxu0 0
    %702 = vmatpush1.bf16.xpose.msra.mxu0 0
    %703 = vmatprep.subr.bf16.mxu0 0
    %704 = vmatpush1.bf16.xpose.msra.mxu0 0
    %705 = vmatprep.subr.bf16.mxu0 0
    %706 = vmatpush1.bf16.xpose.msra.mxu0 0
    %707 = vmatprep.subr.bf16.mxu0 0
    %708 = vmatpush1.bf16.xpose.msra.mxu0 0
    %709 = vmatprep.subr.bf16.mxu0 0
    %710 = vmatpush1.bf16.xpose.msra.mxu0 0
    %711 = vmatprep.subr.bf16.mxu0 0
    %712 = vmatpush1.bf16.xpose.msra.mxu0 0
    %713 = vmatprep.subr.bf16.mxu0 0
    %714 = vmatpush1.bf16.xpose.msra.mxu0 0
    %715 = vmatprep.subr.bf16.mxu0 0
    %716 = vmatpush1.bf16.xpose.msra.mxu0 0
    %717 = vmatprep.subr.bf16.mxu0 0
    %718 = vmatpush1.bf16.xpose.msra.mxu0 0
    %719 = vmatprep.subr.bf16.mxu0 0
    %720 = vmatpush1.bf16.xpose.msra.mxu0 0
    %721 = vmatprep.subr.bf16.mxu0 0
    %722 = vmatpush1.bf16.xpose.msra.mxu0 0
    %723 = vmatprep.mubr.bf16.mxu0 0
    %724 = vmatmul.mubr.bf16.gmra.mrb[0].mxu0 %v686
    %v725 = vpop.f32.mrb[0].mxu0
    %v726 = vadd.f32 0.0, %v725
    %v727 = vpop.f32.mrb[0].mxu0
    %v728 = vpop.f32.mrb[0].mxu0
    %v729 = vpop.f32.mrb[0].mxu0
    %730 = vdwg.mxu0
    %v731 = vmul.f32 %v676, 0.35355338
    %v732 = vmul.f32 %v726, 0.35355338
    %v733 = vadd.f32 %v731, %v264
    %v734 = vadd.f32 %v732, %v268
    %v735 = vsel %vm161, %v733, -inf
    %736 = vmax.xlane.f32.xlu0 %v735
    %v737 = vpop.xlane.xlu0 %736
    %v738 = vsel %vm161, %v734, -inf
    %739 = vmax.xlane.f32.xlu0 %v738
    %v740 = vpop.xlane.xlu0 %739
    %v741 = vsub.f32 %v733, %v737
    %v742 = vsub.f32 %v734, %v740
    %v743 = vmul.f32 %v741, 1.442695
    %v744 = vpow.pop %v743
    %v745 = vmul.f32 %v742, 1.442695
    %v746 = vpow.pop %v745
    %v747 = vsel %vm161, %v744, 0.0
    %748 = vadd.xlane.f32.xlu0 %v747
    %v749 = vpop.xlane.xlu0 %748
    %v750 = vsel %vm161, %v746, 0.0
    %751 = vadd.xlane.f32.xlu0 %v750
    %v752 = vpop.xlane.xlu0 %751
    %v753 = vrcp.pop %v749
    %v754 = vrcp.pop %v752
    %v755 = vmul.f32 %v744, %v753
    %v756 = vmul.f32 %v746, %v754
    %v757 = vpack.c.bf16 %v755, %v755
    %v758 = vpack.c.bf16 %v756, %v756
    %759 = vrot.lane.b32.xlu0 %v156, 48
    %v760 = vpop.permute.xlu0 %759
    %v762 = vsel %vm161, %v757, 0
    %v765 = vsel %vm302, %v760, 0
    %767 = vmatprep.subr.bf16.mxu0 0
    %768 = vmatpush1.bf16.msra.mxu0 %v765
    %769 = vmatprep.subr.bf16.mxu0 0
    %770 = vmatpush1.bf16.msra.mxu0 0
    %771 = vmatprep.subr.bf16.mxu0 0
    %772 = vmatpush1.bf16.msra.mxu0 0
    %773 = vmatprep.subr.bf16.mxu0 0
    %774 = vmatpush1.bf16.msra.mxu0 0
    %775 = vmatprep.subr.bf16.mxu0 0
    %776 = vmatpush1.bf16.msra.mxu0 0
    %777 = vmatprep.subr.bf16.mxu0 0
    %778 = vmatpush1.bf16.msra.mxu0 0
    %779 = vmatprep.subr.bf16.mxu0 0
    %780 = vmatpush1.bf16.msra.mxu0 0
    %781 = vmatprep.subr.bf16.mxu0 0
    %782 = vmatpush1.bf16.msra.mxu0 0
    %783 = vmatprep.subr.bf16.mxu0 0
    %784 = vmatpush1.bf16.msra.mxu0 0
    %785 = vmatprep.subr.bf16.mxu0 0
    %786 = vmatpush1.bf16.msra.mxu0 0
    %787 = vmatprep.subr.bf16.mxu0 0
    %788 = vmatpush1.bf16.msra.mxu0 0
    %789 = vmatprep.subr.bf16.mxu0 0
    %790 = vmatpush1.bf16.msra.mxu0 0
    %791 = vmatprep.subr.bf16.mxu0 0
    %792 = vmatpush1.bf16.msra.mxu0 0
    %793 = vmatprep.subr.bf16.mxu0 0
    %794 = vmatpush1.bf16.msra.mxu0 0
    %795 = vmatprep.subr.bf16.mxu0 0
    %796 = vmatpush1.bf16.msra.mxu0 0
    %797 = vmatprep.subr.bf16.mxu0 0
    %798 = vmatpush1.bf16.msra.mxu0 0
    %799 = vmatprep.mubr.bf16.mxu0 0
    %800 = vmatmul.mubr.bf16.gmra.mrb[0].mxu0 %v762
    %v801 = vpop.f32.mrb[0].mxu0
    %v802 = vadd.f32 0.0, %v801
    %v803 = vpop.f32.mrb[0].mxu0
    %v804 = vpop.f32.mrb[0].mxu0
    %v805 = vpop.f32.mrb[0].mxu0
    %806 = vdwg.mxu0
    %807 = vrot.lane.b32.xlu0 %v157, 48
    %v808 = vpop.permute.xlu0 %807
    %v810 = vsel %vm161, %v758, 0
    %v813 = vsel %vm302, %v808, 0
    %815 = vmatprep.subr.bf16.mxu0 0
    %816 = vmatpush1.bf16.msra.mxu0 %v813
    %817 = vmatprep.subr.bf16.mxu0 0
    %818 = vmatpush1.bf16.msra.mxu0 0
    %819 = vmatprep.subr.bf16.mxu0 0
    %820 = vmatpush1.bf16.msra.mxu0 0
    %821 = vmatprep.subr.bf16.mxu0 0
    %822 = vmatpush1.bf16.msra.mxu0 0
    %823 = vmatprep.subr.bf16.mxu0 0
    %824 = vmatpush1.bf16.msra.mxu0 0
    %825 = vmatprep.subr.bf16.mxu0 0
    %826 = vmatpush1.bf16.msra.mxu0 0
    %827 = vmatprep.subr.bf16.mxu0 0
    %828 = vmatpush1.bf16.msra.mxu0 0
    %829 = vmatprep.subr.bf16.mxu0 0
    %830 = vmatpush1.bf16.msra.mxu0 0
    %831 = vmatprep.subr.bf16.mxu0 0
    %832 = vmatpush1.bf16.msra.mxu0 0
    %833 = vmatprep.subr.bf16.mxu0 0
    %834 = vmatpush1.bf16.msra.mxu0 0
    %835 = vmatprep.subr.bf16.mxu0 0
    %836 = vmatpush1.bf16.msra.mxu0 0
    %837 = vmatprep.subr.bf16.mxu0 0
    %838 = vmatpush1.bf16.msra.mxu0 0
    %839 = vmatprep.subr.bf16.mxu0 0
    %840 = vmatpush1.bf16.msra.mxu0 0
    %841 = vmatprep.subr.bf16.mxu0 0
    %842 = vmatpush1.bf16.msra.mxu0 0
    %843 = vmatprep.subr.bf16.mxu0 0
    %844 = vmatpush1.bf16.msra.mxu0 0
    %845 = vmatprep.subr.bf16.mxu0 0
    %846 = vmatpush1.bf16.msra.mxu0 0
    %847 = vmatprep.mubr.bf16.mxu0 0
    %848 = vmatmul.mubr.bf16.gmra.mrb[0].mxu0 %v810
    %v849 = vpop.f32.mrb[0].mxu0
    %v850 = vadd.f32 0.0, %v849
    %v851 = vpop.f32.mrb[0].mxu0
    %v852 = vpop.f32.mrb[0].mxu0
    %v853 = vpop.f32.mrb[0].mxu0
    %854 = vdwg.mxu0
    %857 = vrot.lane.b32.xlu0 %v802, 16
    %v858 = vpop.permute.xlu0 %857
    %859 = vrot.lane.b32.xlu0 %v850, 16
    %v860 = vpop.permute.xlu0 %859
    %vm863 = vcmask 195712
    %864 = vst.msk [vmem:[#allocation2] sm:$0xff] %vm863, %v858
    %865 = vst.msk [vmem:[#allocation2 + $0x8] sm:$0xff] %vm863, %v860
    %866 = vrot.lane.b32.xlu0 %v156, 104
    %v867 = vpop.permute.xlu0 %866
    %868 = vrot.lane.b32.xlu0 %v156, 72
    %v869 = vpop.permute.xlu0 %868
    %v871 = vsel %vm161, %v867, 0
    %v874 = vsel %vm161, %v869, 0
    %876 = vmatprep.subr.bf16.mxu0 0
    %877 = vmatpush1.bf16.xpose.msra.mxu0 %v874
    %878 = vmatprep.subr.bf16.mxu0 0
    %879 = vmatpush1.bf16.xpose.msra.mxu0 0
    %880 = vmatprep.subr.bf16.mxu0 0
    %881 = vmatpush1.bf16.xpose.msra.mxu0 0
    %882 = vmatprep.subr.bf16.mxu0 0
    %883 = vmatpush1.bf16.xpose.msra.mxu0 0
    %884 = vmatprep.subr.bf16.mxu0 0
    %885 = vmatpush1.bf16.xpose.msra.mxu0 0
    %886 = vmatprep.subr.bf16.mxu0 0
    %887 = vmatpush1.bf16.xpose.msra.mxu0 0
    %888 = vmatprep.subr.bf16.mxu0 0
    %889 = vmatpush1.bf16.xpose.msra.mxu0 0
    %890 = vmatprep.subr.bf16.mxu0 0
    %891 = vmatpush1.bf16.xpose.msra.mxu0 0
    %892 = vmatprep.subr.bf16.mxu0 0
    %893 = vmatpush1.bf16.xpose.msra.mxu0 0
    %894 = vmatprep.subr.bf16.mxu0 0
    %895 = vmatpush1.bf16.xpose.msra.mxu0 0
    %896 = vmatprep.subr.bf16.mxu0 0
    %897 = vmatpush1.bf16.xpose.msra.mxu0 0
    %898 = vmatprep.subr.bf16.mxu0 0
    %899 = vmatpush1.bf16.xpose.msra.mxu0 0
    %900 = vmatprep.subr.bf16.mxu0 0
    %901 = vmatpush1.bf16.xpose.msra.mxu0 0
    %902 = vmatprep.subr.bf16.mxu0 0
    %903 = vmatpush1.bf16.xpose.msra.mxu0 0
    %904 = vmatprep.subr.bf16.mxu0 0
    %905 = vmatpush1.bf16.xpose.msra.mxu0 0
    %906 = vmatprep.subr.bf16.mxu0 0
    %907 = vmatpush1.bf16.xpose.msra.mxu0 0
    %908 = vmatprep.mubr.bf16.mxu0 0
    %909 = vmatmul.mubr.bf16.gmra.mrb[0].mxu0 %v871
    %v910 = vpop.f32.mrb[0].mxu0
    %v911 = vadd.f32 0.0, %v910
    %v912 = vpop.f32.mrb[0].mxu0
    %v913 = vpop.f32.mrb[0].mxu0
    %v914 = vpop.f32.mrb[0].mxu0
    %915 = vdwg.mxu0
    %916 = vrot.lane.b32.xlu0 %v157, 104
    %v917 = vpop.permute.xlu0 %916
    %918 = vrot.lane.b32.xlu0 %v157, 72
    %v919 = vpop.permute.xlu0 %918
    %v921 = vsel %vm161, %v917, 0
    %v924 = vsel %vm161, %v919, 0
    %926 = vmatprep.subr.bf16.mxu0 0
    %927 = vmatpush1.bf16.xpose.msra.mxu0 %v924
    %928 = vmatprep.subr.bf16.mxu0 0
    %929 = vmatpush1.bf16.xpose.msra.mxu0 0
    %930 = vmatprep.subr.bf16.mxu0 0
    %931 = vmatpush1.bf16.xpose.msra.mxu0 0
    %932 = vmatprep.subr.bf16.mxu0 0
    %933 = vmatpush1.bf16.xpose.msra.mxu0 0
    %934 = vmatprep.subr.bf16.mxu0 0
    %935 = vmatpush1.bf16.xpose.msra.mxu0 0
    %936 = vmatprep.subr.bf16.mxu0 0
    %937 = vmatpush1.bf16.xpose.msra.mxu0 0
    %938 = vmatprep.subr.bf16.mxu0 0
    %939 = vmatpush1.bf16.xpose.msra.mxu0 0
    %940 = vmatprep.subr.bf16.mxu0 0
    %941 = vmatpush1.bf16.xpose.msra.mxu0 0
    %942 = vmatprep.subr.bf16.mxu0 0
    %943 = vmatpush1.bf16.xpose.msra.mxu0 0
    %944 = vmatprep.subr.bf16.mxu0 0
    %945 = vmatpush1.bf16.xpose.msra.mxu0 0
    %946 = vmatprep.subr.bf16.mxu0 0
    %947 = vmatpush1.bf16.xpose.msra.mxu0 0
    %948 = vmatprep.subr.bf16.mxu0 0
    %949 = vmatpush1.bf16.xpose.msra.mxu0 0
    %950 = vmatprep.subr.bf16.mxu0 0
    %951 = vmatpush1.bf16.xpose.msra.mxu0 0
    %952 = vmatprep.subr.bf16.mxu0 0
    %953 = vmatpush1.bf16.xpose.msra.mxu0 0
    %954 = vmatprep.subr.bf16.mxu0 0
    %955 = vmatpush1.bf16.xpose.msra.mxu0 0
    %956 = vmatprep.subr.bf16.mxu0 0
    %957 = vmatpush1.bf16.xpose.msra.mxu0 0
    %958 = vmatprep.mubr.bf16.mxu0 0
    %959 = vmatmul.mubr.bf16.gmra.mrb[0].mxu0 %v921
    %v960 = vpop.f32.mrb[0].mxu0
    %v961 = vadd.f32 0.0, %v960
    %v962 = vpop.f32.mrb[0].mxu0
    %v963 = vpop.f32.mrb[0].mxu0
    %v964 = vpop.f32.mrb[0].mxu0
    %965 = vdwg.mxu0
    %v966 = vmul.f32 %v911, 0.35355338
    %v967 = vmul.f32 %v961, 0.35355338
    %v968 = vadd.f32 %v966, %v264
    %v969 = vadd.f32 %v967, %v268
    %v970 = vsel %vm161, %v968, -inf
    %971 = vmax.xlane.f32.xlu0 %v970
    %v972 = vpop.xlane.xlu0 %971
    %v973 = vsel %vm161, %v969, -inf
    %974 = vmax.xlane.f32.xlu0 %v973
    %v975 = vpop.xlane.xlu0 %974
    %v976 = vsub.f32 %v968, %v972
    %v977 = vsub.f32 %v969, %v975
    %v978 = vmul.f32 %v976, 1.442695
    %v979 = vpow.pop %v978
    %v980 = vmul.f32 %v977, 1.442695
    %v981 = vpow.pop %v980
    %v982 = vsel %vm161, %v979, 0.0
    %983 = vadd.xlane.f32.xlu0 %v982
    %v984 = vpop.xlane.xlu0 %983
    %v985 = vsel %vm161, %v981, 0.0
    %986 = vadd.xlane.f32.xlu0 %v985
    %v987 = vpop.xlane.xlu0 %986
    %v988 = vrcp.pop %v984
    %v989 = vrcp.pop %v987
    %v990 = vmul.f32 %v979, %v988
    %v991 = vmul.f32 %v981, %v989
    %v992 = vpack.c.bf16 %v990, %v990
    %v993 = vpack.c.bf16 %v991, %v991
    %994 = vrot.lane.b32.xlu0 %v156, 40
    %v995 = vpop.permute.xlu0 %994
    %v997 = vsel %vm161, %v992, 0
    %v1000 = vsel %vm302, %v995, 0
    %1002 = vmatprep.subr.bf16.mxu0 0
    %1003 = vmatpush1.bf16.msra.mxu0 %v1000
    %1004 = vmatprep.subr.bf16.mxu0 0
    %1005 = vmatpush1.bf16.msra.mxu0 0
    %1006 = vmatprep.subr.bf16.mxu0 0
    %1007 = vmatpush1.bf16.msra.mxu0 0
    %1008 = vmatprep.subr.bf16.mxu0 0
    %1009 = vmatpush1.bf16.msra.mxu0 0
    %1010 = vmatprep.subr.bf16.mxu0 0
    %1011 = vmatpush1.bf16.msra.mxu0 0
    %1012 = vmatprep.subr.bf16.mxu0 0
    %1013 = vmatpush1.bf16.msra.mxu0 0
    %1014 = vmatprep.subr.bf16.mxu0 0
    %1015 = vmatpush1.bf16.msra.mxu0 0
    %1016 = vmatprep.subr.bf16.mxu0 0
    %1017 = vmatpush1.bf16.msra.mxu0 0
    %1018 = vmatprep.subr.bf16.mxu0 0
    %1019 = vmatpush1.bf16.msra.mxu0 0
    %1020 = vmatprep.subr.bf16.mxu0 0
    %1021 = vmatpush1.bf16.msra.mxu0 0
    %1022 = vmatprep.subr.bf16.mxu0 0
    %1023 = vmatpush1.bf16.msra.mxu0 0
    %1024 = vmatprep.subr.bf16.mxu0 0
    %1025 = vmatpush1.bf16.msra.mxu0 0
    %1026 = vmatprep.subr.bf16.mxu0 0
    %1027 = vmatpush1.bf16.msra.mxu0 0
    %1028 = vmatprep.subr.bf16.mxu0 0
    %1029 = vmatpush1.bf16.msra.mxu0 0
    %1030 = vmatprep.subr.bf16.mxu0 0
    %1031 = vmatpush1.bf16.msra.mxu0 0
    %1032 = vmatprep.subr.bf16.mxu0 0
    %1033 = vmatpush1.bf16.msra.mxu0 0
    %1034 = vmatprep.mubr.bf16.mxu0 0
    %1035 = vmatmul.mubr.bf16.gmra.mrb[0].mxu0 %v997
    %v1036 = vpop.f32.mrb[0].mxu0
    %v1037 = vadd.f32 0.0, %v1036
    %v1038 = vpop.f32.mrb[0].mxu0
    %v1039 = vpop.f32.mrb[0].mxu0
    %v1040 = vpop.f32.mrb[0].mxu0
    %1041 = vdwg.mxu0
    %1042 = vrot.lane.b32.xlu0 %v157, 40
    %v1043 = vpop.permute.xlu0 %1042
    %v1045 = vsel %vm161, %v993, 0
    %v1048 = vsel %vm302, %v1043, 0
    %1050 = vmatprep.subr.bf16.mxu0 0
    %1051 = vmatpush1.bf16.msra.mxu0 %v1048
    %1052 = vmatprep.subr.bf16.mxu0 0
    %1053 = vmatpush1.bf16.msra.mxu0 0
    %1054 = vmatprep.subr.bf16.mxu0 0
    %1055 = vmatpush1.bf16.msra.mxu0 0
    %1056 = vmatprep.subr.bf16.mxu0 0
    %1057 = vmatpush1.bf16.msra.mxu0 0
    %1058 = vmatprep.subr.bf16.mxu0 0
    %1059 = vmatpush1.bf16.msra.mxu0 0
    %1060 = vmatprep.subr.bf16.mxu0 0
    %1061 = vmatpush1.bf16.msra.mxu0 0
    %1062 = vmatprep.subr.bf16.mxu0 0
    %1063 = vmatpush1.bf16.msra.mxu0 0
    %1064 = vmatprep.subr.bf16.mxu0 0
    %1065 = vmatpush1.bf16.msra.mxu0 0
    %1066 = vmatprep.subr.bf16.mxu0 0
    %1067 = vmatpush1.bf16.msra.mxu0 0
    %1068 = vmatprep.subr.bf16.mxu0 0
    %1069 = vmatpush1.bf16.msra.mxu0 0
    %1070 = vmatprep.subr.bf16.mxu0 0
    %1071 = vmatpush1.bf16.msra.mxu0 0
    %1072 = vmatprep.subr.bf16.mxu0 0
    %1073 = vmatpush1.bf16.msra.mxu0 0
    %1074 = vmatprep.subr.bf16.mxu0 0
    %1075 = vmatpush1.bf16.msra.mxu0 0
    %1076 = vmatprep.subr.bf16.mxu0 0
    %1077 = vmatpush1.bf16.msra.mxu0 0
    %1078 = vmatprep.subr.bf16.mxu0 0
    %1079 = vmatpush1.bf16.msra.mxu0 0
    %1080 = vmatprep.subr.bf16.mxu0 0
    %1081 = vmatpush1.bf16.msra.mxu0 0
    %1082 = vmatprep.mubr.bf16.mxu0 0
    %1083 = vmatmul.mubr.bf16.gmra.mrb[0].mxu0 %v1045
    %v1084 = vpop.f32.mrb[0].mxu0
    %v1085 = vadd.f32 0.0, %v1084
    %v1086 = vpop.f32.mrb[0].mxu0
    %v1087 = vpop.f32.mrb[0].mxu0
    %v1088 = vpop.f32.mrb[0].mxu0
    %1089 = vdwg.mxu0
    %1092 = vrot.lane.b32.xlu0 %v1037, 24
    %v1093 = vpop.permute.xlu0 %1092
    %1094 = vrot.lane.b32.xlu0 %v1085, 24
    %v1095 = vpop.permute.xlu0 %1094
    %vm1098 = vcmask 261312
    %1099 = vst.msk [vmem:[#allocation2] sm:$0xff] %vm1098, %v1093
    %1100 = vst.msk [vmem:[#allocation2 + $0x8] sm:$0xff] %vm1098, %v1095
    %v1101 = vld [vmem:[#allocation2] sm:$0xff]
    %v1102 = vld [vmem:[#allocation2 + $0x8] sm:$0xff]
    %v1103 = vpack.c.bf16 %v1102, %v1101
    %1104 = vrot.lane.b32.xlu0 %v108, 32
    %v1105 = vpop.permute.xlu0 %1104
    %1106 = vrot.lane.b32.xlu0 %v109, 32
    %v1107 = vpop.permute.xlu0 %1106
    %1110 = vrot.lane.b32.xlu0 %v98, 32
    %v1111 = vpop.permute.xlu0 %1110
    %v1114 = vsel %vm47, %v1103, 0
    %1116 = vmatprep.subr.bf16.mxu0 0
    %1117 = vmatpush1.bf16.msra.mxu0 %v1105
    %1118 = vmatprep.subr.bf16.mxu0 0
    %1119 = vmatpush1.bf16.msra.mxu0 %v1107
    %1120 = vmatprep.subr.bf16.mxu0 0
    %1121 = vmatpush1.bf16.msra.mxu0 0
    %1122 = vmatprep.subr.bf16.mxu0 0
    %1123 = vmatpush1.bf16.msra.mxu0 0
    %1124 = vmatprep.subr.bf16.mxu0 0
    %1125 = vmatpush1.bf16.msra.mxu0 0
    %1126 = vmatprep.subr.bf16.mxu0 0
    %1127 = vmatpush1.bf16.msra.mxu0 0
    %1128 = vmatprep.subr.bf16.mxu0 0
    %1129 = vmatpush1.bf16.msra.mxu0 0
    %1130 = vmatprep.subr.bf16.mxu0 0
    %1131 = vmatpush1.bf16.msra.mxu0 0
    %1132 = vmatprep.subr.bf16.mxu0 0
    %1133 = vmatpush1.bf16.msra.mxu0 0
    %1134 = vmatprep.subr.bf16.mxu0 0
    %1135 = vmatpush1.bf16.msra.mxu0 0
    %1136 = vmatprep.subr.bf16.mxu0 0
    %1137 = vmatpush1.bf16.msra.mxu0 0
    %1138 = vmatprep.subr.bf16.mxu0 0
    %1139 = vmatpush1.bf16.msra.mxu0 0
    %1140 = vmatprep.subr.bf16.mxu0 0
    %1141 = vmatpush1.bf16.msra.mxu0 0
    %1142 = vmatprep.subr.bf16.mxu0 0
    %1143 = vmatpush1.bf16.msra.mxu0 0
    %1144 = vmatprep.subr.bf16.mxu0 0
    %1145 = vmatpush1.bf16.msra.mxu0 0
    %1146 = vmatprep.subr.bf16.mxu0 0
    %1147 = vmatpush1.bf16.msra.mxu0 0
    %1148 = vmatprep.mubr.bf16.mxu0 0
    %1149 = vmatmul.mubr.bf16.gmra.mrb[0].mxu0 %v1114
    %v1150 = vpop.f32.mrb[0].mxu0
    %v1151 = vadd.f32 %v1111, %v1150
    %v1152 = vpop.f32.mrb[0].mxu0
    %v1153 = vpop.f32.mrb[0].mxu0
    %v1154 = vadd.f32 %v1111, %v1153
    %v1155 = vpop.f32.mrb[0].mxu0
    %1156 = vdwg.mxu0
    %v1157 = vadd.f32 %v85, %v1151
    %v1158 = vadd.f32 %v86, %v1154
    %v1159 = vsel %vm47, %v1157, 0.0
    %1160 = vadd.xlane.f32.xlu0 %v1159
    %v1161 = vpop.xlane.xlu0 %1160
    %v1162 = vsel %vm47, %v1158, 0.0
    %1163 = vadd.xlane.f32.xlu0 %v1162
    %v1164 = vpop.xlane.xlu0 %1163
    %v1165 = vmul.f32 %v1161, %v54
    %v1166 = vmul.f32 %v1164, %v54
    %v1167 = vsub.f32 %v1157, %v1165
    %v1168 = vsub.f32 %v1158, %v1166
    %v1169 = vmul.f32 %v1167, %v1167
    %v1170 = vmul.f32 %v1168, %v1168
    %v1171 = vsel %vm47, %v1169, 0.0
    %1172 = vadd.xlane.f32.xlu0 %v1171
    %v1173 = vpop.xlane.xlu0 %1172
    %v1174 = vsel %vm47, %v1170, 0.0
    %1175 = vadd.xlane.f32.xlu0 %v1174
    %v1176 = vpop.xlane.xlu0 %1175
    %v1177 = vmul.f32 %v1173, %v54
    %v1178 = vmul.f32 %v1176, %v54
    %v1179 = vadd.f32 %v1177, 1e-12
    %v1180 = vadd.f32 %v1178, 1e-12
    %v1181 = vrsqrt.pop %v1179
    %v1182 = vrsqrt.pop %v1180
    %v1183 = vmul.f32 %v1167, %v1181
    %v1184 = vmul.f32 %v1168, %v1182
    %v1185 = vlaneseq
    %v1186 = vshrl.u32 %v1185, 7
    %v1187 = vsub.s32 0, %v1186
    %v1188 = vrot.slane %v92, %v1187
    %v1189 = vmul.f32 %v1183, %v1188
    %v1190 = vmul.f32 %v1184, %v1188
    %v1191 = vlaneseq
    %v1192 = vshrl.u32 %v1191, 7
    %v1193 = vsub.s32 1, %v1192
    %v1194 = vrot.slane %v92, %v1193
    %v1195 = vadd.f32 %v1189, %v1194
    %v1196 = vadd.f32 %v1190, %v1194
    %v1197 = vpack.c.bf16 %v1196, %v1195
    %v1198 = vld [vmem:[%s5] sm:$0xf]
    %v1199 = vld [vmem:[%s5 + $0x4] sm:$0xf]
    %v1200 = vld [vmem:[%s5 + $0x8] sm:$0xf]
    %v1201 = vld [vmem:[%s5 + $0xc] sm:$0xf]
    %v1202 = vld [vmem:[%s6] sm:$0x1]
    %v1204 = vlaneseq
    %v1205 = vshrl.u32 %v1204, 7
    %v1206 = vsub.s32 0, %v1205
    %v1207 = vrot.slane %v1202, %v1206
    %v1213 = vunpack.c.l.b16 %v1198
    %v1214 = vunpack.c.l.b16 %v1199
    %v1215 = vunpack.c.l.b16 %v1200
    %v1216 = vunpack.c.l.b16 %v1201
    %v1217 = vpack.c.b16 %v1214, %v1213
    %v1218 = vpack.c.b16 %v1216, %v1215
    %v1222 = vsel %vm47, %v1197, 0
    %1224 = vmatprep.subr.bf16.mxu0 0
    %1225 = vmatpush1.bf16.msra.mxu0 %v1217
    %1226 = vmatprep.subr.bf16.mxu0 0
    %1227 = vmatpush1.bf16.msra.mxu0 %v1218
    %1228 = vmatprep.subr.bf16.mxu0 0
    %1229 = vmatpush1.bf16.msra.mxu0 0
    %1230 = vmatprep.subr.bf16.mxu0 0
    %1231 = vmatpush1.bf16.msra.mxu0 0
    %1232 = vmatprep.subr.bf16.mxu0 0
    %1233 = vmatpush1.bf16.msra.mxu0 0
    %1234 = vmatprep.subr.bf16.mxu0 0
    %1235 = vmatpush1.bf16.msra.mxu0 0
    %1236 = vmatprep.subr.bf16.mxu0 0
    %1237 = vmatpush1.bf16.msra.mxu0 0
    %1238 = vmatprep.subr.bf16.mxu0 0
    %1239 = vmatpush1.bf16.msra.mxu0 0
    %1240 = vmatprep.subr.bf16.mxu0 0
    %1241 = vmatpush1.bf16.msra.mxu0 0
    %1242 = vmatprep.subr.bf16.mxu0 0
    %1243 = vmatpush1.bf16.msra.mxu0 0
    %1244 = vmatprep.subr.bf16.mxu0 0
    %1245 = vmatpush1.bf16.msra.mxu0 0
    %1246 = vmatprep.subr.bf16.mxu0 0
    %1247 = vmatpush1.bf16.msra.mxu0 0
    %1248 = vmatprep.subr.bf16.mxu0 0
    %1249 = vmatpush1.bf16.msra.mxu0 0
    %1250 = vmatprep.subr.bf16.mxu0 0
    %1251 = vmatpush1.bf16.msra.mxu0 0
    %1252 = vmatprep.subr.bf16.mxu0 0
    %1253 = vmatpush1.bf16.msra.mxu0 0
    %1254 = vmatprep.subr.bf16.mxu0 0
    %1255 = vmatpush1.bf16.msra.mxu0 0
    %1256 = vmatprep.mubr.bf16.mxu0 0
    %1257 = vmatmul.mubr.bf16.gmra.mrb[0].mxu0 %v1222
    %v1258 = vpop.f32.mrb[0].mxu0
    %v1259 = vadd.f32 %v1207, %v1258
    %v1260 = vpop.f32.mrb[0].mxu0
    %v1261 = vpop.f32.mrb[0].mxu0
    %v1262 = vadd.f32 %v1207, %v1261
    %v1263 = vpop.f32.mrb[0].mxu0
    %1264 = vdwg.mxu0
    %v1265 = vmul.f32 %v1259, %v1259
    %v1266 = vmul.f32 %v1262, %v1262
    %v1267 = vmul.f32 %v1259, %v1265
    %v1268 = vmul.f32 %v1262, %v1266
    %v1269 = vmul.f32 %v1267, 0.044715
    %v1270 = vmul.f32 %v1268, 0.044715
    %v1271 = vadd.f32 %v1259, %v1269
    %v1272 = vadd.f32 %v1262, %v1270
    %v1273 = vmul.f32 %v1271, 0.7978846
    %v1274 = vmul.f32 %v1272, 0.7978846
    %v1275 = vtanh.pop %v1273
    %v1276 = vtanh.pop %v1274
    %v1277 = vadd.f32 %v1275, 1.0
    %v1278 = vadd.f32 %v1276, 1.0
    %v1279 = vmul.f32 %v1277, 0.5
    %v1280 = vmul.f32 %v1278, 0.5
    %v1281 = vmul.f32 %v1259, %v1279
    %v1282 = vmul.f32 %v1262, %v1280
    %v1283 = vpack.c.bf16 %v1282, %v1281
    %v1284 = vld [vmem:[%s7] sm:$0xf]
    %v1285 = vld [vmem:[%s7 + $0x4] sm:$0xf]
    %v1286 = vld [vmem:[%s7 + $0x8] sm:$0xf]
    %v1287 = vld [vmem:[%s7 + $0xc] sm:$0xf]
    %v1288 = vld [vmem:[%s7 + $0x10] sm:$0xf]
    %v1289 = vld [vmem:[%s7 + $0x14] sm:$0xf]
    %v1290 = vld [vmem:[%s7 + $0x18] sm:$0xf]
    %v1291 = vld [vmem:[%s7 + $0x1c] sm:$0xf]
    %v1292 = vld [vmem:[%s8] sm:$0x1]
    %v1294 = vlaneseq
    %v1295 = vshrl.u32 %v1294, 7
    %v1296 = vsub.s32 0, %v1295
    %v1297 = vrot.slane %v1292, %v1296
    %v1307 = vunpack.c.l.b16 %v1284
    %v1308 = vunpack.c.l.b16 %v1285
    %v1309 = vunpack.c.l.b16 %v1286
    %v1310 = vunpack.c.l.b16 %v1287
    %v1311 = vunpack.c.l.b16 %v1288
    %v1312 = vunpack.c.l.b16 %v1289
    %v1313 = vunpack.c.l.b16 %v1290
    %v1314 = vunpack.c.l.b16 %v1291
    %v1315 = vpack.c.b16 %v1308, %v1307
    %v1316 = vpack.c.b16 %v1310, %v1309
    %v1317 = vpack.c.b16 %v1312, %v1311
    %v1318 = vpack.c.b16 %v1314, %v1313
    %vm1323 = vcmask 523264
    %v1325 = vsel %vm1323, %v1283, 0
    %1327 = vmatprep.subr.bf16.mxu0 0
    %1328 = vmatpush1.bf16.msra.mxu0 %v1315
    %1329 = vmatprep.subr.bf16.mxu0 0
    %1330 = vmatpush1.bf16.msra.mxu0 %v1316
    %1331 = vmatprep.subr.bf16.mxu0 0
    %1332 = vmatpush1.bf16.msra.mxu0 %v1317
    %1333 = vmatprep.subr.bf16.mxu0 0
    %1334 = vmatpush1.bf16.msra.mxu0 %v1318
    %1335 = vmatprep.subr.bf16.mxu0 0
    %1336 = vmatpush1.bf16.msra.mxu0 0
    %1337 = vmatprep.subr.bf16.mxu0 0
    %1338 = vmatpush1.bf16.msra.mxu0 0
    %1339 = vmatprep.subr.bf16.mxu0 0
    %1340 = vmatpush1.bf16.msra.mxu0 0
    %1341 = vmatprep.subr.bf16.mxu0 0
    %1342 = vmatpush1.bf16.msra.mxu0 0
    %1343 = vmatprep.subr.bf16.mxu0 0
    %1344 = vmatpush1.bf16.msra.mxu0 0
    %1345 = vmatprep.subr.bf16.mxu0 0
    %1346 = vmatpush1.bf16.msra.mxu0 0
    %1347 = vmatprep.subr.bf16.mxu0 0
    %1348 = vmatpush1.bf16.msra.mxu0 0
    %1349 = vmatprep.subr.bf16.mxu0 0
    %1350 = vmatpush1.bf16.msra.mxu0 0
    %1351 = vmatprep.subr.bf16.mxu0 0
    %1352 = vmatpush1.bf16.msra.mxu0 0
    %1353 = vmatprep.subr.bf16.mxu0 0
    %1354 = vmatpush1.bf16.msra.mxu0 0
    %1355 = vmatprep.subr.bf16.mxu0 0
    %1356 = vmatpush1.bf16.msra.mxu0 0
    %1357 = vmatprep.subr.bf16.mxu0 0
    %1358 = vmatpush1.bf16.msra.mxu0 0
    %1359 = vmatprep.mubr.bf16.mxu0 0
    %1360 = vmatmul.mubr.bf16.gmra.mrb[0].mxu0 %v1325
    %v1361 = vpop.f32.mrb[0].mxu0
    %v1362 = vadd.f32 %v1297, %v1361
    %v1363 = vpop.f32.mrb[0].mxu0
    %v1364 = vpop.f32.mrb[0].mxu0
    %v1365 = vadd.f32 %v1297, %v1364
    %v1366 = vpop.f32.mrb[0].mxu0
    %1367 = vdwg.mxu0
    %v1368 = vadd.f32 %v1195, %v1362
    %v1369 = vadd.f32 %v1196, %v1365
    %v1370 = vsel %vm47, %v1368, 0.0
    %1371 = vadd.xlane.f32.xlu0 %v1370
    %v1372 = vpop.xlane.xlu0 %1371
    %v1373 = vsel %vm47, %v1369, 0.0
    %1374 = vadd.xlane.f32.xlu0 %v1373
    %v1375 = vpop.xlane.xlu0 %1374
    %v1376 = vmul.f32 %v1372, %v54
    %v1377 = vmul.f32 %v1375, %v54
    %v1378 = vsub.f32 %v1368, %v1376
    %v1379 = vsub.f32 %v1369, %v1377
    %v1380 = vmul.f32 %v1378, %v1378
    %v1381 = vmul.f32 %v1379, %v1379
    %v1382 = vsel %vm47, %v1380, 0.0
    %1383 = vadd.xlane.f32.xlu0 %v1382
    %v1384 = vpop.xlane.xlu0 %1383
    %v1385 = vsel %vm47, %v1381, 0.0
    %1386 = vadd.xlane.f32.xlu0 %v1385
    %v1387 = vpop.xlane.xlu0 %1386
    %v1388 = vmul.f32 %v1384, %v54
    %v1389 = vmul.f32 %v1387, %v54
    %v1390 = vadd.f32 %v1388, 1e-12
    %v1391 = vadd.f32 %v1389, 1e-12
    %v1392 = vrsqrt.pop %v1390
    %v1393 = vrsqrt.pop %v1391
    %v1394 = vmul.f32 %v1378, %v1392
    %v1395 = vmul.f32 %v1379, %v1393
    %v1396 = vlaneseq
    %v1397 = vshrl.u32 %v1396, 7
    %v1398 = vsub.s32 2, %v1397
    %v1399 = vrot.slane %v92, %v1398
    %v1400 = vmul.f32 %v1394, %v1399
    %v1401 = vmul.f32 %v1395, %v1399
    %v1402 = vlaneseq
    %v1403 = vshrl.u32 %v1402, 7
    %v1404 = vsub.s32 3, %v1403
    %v1405 = vrot.slane %v92, %v1404
    %v1406 = vadd.f32 %v1400, %v1405
    %v1407 = vadd.f32 %v1401, %v1405
    %s1408 = scalar_lea.vmem %s3, 16
    %v1409 = vld [vmem:[%s1408] sm:$0xf]
    %v1410 = vld [vmem:[%s1408 + $0x4] sm:$0xf]
    %v1411 = vld [vmem:[%s1408 + $0x8] sm:$0xf]
    %v1412 = vld [vmem:[%s1408 + $0xc] sm:$0xf]
    %s1413 = scalar_lea.vmem %s4, 1
    %v1414 = vld [vmem:[%s1413] sm:$0x1]
    %s1415 = scalar_lea.vmem %s9, 4
    %v1416 = vld [vmem:[%s1415] sm:$0xf]
    %v1417 = vpack.c.bf16 %v1407, %v1406
    %v1419 = vlaneseq
    %v1420 = vshrl.u32 %v1419, 7
    %v1421 = vsub.s32 0, %v1420
    %v1422 = vrot.slane %v1414, %v1421
    %v1428 = vunpack.c.l.b16 %v1409
    %v1429 = vunpack.c.l.b16 %v1410
    %v1430 = vunpack.c.l.b16 %v1411
    %v1431 = vunpack.c.l.b16 %v1412
    %v1432 = vpack.c.b16 %v1429, %v1428
    %v1433 = vpack.c.b16 %v1431, %v1430
    %v1437 = vsel %vm47, %v1417, 0
    %1439 = vmatprep.subr.bf16.mxu0 0
    %1440 = vmatpush1.bf16.msra.mxu0 %v1432
    %1441 = vmatprep.subr.bf16.mxu0 0
    %1442 = vmatpush1.bf16.msra.mxu0 %v1433
    %1443 = vmatprep.subr.bf16.mxu0 0
    %1444 = vmatpush1.bf16.msra.mxu0 0
    %1445 = vmatprep.subr.bf16.mxu0 0
    %1446 = vmatpush1.bf16.msra.mxu0 0
    %1447 = vmatprep.subr.bf16.mxu0 0
    %1448 = vmatpush1.bf16.msra.mxu0 0
    %1449 = vmatprep.subr.bf16.mxu0 0
    %1450 = vmatpush1.bf16.msra.mxu0 0
    %1451 = vmatprep.subr.bf16.mxu0 0
    %1452 = vmatpush1.bf16.msra.mxu0 0
    %1453 = vmatprep.subr.bf16.mxu0 0
    %1454 = vmatpush1.bf16.msra.mxu0 0
    %1455 = vmatprep.subr.bf16.mxu0 0
    %1456 = vmatpush1.bf16.msra.mxu0 0
    %1457 = vmatprep.subr.bf16.mxu0 0
    %1458 = vmatpush1.bf16.msra.mxu0 0
    %1459 = vmatprep.subr.bf16.mxu0 0
    %1460 = vmatpush1.bf16.msra.mxu0 0
    %1461 = vmatprep.subr.bf16.mxu0 0
    %1462 = vmatpush1.bf16.msra.mxu0 0
    %1463 = vmatprep.subr.bf16.mxu0 0
    %1464 = vmatpush1.bf16.msra.mxu0 0
    %1465 = vmatprep.subr.bf16.mxu0 0
    %1466 = vmatpush1.bf16.msra.mxu0 0
    %1467 = vmatprep.subr.bf16.mxu0 0
    %1468 = vmatpush1.bf16.msra.mxu0 0
    %1469 = vmatprep.subr.bf16.mxu0 0
    %1470 = vmatpush1.bf16.msra.mxu0 0
    %1471 = vmatprep.mubr.bf16.mxu0 0
    %1472 = vmatmul.mubr.bf16.gmra.mrb[0].mxu0 %v1437
    %v1473 = vpop.f32.mrb[0].mxu0
    %v1474 = vadd.f32 %v1422, %v1473
    %v1475 = vpop.f32.mrb[0].mxu0
    %v1476 = vpop.f32.mrb[0].mxu0
    %v1477 = vadd.f32 %v1422, %v1476
    %v1478 = vpop.f32.mrb[0].mxu0
    %1479 = vdwg.mxu0
    %v1480 = vpack.c.bf16 %v1474, %v1474
    %v1481 = vpack.c.bf16 %v1477, %v1477
    %1483 = vrot.lane.b32.xlu0 %v1480, 96
    %v1484 = vpop.permute.xlu0 %1483
    %v1486 = vsel %vm161, %v1480, 0
    %v1489 = vsel %vm161, %v1484, 0
    %1491 = vmatprep.subr.bf16.mxu0 0
    %1492 = vmatpush1.bf16.xpose.msra.mxu0 %v1489
    %1493 = vmatprep.subr.bf16.mxu0 0
    %1494 = vmatpush1.bf16.xpose.msra.mxu0 0
    %1495 = vmatprep.subr.bf16.mxu0 0
    %1496 = vmatpush1.bf16.xpose.msra.mxu0 0
    %1497 = vmatprep.subr.bf16.mxu0 0
    %1498 = vmatpush1.bf16.xpose.msra.mxu0 0
    %1499 = vmatprep.subr.bf16.mxu0 0
    %1500 = vmatpush1.bf16.xpose.msra.mxu0 0
    %1501 = vmatprep.subr.bf16.mxu0 0
    %1502 = vmatpush1.bf16.xpose.msra.mxu0 0
    %1503 = vmatprep.subr.bf16.mxu0 0
    %1504 = vmatpush1.bf16.xpose.msra.mxu0 0
    %1505 = vmatprep.subr.bf16.mxu0 0
    %1506 = vmatpush1.bf16.xpose.msra.mxu0 0
    %1507 = vmatprep.subr.bf16.mxu0 0
    %1508 = vmatpush1.bf16.xpose.msra.mxu0 0
    %1509 = vmatprep.subr.bf16.mxu0 0
    %1510 = vmatpush1.bf16.xpose.msra.mxu0 0
    %1511 = vmatprep.subr.bf16.mxu0 0
    %1512 = vmatpush1.bf16.xpose.msra.mxu0 0
    %1513 = vmatprep.subr.bf16.mxu0 0
    %1514 = vmatpush1.bf16.xpose.msra.mxu0 0
    %1515 = vmatprep.subr.bf16.mxu0 0
    %1516 = vmatpush1.bf16.xpose.msra.mxu0 0
    %1517 = vmatprep.subr.bf16.mxu0 0
    %1518 = vmatpush1.bf16.xpose.msra.mxu0 0
    %1519 = vmatprep.subr.bf16.mxu0 0
    %1520 = vmatpush1.bf16.xpose.msra.mxu0 0
    %1521 = vmatprep.subr.bf16.mxu0 0
    %1522 = vmatpush1.bf16.xpose.msra.mxu0 0
    %1523 = vmatprep.mubr.bf16.mxu0 0
    %1524 = vmatmul.mubr.bf16.gmra.mrb[0].mxu0 %v1486
    %v1525 = vpop.f32.mrb[0].mxu0
    %v1526 = vadd.f32 0.0, %v1525
    %v1527 = vpop.f32.mrb[0].mxu0
    %v1528 = vpop.f32.mrb[0].mxu0
    %v1529 = vpop.f32.mrb[0].mxu0
    %1530 = vdwg.mxu0
    %1532 = vrot.lane.b32.xlu0 %v1481, 96
    %v1533 = vpop.permute.xlu0 %1532
    %v1535 = vsel %vm161, %v1481, 0
    %v1538 = vsel %vm161, %v1533, 0
    %1540 = vmatprep.subr.bf16.mxu0 0
    %1541 = vmatpush1.bf16.xpose.msra.mxu0 %v1538
    %1542 = vmatprep.subr.bf16.mxu0 0
    %1543 = vmatpush1.bf16.xpose.msra.mxu0 0
    %1544 = vmatprep.subr.bf16.mxu0 0
    %1545 = vmatpush1.bf16.xpose.msra.mxu0 0
    %1546 = vmatprep.subr.bf16.mxu0 0
    %1547 = vmatpush1.bf16.xpose.msra.mxu0 0
    %1548 = vmatprep.subr.bf16.mxu0 0
    %1549 = vmatpush1.bf16.xpose.msra.mxu0 0
    %1550 = vmatprep.subr.bf16.mxu0 0
    %1551 = vmatpush1.bf16.xpose.msra.mxu0 0
    %1552 = vmatprep.subr.bf16.mxu0 0
    %1553 = vmatpush1.bf16.xpose.msra.mxu0 0
    %1554 = vmatprep.subr.bf16.mxu0 0
    %1555 = vmatpush1.bf16.xpose.msra.mxu0 0
    %1556 = vmatprep.subr.bf16.mxu0 0
    %1557 = vmatpush1.bf16.xpose.msra.mxu0 0
    %1558 = vmatprep.subr.bf16.mxu0 0
    %1559 = vmatpush1.bf16.xpose.msra.mxu0 0
    %1560 = vmatprep.subr.bf16.mxu0 0
    %1561 = vmatpush1.bf16.xpose.msra.mxu0 0
    %1562 = vmatprep.subr.bf16.mxu0 0
    %1563 = vmatpush1.bf16.xpose.msra.mxu0 0
    %1564 = vmatprep.subr.bf16.mxu0 0
    %1565 = vmatpush1.bf16.xpose.msra.mxu0 0
    %1566 = vmatprep.subr.bf16.mxu0 0
    %1567 = vmatpush1.bf16.xpose.msra.mxu0 0
    %1568 = vmatprep.subr.bf16.mxu0 0
    %1569 = vmatpush1.bf16.xpose.msra.mxu0 0
    %1570 = vmatprep.subr.bf16.mxu0 0
    %1571 = vmatpush1.bf16.xpose.msra.mxu0 0
    %1572 = vmatprep.mubr.bf16.mxu0 0
    %1573 = vmatmul.mubr.bf16.gmra.mrb[0].mxu0 %v1535
    %v1574 = vpop.f32.mrb[0].mxu0
    %v1575 = vadd.f32 0.0, %v1574
    %v1576 = vpop.f32.mrb[0].mxu0
    %v1577 = vpop.f32.mrb[0].mxu0
    %v1578 = vpop.f32.mrb[0].mxu0
    %1579 = vdwg.mxu0
    %v1580 = vmul.f32 %v1526, 0.35355338
    %v1581 = vmul.f32 %v1575, 0.35355338
    %v1582 = vadd.f32 %v1580, %v264
    %v1583 = vadd.f32 %v1581, %v268
    %v1584 = vsel %vm161, %v1582, -inf
    %1585 = vmax.xlane.f32.xlu0 %v1584
    %v1586 = vpop.xlane.xlu0 %1585
    %v1587 = vsel %vm161, %v1583, -inf
    %1588 = vmax.xlane.f32.xlu0 %v1587
    %v1589 = vpop.xlane.xlu0 %1588
    %v1590 = vsub.f32 %v1582, %v1586
    %v1591 = vsub.f32 %v1583, %v1589
    %v1592 = vmul.f32 %v1590, 1.442695
    %v1593 = vpow.pop %v1592
    %v1594 = vmul.f32 %v1591, 1.442695
    %v1595 = vpow.pop %v1594
    %v1596 = vsel %vm161, %v1593, 0.0
    %1597 = vadd.xlane.f32.xlu0 %v1596
    %v1598 = vpop.xlane.xlu0 %1597
    %v1599 = vsel %vm161, %v1595, 0.0
    %1600 = vadd.xlane.f32.xlu0 %v1599
    %v1601 = vpop.xlane.xlu0 %1600
    %v1602 = vrcp.pop %v1598
    %v1603 = vrcp.pop %v1601
    %v1604 = vmul.f32 %v1593, %v1602
    %v1605 = vmul.f32 %v1595, %v1603
    %v1606 = vpack.c.bf16 %v1604, %v1604
    %v1607 = vpack.c.bf16 %v1605, %v1605
    %1608 = vrot.lane.b32.xlu0 %v1480, 64
    %v1609 = vpop.permute.xlu0 %1608
    %v1611 = vsel %vm161, %v1606, 0
    %v1614 = vsel %vm302, %v1609, 0
    %1616 = vmatprep.subr.bf16.mxu0 0
    %1617 = vmatpush1.bf16.msra.mxu0 %v1614
    %1618 = vmatprep.subr.bf16.mxu0 0
    %1619 = vmatpush1.bf16.msra.mxu0 0
    %1620 = vmatprep.subr.bf16.mxu0 0
    %1621 = vmatpush1.bf16.msra.mxu0 0
    %1622 = vmatprep.subr.bf16.mxu0 0
    %1623 = vmatpush1.bf16.msra.mxu0 0
    %1624 = vmatprep.subr.bf16.mxu0 0
    %1625 = vmatpush1.bf16.msra.mxu0 0
    %1626 = vmatprep.subr.bf16.mxu0 0
    %1627 = vmatpush1.bf16.msra.mxu0 0
    %1628 = vmatprep.subr.bf16.mxu0 0
    %1629 = vmatpush1.bf16.msra.mxu0 0
    %1630 = vmatprep.subr.bf16.mxu0 0
    %1631 = vmatpush1.bf16.msra.mxu0 0
    %1632 = vmatprep.subr.bf16.mxu0 0
    %1633 = vmatpush1.bf16.msra.mxu0 0
    %1634 = vmatprep.subr.bf16.mxu0 0
    %1635 = vmatpush1.bf16.msra.mxu0 0
    %1636 = vmatprep.subr.bf16.mxu0 0
    %1637 = vmatpush1.bf16.msra.mxu0 0
    %1638 = vmatprep.subr.bf16.mxu0 0
    %1639 = vmatpush1.bf16.msra.mxu0 0
    %1640 = vmatprep.subr.bf16.mxu0 0
    %1641 = vmatpush1.bf16.msra.mxu0 0
    %1642 = vmatprep.subr.bf16.mxu0 0
    %1643 = vmatpush1.bf16.msra.mxu0 0
    %1644 = vmatprep.subr.bf16.mxu0 0
    %1645 = vmatpush1.bf16.msra.mxu0 0
    %1646 = vmatprep.subr.bf16.mxu0 0
    %1647 = vmatpush1.bf16.msra.mxu0 0
    %1648 = vmatprep.mubr.bf16.mxu0 0
    %1649 = vmatmul.mubr.bf16.gmra.mrb[0].mxu0 %v1611
    %v1650 = vpop.f32.mrb[0].mxu0
    %v1651 = vadd.f32 0.0, %v1650
    %v1652 = vpop.f32.mrb[0].mxu0
    %v1653 = vpop.f32.mrb[0].mxu0
    %v1654 = vpop.f32.mrb[0].mxu0
    %1655 = vdwg.mxu0
    %1656 = vrot.lane.b32.xlu0 %v1481, 64
    %v1657 = vpop.permute.xlu0 %1656
    %v1659 = vsel %vm161, %v1607, 0
    %v1662 = vsel %vm302, %v1657, 0
    %1664 = vmatprep.subr.bf16.mxu0 0
    %1665 = vmatpush1.bf16.msra.mxu0 %v1662
    %1666 = vmatprep.subr.bf16.mxu0 0
    %1667 = vmatpush1.bf16.msra.mxu0 0
    %1668 = vmatprep.subr.bf16.mxu0 0
    %1669 = vmatpush1.bf16.msra.mxu0 0
    %1670 = vmatprep.subr.bf16.mxu0 0
    %1671 = vmatpush1.bf16.msra.mxu0 0
    %1672 = vmatprep.subr.bf16.mxu0 0
    %1673 = vmatpush1.bf16.msra.mxu0 0
    %1674 = vmatprep.subr.bf16.mxu0 0
    %1675 = vmatpush1.bf16.msra.mxu0 0
    %1676 = vmatprep.subr.bf16.mxu0 0
    %1677 = vmatpush1.bf16.msra.mxu0 0
    %1678 = vmatprep.subr.bf16.mxu0 0
    %1679 = vmatpush1.bf16.msra.mxu0 0
    %1680 = vmatprep.subr.bf16.mxu0 0
    %1681 = vmatpush1.bf16.msra.mxu0 0
    %1682 = vmatprep.subr.bf16.mxu0 0
    %1683 = vmatpush1.bf16.msra.mxu0 0
    %1684 = vmatprep.subr.bf16.mxu0 0
    %1685 = vmatpush1.bf16.msra.mxu0 0
    %1686 = vmatprep.subr.bf16.mxu0 0
    %1687 = vmatpush1.bf16.msra.mxu0 0
    %1688 = vmatprep.subr.bf16.mxu0 0
    %1689 = vmatpush1.bf16.msra.mxu0 0
    %1690 = vmatprep.subr.bf16.mxu0 0
    %1691 = vmatpush1.bf16.msra.mxu0 0
    %1692 = vmatprep.subr.bf16.mxu0 0
    %1693 = vmatpush1.bf16.msra.mxu0 0
    %1694 = vmatprep.subr.bf16.mxu0 0
    %1695 = vmatpush1.bf16.msra.mxu0 0
    %1696 = vmatprep.mubr.bf16.mxu0 0
    %1697 = vmatmul.mubr.bf16.gmra.mrb[0].mxu0 %v1659
    %v1698 = vpop.f32.mrb[0].mxu0
    %v1699 = vadd.f32 0.0, %v1698
    %v1700 = vpop.f32.mrb[0].mxu0
    %v1701 = vpop.f32.mrb[0].mxu0
    %v1702 = vpop.f32.mrb[0].mxu0
    %1703 = vdwg.mxu0
    %1704 = vst.msk [vmem:[#allocation2] sm:$0xff] %vm161, %v1651
    %1705 = vst.msk [vmem:[#allocation2 + $0x8] sm:$0xff] %vm161, %v1699
    %1706 = vrot.lane.b32.xlu0 %v1480, 120
    %v1707 = vpop.permute.xlu0 %1706
    %1708 = vrot.lane.b32.xlu0 %v1480, 88
    %v1709 = vpop.permute.xlu0 %1708
    %v1711 = vsel %vm161, %v1707, 0
    %v1714 = vsel %vm161, %v1709, 0
    %1716 = vmatprep.subr.bf16.mxu0 0
    %1717 = vmatpush1.bf16.xpose.msra.mxu0 %v1714
    %1718 = vmatprep.subr.bf16.mxu0 0
    %1719 = vmatpush1.bf16.xpose.msra.mxu0 0
    %1720 = vmatprep.subr.bf16.mxu0 0
    %1721 = vmatpush1.bf16.xpose.msra.mxu0 0
    %1722 = vmatprep.subr.bf16.mxu0 0
    %1723 = vmatpush1.bf16.xpose.msra.mxu0 0
    %1724 = vmatprep.subr.bf16.mxu0 0
    %1725 = vmatpush1.bf16.xpose.msra.mxu0 0
    %1726 = vmatprep.subr.bf16.mxu0 0
    %1727 = vmatpush1.bf16.xpose.msra.mxu0 0
    %1728 = vmatprep.subr.bf16.mxu0 0
    %1729 = vmatpush1.bf16.xpose.msra.mxu0 0
    %1730 = vmatprep.subr.bf16.mxu0 0
    %1731 = vmatpush1.bf16.xpose.msra.mxu0 0
    %1732 = vmatprep.subr.bf16.mxu0 0
    %1733 = vmatpush1.bf16.xpose.msra.mxu0 0
    %1734 = vmatprep.subr.bf16.mxu0 0
    %1735 = vmatpush1.bf16.xpose.msra.mxu0 0
    %1736 = vmatprep.subr.bf16.mxu0 0
    %1737 = vmatpush1.bf16.xpose.msra.mxu0 0
    %1738 = vmatprep.subr.bf16.mxu0 0
    %1739 = vmatpush1.bf16.xpose.msra.mxu0 0
    %1740 = vmatprep.subr.bf16.mxu0 0
    %1741 = vmatpush1.bf16.xpose.msra.mxu0 0
    %1742 = vmatprep.subr.bf16.mxu0 0
    %1743 = vmatpush1.bf16.xpose.msra.mxu0 0
    %1744 = vmatprep.subr.bf16.mxu0 0
    %1745 = vmatpush1.bf16.xpose.msra.mxu0 0
    %1746 = vmatprep.subr.bf16.mxu0 0
    %1747 = vmatpush1.bf16.xpose.msra.mxu0 0
    %1748 = vmatprep.mubr.bf16.mxu0 0
    %1749 = vmatmul.mubr.bf16.gmra.mrb[0].mxu0 %v1711
    %v1750 = vpop.f32.mrb[0].mxu0
    %v1751 = vadd.f32 0.0, %v1750
    %v1752 = vpop.f32.mrb[0].mxu0
    %v1753 = vpop.f32.mrb[0].mxu0
    %v1754 = vpop.f32.mrb[0].mxu0
    %1755 = vdwg.mxu0
    %1756 = vrot.lane.b32.xlu0 %v1481, 120
    %v1757 = vpop.permute.xlu0 %1756
    %1758 = vrot.lane.b32.xlu0 %v1481, 88
    %v1759 = vpop.permute.xlu0 %1758
    %v1761 = vsel %vm161, %v1757, 0
    %v1764 = vsel %vm161, %v1759, 0
    %1766 = vmatprep.subr.bf16.mxu0 0
    %1767 = vmatpush1.bf16.xpose.msra.mxu0 %v1764
    %1768 = vmatprep.subr.bf16.mxu0 0
    %1769 = vmatpush1.bf16.xpose.msra.mxu0 0
    %1770 = vmatprep.subr.bf16.mxu0 0
    %1771 = vmatpush1.bf16.xpose.msra.mxu0 0
    %1772 = vmatprep.subr.bf16.mxu0 0
    %1773 = vmatpush1.bf16.xpose.msra.mxu0 0
    %1774 = vmatprep.subr.bf16.mxu0 0
    %1775 = vmatpush1.bf16.xpose.msra.mxu0 0
    %1776 = vmatprep.subr.bf16.mxu0 0
    %1777 = vmatpush1.bf16.xpose.msra.mxu0 0
    %1778 = vmatprep.subr.bf16.mxu0 0
    %1779 = vmatpush1.bf16.xpose.msra.mxu0 0
    %1780 = vmatprep.subr.bf16.mxu0 0
    %1781 = vmatpush1.bf16.xpose.msra.mxu0 0
    %1782 = vmatprep.subr.bf16.mxu0 0
    %1783 = vmatpush1.bf16.xpose.msra.mxu0 0
    %1784 = vmatprep.subr.bf16.mxu0 0
    %1785 = vmatpush1.bf16.xpose.msra.mxu0 0
    %1786 = vmatprep.subr.bf16.mxu0 0
    %1787 = vmatpush1.bf16.xpose.msra.mxu0 0
    %1788 = vmatprep.subr.bf16.mxu0 0
    %1789 = vmatpush1.bf16.xpose.msra.mxu0 0
    %1790 = vmatprep.subr.bf16.mxu0 0
    %1791 = vmatpush1.bf16.xpose.msra.mxu0 0
    %1792 = vmatprep.subr.bf16.mxu0 0
    %1793 = vmatpush1.bf16.xpose.msra.mxu0 0
    %1794 = vmatprep.subr.bf16.mxu0 0
    %1795 = vmatpush1.bf16.xpose.msra.mxu0 0
    %1796 = vmatprep.subr.bf16.mxu0 0
    %1797 = vmatpush1.bf16.xpose.msra.mxu0 0
    %1798 = vmatprep.mubr.bf16.mxu0 0
    %1799 = vmatmul.mubr.bf16.gmra.mrb[0].mxu0 %v1761
    %v1800 = vpop.f32.mrb[0].mxu0
    %v1801 = vadd.f32 0.0, %v1800
    %v1802 = vpop.f32.mrb[0].mxu0
    %v1803 = vpop.f32.mrb[0].mxu0
    %v1804 = vpop.f32.mrb[0].mxu0
    %1805 = vdwg.mxu0
    %v1806 = vmul.f32 %v1751, 0.35355338
    %v1807 = vmul.f32 %v1801, 0.35355338
    %v1808 = vadd.f32 %v1806, %v264
    %v1809 = vadd.f32 %v1807, %v268
    %v1810 = vsel %vm161, %v1808, -inf
    %1811 = vmax.xlane.f32.xlu0 %v1810
    %v1812 = vpop.xlane.xlu0 %1811
    %v1813 = vsel %vm161, %v1809, -inf
    %1814 = vmax.xlane.f32.xlu0 %v1813
    %v1815 = vpop.xlane.xlu0 %1814
    %v1816 = vsub.f32 %v1808, %v1812
    %v1817 = vsub.f32 %v1809, %v1815
    %v1818 = vmul.f32 %v1816, 1.442695
    %v1819 = vpow.pop %v1818
    %v1820 = vmul.f32 %v1817, 1.442695
    %v1821 = vpow.pop %v1820
    %v1822 = vsel %vm161, %v1819, 0.0
    %1823 = vadd.xlane.f32.xlu0 %v1822
    %v1824 = vpop.xlane.xlu0 %1823
    %v1825 = vsel %vm161, %v1821, 0.0
    %1826 = vadd.xlane.f32.xlu0 %v1825
    %v1827 = vpop.xlane.xlu0 %1826
    %v1828 = vrcp.pop %v1824
    %v1829 = vrcp.pop %v1827
    %v1830 = vmul.f32 %v1819, %v1828
    %v1831 = vmul.f32 %v1821, %v1829
    %v1832 = vpack.c.bf16 %v1830, %v1830
    %v1833 = vpack.c.bf16 %v1831, %v1831
    %1834 = vrot.lane.b32.xlu0 %v1480, 56
    %v1835 = vpop.permute.xlu0 %1834
    %v1837 = vsel %vm161, %v1832, 0
    %v1840 = vsel %vm302, %v1835, 0
    %1842 = vmatprep.subr.bf16.mxu0 0
    %1843 = vmatpush1.bf16.msra.mxu0 %v1840
    %1844 = vmatprep.subr.bf16.mxu0 0
    %1845 = vmatpush1.bf16.msra.mxu0 0
    %1846 = vmatprep.subr.bf16.mxu0 0
    %1847 = vmatpush1.bf16.msra.mxu0 0
    %1848 = vmatprep.subr.bf16.mxu0 0
    %1849 = vmatpush1.bf16.msra.mxu0 0
    %1850 = vmatprep.subr.bf16.mxu0 0
    %1851 = vmatpush1.bf16.msra.mxu0 0
    %1852 = vmatprep.subr.bf16.mxu0 0
    %1853 = vmatpush1.bf16.msra.mxu0 0
    %1854 = vmatprep.subr.bf16.mxu0 0
    %1855 = vmatpush1.bf16.msra.mxu0 0
    %1856 = vmatprep.subr.bf16.mxu0 0
    %1857 = vmatpush1.bf16.msra.mxu0 0
    %1858 = vmatprep.subr.bf16.mxu0 0
    %1859 = vmatpush1.bf16.msra.mxu0 0
    %1860 = vmatprep.subr.bf16.mxu0 0
    %1861 = vmatpush1.bf16.msra.mxu0 0
    %1862 = vmatprep.subr.bf16.mxu0 0
    %1863 = vmatpush1.bf16.msra.mxu0 0
    %1864 = vmatprep.subr.bf16.mxu0 0
    %1865 = vmatpush1.bf16.msra.mxu0 0
    %1866 = vmatprep.subr.bf16.mxu0 0
    %1867 = vmatpush1.bf16.msra.mxu0 0
    %1868 = vmatprep.subr.bf16.mxu0 0
    %1869 = vmatpush1.bf16.msra.mxu0 0
    %1870 = vmatprep.subr.bf16.mxu0 0
    %1871 = vmatpush1.bf16.msra.mxu0 0
    %1872 = vmatprep.subr.bf16.mxu0 0
    %1873 = vmatpush1.bf16.msra.mxu0 0
    %1874 = vmatprep.mubr.bf16.mxu0 0
    %1875 = vmatmul.mubr.bf16.gmra.mrb[0].mxu0 %v1837
    %v1876 = vpop.f32.mrb[0].mxu0
    %v1877 = vadd.f32 0.0, %v1876
    %v1878 = vpop.f32.mrb[0].mxu0
    %v1879 = vpop.f32.mrb[0].mxu0
    %v1880 = vpop.f32.mrb[0].mxu0
    %1881 = vdwg.mxu0
    %1882 = vrot.lane.b32.xlu0 %v1481, 56
    %v1883 = vpop.permute.xlu0 %1882
    %v1885 = vsel %vm161, %v1833, 0
    %v1888 = vsel %vm302, %v1883, 0
    %1890 = vmatprep.subr.bf16.mxu0 0
    %1891 = vmatpush1.bf16.msra.mxu0 %v1888
    %1892 = vmatprep.subr.bf16.mxu0 0
    %1893 = vmatpush1.bf16.msra.mxu0 0
    %1894 = vmatprep.subr.bf16.mxu0 0
    %1895 = vmatpush1.bf16.msra.mxu0 0
    %1896 = vmatprep.subr.bf16.mxu0 0
    %1897 = vmatpush1.bf16.msra.mxu0 0
    %1898 = vmatprep.subr.bf16.mxu0 0
    %1899 = vmatpush1.bf16.msra.mxu0 0
    %1900 = vmatprep.subr.bf16.mxu0 0
    %1901 = vmatpush1.bf16.msra.mxu0 0
    %1902 = vmatprep.subr.bf16.mxu0 0
    %1903 = vmatpush1.bf16.msra.mxu0 0
    %1904 = vmatprep.subr.bf16.mxu0 0
    %1905 = vmatpush1.bf16.msra.mxu0 0
    %1906 = vmatprep.subr.bf16.mxu0 0
    %1907 = vmatpush1.bf16.msra.mxu0 0
    %1908 = vmatprep.subr.bf16.mxu0 0
    %1909 = vmatpush1.bf16.msra.mxu0 0
    %1910 = vmatprep.subr.bf16.mxu0 0
    %1911 = vmatpush1.bf16.msra.mxu0 0
    %1912 = vmatprep.subr.bf16.mxu0 0
    %1913 = vmatpush1.bf16.msra.mxu0 0
    %1914 = vmatprep.subr.bf16.mxu0 0
    %1915 = vmatpush1.bf16.msra.mxu0 0
    %1916 = vmatprep.subr.bf16.mxu0 0
    %1917 = vmatpush1.bf16.msra.mxu0 0
    %1918 = vmatprep.subr.bf16.mxu0 0
    %1919 = vmatpush1.bf16.msra.mxu0 0
    %1920 = vmatprep.subr.bf16.mxu0 0
    %1921 = vmatpush1.bf16.msra.mxu0 0
    %1922 = vmatprep.mubr.bf16.mxu0 0
    %1923 = vmatmul.mubr.bf16.gmra.mrb[0].mxu0 %v1885
    %v1924 = vpop.f32.mrb[0].mxu0
    %v1925 = vadd.f32 0.0, %v1924
    %v1926 = vpop.f32.mrb[0].mxu0
    %v1927 = vpop.f32.mrb[0].mxu0
    %v1928 = vpop.f32.mrb[0].mxu0
    %1929 = vdwg.mxu0
    %1932 = vrot.lane.b32.xlu0 %v1877, 8
    %v1933 = vpop.permute.xlu0 %1932
    %1934 = vrot.lane.b32.xlu0 %v1925, 8
    %v1935 = vpop.permute.xlu0 %1934
    %1938 = vst.msk [vmem:[#allocation2] sm:$0xff] %vm628, %v1933
    %1939 = vst.msk [vmem:[#allocation2 + $0x8] sm:$0xff] %vm628, %v1935
    %1940 = vrot.lane.b32.xlu0 %v1480, 112
    %v1941 = vpop.permute.xlu0 %1940
    %1942 = vrot.lane.b32.xlu0 %v1480, 80
    %v1943 = vpop.permute.xlu0 %1942
    %v1945 = vsel %vm161, %v1941, 0
    %v1948 = vsel %vm161, %v1943, 0
    %1950 = vmatprep.subr.bf16.mxu0 0
    %1951 = vmatpush1.bf16.xpose.msra.mxu0 %v1948
    %1952 = vmatprep.subr.bf16.mxu0 0
    %1953 = vmatpush1.bf16.xpose.msra.mxu0 0
    %1954 = vmatprep.subr.bf16.mxu0 0
    %1955 = vmatpush1.bf16.xpose.msra.mxu0 0
    %1956 = vmatprep.subr.bf16.mxu0 0
    %1957 = vmatpush1.bf16.xpose.msra.mxu0 0
    %1958 = vmatprep.subr.bf16.mxu0 0
    %1959 = vmatpush1.bf16.xpose.msra.mxu0 0
    %1960 = vmatprep.subr.bf16.mxu0 0
    %1961 = vmatpush1.bf16.xpose.msra.mxu0 0
    %1962 = vmatprep.subr.bf16.mxu0 0
    %1963 = vmatpush1.bf16.xpose.msra.mxu0 0
    %1964 = vmatprep.subr.bf16.mxu0 0
    %1965 = vmatpush1.bf16.xpose.msra.mxu0 0
    %1966 = vmatprep.subr.bf16.mxu0 0
    %1967 = vmatpush1.bf16.xpose.msra.mxu0 0
    %1968 = vmatprep.subr.bf16.mxu0 0
    %1969 = vmatpush1.bf16.xpose.msra.mxu0 0
    %1970 = vmatprep.subr.bf16.mxu0 0
    %1971 = vmatpush1.bf16.xpose.msra.mxu0 0
    %1972 = vmatprep.subr.bf16.mxu0 0
    %1973 = vmatpush1.bf16.xpose.msra.mxu0 0
    %1974 = vmatprep.subr.bf16.mxu0 0
    %1975 = vmatpush1.bf16.xpose.msra.mxu0 0
    %1976 = vmatprep.subr.bf16.mxu0 0
    %1977 = vmatpush1.bf16.xpose.msra.mxu0 0
    %1978 = vmatprep.subr.bf16.mxu0 0
    %1979 = vmatpush1.bf16.xpose.msra.mxu0 0
    %1980 = vmatprep.subr.bf16.mxu0 0
    %1981 = vmatpush1.bf16.xpose.msra.mxu0 0
    %1982 = vmatprep.mubr.bf16.mxu0 0
    %1983 = vmatmul.mubr.bf16.gmra.mrb[0].mxu0 %v1945
    %v1984 = vpop.f32.mrb[0].mxu0
    %v1985 = vadd.f32 0.0, %v1984
    %v1986 = vpop.f32.mrb[0].mxu0
    %v1987 = vpop.f32.mrb[0].mxu0
    %v1988 = vpop.f32.mrb[0].mxu0
    %1989 = vdwg.mxu0
    %1990 = vrot.lane.b32.xlu0 %v1481, 112
    %v1991 = vpop.permute.xlu0 %1990
    %1992 = vrot.lane.b32.xlu0 %v1481, 80
    %v1993 = vpop.permute.xlu0 %1992
    %v1995 = vsel %vm161, %v1991, 0
    %v1998 = vsel %vm161, %v1993, 0
    %2000 = vmatprep.subr.bf16.mxu0 0
    %2001 = vmatpush1.bf16.xpose.msra.mxu0 %v1998
    %2002 = vmatprep.subr.bf16.mxu0 0
    %2003 = vmatpush1.bf16.xpose.msra.mxu0 0
    %2004 = vmatprep.subr.bf16.mxu0 0
    %2005 = vmatpush1.bf16.xpose.msra.mxu0 0
    %2006 = vmatprep.subr.bf16.mxu0 0
    %2007 = vmatpush1.bf16.xpose.msra.mxu0 0
    %2008 = vmatprep.subr.bf16.mxu0 0
    %2009 = vmatpush1.bf16.xpose.msra.mxu0 0
    %2010 = vmatprep.subr.bf16.mxu0 0
    %2011 = vmatpush1.bf16.xpose.msra.mxu0 0
    %2012 = vmatprep.subr.bf16.mxu0 0
    %2013 = vmatpush1.bf16.xpose.msra.mxu0 0
    %2014 = vmatprep.subr.bf16.mxu0 0
    %2015 = vmatpush1.bf16.xpose.msra.mxu0 0
    %2016 = vmatprep.subr.bf16.mxu0 0
    %2017 = vmatpush1.bf16.xpose.msra.mxu0 0
    %2018 = vmatprep.subr.bf16.mxu0 0
    %2019 = vmatpush1.bf16.xpose.msra.mxu0 0
    %2020 = vmatprep.subr.bf16.mxu0 0
    %2021 = vmatpush1.bf16.xpose.msra.mxu0 0
    %2022 = vmatprep.subr.bf16.mxu0 0
    %2023 = vmatpush1.bf16.xpose.msra.mxu0 0
    %2024 = vmatprep.subr.bf16.mxu0 0
    %2025 = vmatpush1.bf16.xpose.msra.mxu0 0
    %2026 = vmatprep.subr.bf16.mxu0 0
    %2027 = vmatpush1.bf16.xpose.msra.mxu0 0
    %2028 = vmatprep.subr.bf16.mxu0 0
    %2029 = vmatpush1.bf16.xpose.msra.mxu0 0
    %2030 = vmatprep.subr.bf16.mxu0 0
    %2031 = vmatpush1.bf16.xpose.msra.mxu0 0
    %2032 = vmatprep.mubr.bf16.mxu0 0
    %2033 = vmatmul.mubr.bf16.gmra.mrb[0].mxu0 %v1995
    %v2034 = vpop.f32.mrb[0].mxu0
    %v2035 = vadd.f32 0.0, %v2034
    %v2036 = vpop.f32.mrb[0].mxu0
    %v2037 = vpop.f32.mrb[0].mxu0
    %v2038 = vpop.f32.mrb[0].mxu0
    %2039 = vdwg.mxu0
    %v2040 = vmul.f32 %v1985, 0.35355338
    %v2041 = vmul.f32 %v2035, 0.35355338
    %v2042 = vadd.f32 %v2040, %v264
    %v2043 = vadd.f32 %v2041, %v268
    %v2044 = vsel %vm161, %v2042, -inf
    %2045 = vmax.xlane.f32.xlu0 %v2044
    %v2046 = vpop.xlane.xlu0 %2045
    %v2047 = vsel %vm161, %v2043, -inf
    %2048 = vmax.xlane.f32.xlu0 %v2047
    %v2049 = vpop.xlane.xlu0 %2048
    %v2050 = vsub.f32 %v2042, %v2046
    %v2051 = vsub.f32 %v2043, %v2049
    %v2052 = vmul.f32 %v2050, 1.442695
    %v2053 = vpow.pop %v2052
    %v2054 = vmul.f32 %v2051, 1.442695
    %v2055 = vpow.pop %v2054
    %v2056 = vsel %vm161, %v2053, 0.0
    %2057 = vadd.xlane.f32.xlu0 %v2056
    %v2058 = vpop.xlane.xlu0 %2057
    %v2059 = vsel %vm161, %v2055, 0.0
    %2060 = vadd.xlane.f32.xlu0 %v2059
    %v2061 = vpop.xlane.xlu0 %2060
    %v2062 = vrcp.pop %v2058
    %v2063 = vrcp.pop %v2061
    %v2064 = vmul.f32 %v2053, %v2062
    %v2065 = vmul.f32 %v2055, %v2063
    %v2066 = vpack.c.bf16 %v2064, %v2064
    %v2067 = vpack.c.bf16 %v2065, %v2065
    %2068 = vrot.lane.b32.xlu0 %v1480, 48
    %v2069 = vpop.permute.xlu0 %2068
    %v2071 = vsel %vm161, %v2066, 0
    %v2074 = vsel %vm302, %v2069, 0
    %2076 = vmatprep.subr.bf16.mxu0 0
    %2077 = vmatpush1.bf16.msra.mxu0 %v2074
    %2078 = vmatprep.subr.bf16.mxu0 0
    %2079 = vmatpush1.bf16.msra.mxu0 0
    %2080 = vmatprep.subr.bf16.mxu0 0
    %2081 = vmatpush1.bf16.msra.mxu0 0
    %2082 = vmatprep.subr.bf16.mxu0 0
    %2083 = vmatpush1.bf16.msra.mxu0 0
    %2084 = vmatprep.subr.bf16.mxu0 0
    %2085 = vmatpush1.bf16.msra.mxu0 0
    %2086 = vmatprep.subr.bf16.mxu0 0
    %2087 = vmatpush1.bf16.msra.mxu0 0
    %2088 = vmatprep.subr.bf16.mxu0 0
    %2089 = vmatpush1.bf16.msra.mxu0 0
    %2090 = vmatprep.subr.bf16.mxu0 0
    %2091 = vmatpush1.bf16.msra.mxu0 0
    %2092 = vmatprep.subr.bf16.mxu0 0
    %2093 = vmatpush1.bf16.msra.mxu0 0
    %2094 = vmatprep.subr.bf16.mxu0 0
    %2095 = vmatpush1.bf16.msra.mxu0 0
    %2096 = vmatprep.subr.bf16.mxu0 0
    %2097 = vmatpush1.bf16.msra.mxu0 0
    %2098 = vmatprep.subr.bf16.mxu0 0
    %2099 = vmatpush1.bf16.msra.mxu0 0
    %2100 = vmatprep.subr.bf16.mxu0 0
    %2101 = vmatpush1.bf16.msra.mxu0 0
    %2102 = vmatprep.subr.bf16.mxu0 0
    %2103 = vmatpush1.bf16.msra.mxu0 0
    %2104 = vmatprep.subr.bf16.mxu0 0
    %2105 = vmatpush1.bf16.msra.mxu0 0
    %2106 = vmatprep.subr.bf16.mxu0 0
    %2107 = vmatpush1.bf16.msra.mxu0 0
    %2108 = vmatprep.mubr.bf16.mxu0 0
    %2109 = vmatmul.mubr.bf16.gmra.mrb[0].mxu0 %v2071
    %v2110 = vpop.f32.mrb[0].mxu0
    %v2111 = vadd.f32 0.0, %v2110
    %v2112 = vpop.f32.mrb[0].mxu0
    %v2113 = vpop.f32.mrb[0].mxu0
    %v2114 = vpop.f32.mrb[0].mxu0
    %2115 = vdwg.mxu0
    %2116 = vrot.lane.b32.xlu0 %v1481, 48
    %v2117 = vpop.permute.xlu0 %2116
    %v2119 = vsel %vm161, %v2067, 0
    %v2122 = vsel %vm302, %v2117, 0
    %2124 = vmatprep.subr.bf16.mxu0 0
    %2125 = vmatpush1.bf16.msra.mxu0 %v2122
    %2126 = vmatprep.subr.bf16.mxu0 0
    %2127 = vmatpush1.bf16.msra.mxu0 0
    %2128 = vmatprep.subr.bf16.mxu0 0
    %2129 = vmatpush1.bf16.msra.mxu0 0
    %2130 = vmatprep.subr.bf16.mxu0 0
    %2131 = vmatpush1.bf16.msra.mxu0 0
    %2132 = vmatprep.subr.bf16.mxu0 0
    %2133 = vmatpush1.bf16.msra.mxu0 0
    %2134 = vmatprep.subr.bf16.mxu0 0
    %2135 = vmatpush1.bf16.msra.mxu0 0
    %2136 = vmatprep.subr.bf16.mxu0 0
    %2137 = vmatpush1.bf16.msra.mxu0 0
    %2138 = vmatprep.subr.bf16.mxu0 0
    %2139 = vmatpush1.bf16.msra.mxu0 0
    %2140 = vmatprep.subr.bf16.mxu0 0
    %2141 = vmatpush1.bf16.msra.mxu0 0
    %2142 = vmatprep.subr.bf16.mxu0 0
    %2143 = vmatpush1.bf16.msra.mxu0 0
    %2144 = vmatprep.subr.bf16.mxu0 0
    %2145 = vmatpush1.bf16.msra.mxu0 0
    %2146 = vmatprep.subr.bf16.mxu0 0
    %2147 = vmatpush1.bf16.msra.mxu0 0
    %2148 = vmatprep.subr.bf16.mxu0 0
    %2149 = vmatpush1.bf16.msra.mxu0 0
    %2150 = vmatprep.subr.bf16.mxu0 0
    %2151 = vmatpush1.bf16.msra.mxu0 0
    %2152 = vmatprep.subr.bf16.mxu0 0
    %2153 = vmatpush1.bf16.msra.mxu0 0
    %2154 = vmatprep.subr.bf16.mxu0 0
    %2155 = vmatpush1.bf16.msra.mxu0 0
    %2156 = vmatprep.mubr.bf16.mxu0 0
    %2157 = vmatmul.mubr.bf16.gmra.mrb[0].mxu0 %v2119
    %v2158 = vpop.f32.mrb[0].mxu0
    %v2159 = vadd.f32 0.0, %v2158
    %v2160 = vpop.f32.mrb[0].mxu0
    %v2161 = vpop.f32.mrb[0].mxu0
    %v2162 = vpop.f32.mrb[0].mxu0
    %2163 = vdwg.mxu0
    %2166 = vrot.lane.b32.xlu0 %v2111, 16
    %v2167 = vpop.permute.xlu0 %2166
    %2168 = vrot.lane.b32.xlu0 %v2159, 16
    %v2169 = vpop.permute.xlu0 %2168
    %2172 = vst.msk [vmem:[#allocation2] sm:$0xff] %vm863, %v2167
    %2173 = vst.msk [vmem:[#allocation2 + $0x8] sm:$0xff] %vm863, %v2169
    %2174 = vrot.lane.b32.xlu0 %v1480, 104
    %v2175 = vpop.permute.xlu0 %2174
    %2176 = vrot.lane.b32.xlu0 %v1480, 72
    %v2177 = vpop.permute.xlu0 %2176
    %v2179 = vsel %vm161, %v2175, 0
    %v2182 = vsel %vm161, %v2177, 0
    %2184 = vmatprep.subr.bf16.mxu0 0
    %2185 = vmatpush1.bf16.xpose.msra.mxu0 %v2182
    %2186 = vmatprep.subr.bf16.mxu0 0
    %2187 = vmatpush1.bf16.xpose.msra.mxu0 0
    %2188 = vmatprep.subr.bf16.mxu0 0
    %2189 = vmatpush1.bf16.xpose.msra.mxu0 0
    %2190 = vmatprep.subr.bf16.mxu0 0
    %2191 = vmatpush1.bf16.xpose.msra.mxu0 0
    %2192 = vmatprep.subr.bf16.mxu0 0
    %2193 = vmatpush1.bf16.xpose.msra.mxu0 0
    %2194 = vmatprep.subr.bf16.mxu0 0
    %2195 = vmatpush1.bf16.xpose.msra.mxu0 0
    %2196 = vmatprep.subr.bf16.mxu0 0
    %2197 = vmatpush1.bf16.xpose.msra.mxu0 0
    %2198 = vmatprep.subr.bf16.mxu0 0
    %2199 = vmatpush1.bf16.xpose.msra.mxu0 0
    %2200 = vmatprep.subr.bf16.mxu0 0
    %2201 = vmatpush1.bf16.xpose.msra.mxu0 0
    %2202 = vmatprep.subr.bf16.mxu0 0
    %2203 = vmatpush1.bf16.xpose.msra.mxu0 0
    %2204 = vmatprep.subr.bf16.mxu0 0
    %2205 = vmatpush1.bf16.xpose.msra.mxu0 0
    %2206 = vmatprep.subr.bf16.mxu0 0
    %2207 = vmatpush1.bf16.xpose.msra.mxu0 0
    %2208 = vmatprep.subr.bf16.mxu0 0
    %2209 = vmatpush1.bf16.xpose.msra.mxu0 0
    %2210 = vmatprep.subr.bf16.mxu0 0
    %2211 = vmatpush1.bf16.xpose.msra.mxu0 0
    %2212 = vmatprep.subr.bf16.mxu0 0
    %2213 = vmatpush1.bf16.xpose.msra.mxu0 0
    %2214 = vmatprep.subr.bf16.mxu0 0
    %2215 = vmatpush1.bf16.xpose.msra.mxu0 0
    %2216 = vmatprep.mubr.bf16.mxu0 0
    %2217 = vmatmul.mubr.bf16.gmra.mrb[0].mxu0 %v2179
    %v2218 = vpop.f32.mrb[0].mxu0
    %v2219 = vadd.f32 0.0, %v2218
    %v2220 = vpop.f32.mrb[0].mxu0
    %v2221 = vpop.f32.mrb[0].mxu0
    %v2222 = vpop.f32.mrb[0].mxu0
    %2223 = vdwg.mxu0
    %2224 = vrot.lane.b32.xlu0 %v1481, 104
    %v2225 = vpop.permute.xlu0 %2224
    %2226 = vrot.lane.b32.xlu0 %v1481, 72
    %v2227 = vpop.permute.xlu0 %2226
    %v2229 = vsel %vm161, %v2225, 0
    %v2232 = vsel %vm161, %v2227, 0
    %2234 = vmatprep.subr.bf16.mxu0 0
    %2235 = vmatpush1.bf16.xpose.msra.mxu0 %v2232
    %2236 = vmatprep.subr.bf16.mxu0 0
    %2237 = vmatpush1.bf16.xpose.msra.mxu0 0
    %2238 = vmatprep.subr.bf16.mxu0 0
    %2239 = vmatpush1.bf16.xpose.msra.mxu0 0
    %2240 = vmatprep.subr.bf16.mxu0 0
    %2241 = vmatpush1.bf16.xpose.msra.mxu0 0
    %2242 = vmatprep.subr.bf16.mxu0 0
    %2243 = vmatpush1.bf16.xpose.msra.mxu0 0
    %2244 = vmatprep.subr.bf16.mxu0 0
    %2245 = vmatpush1.bf16.xpose.msra.mxu0 0
    %2246 = vmatprep.subr.bf16.mxu0 0
    %2247 = vmatpush1.bf16.xpose.msra.mxu0 0
    %2248 = vmatprep.subr.bf16.mxu0 0
    %2249 = vmatpush1.bf16.xpose.msra.mxu0 0
    %2250 = vmatprep.subr.bf16.mxu0 0
    %2251 = vmatpush1.bf16.xpose.msra.mxu0 0
    %2252 = vmatprep.subr.bf16.mxu0 0
    %2253 = vmatpush1.bf16.xpose.msra.mxu0 0
    %2254 = vmatprep.subr.bf16.mxu0 0
    %2255 = vmatpush1.bf16.xpose.msra.mxu0 0
    %2256 = vmatprep.subr.bf16.mxu0 0
    %2257 = vmatpush1.bf16.xpose.msra.mxu0 0
    %2258 = vmatprep.subr.bf16.mxu0 0
    %2259 = vmatpush1.bf16.xpose.msra.mxu0 0
    %2260 = vmatprep.subr.bf16.mxu0 0
    %2261 = vmatpush1.bf16.xpose.msra.mxu0 0
    %2262 = vmatprep.subr.bf16.mxu0 0
    %2263 = vmatpush1.bf16.xpose.msra.mxu0 0
    %2264 = vmatprep.subr.bf16.mxu0 0
    %2265 = vmatpush1.bf16.xpose.msra.mxu0 0
    %2266 = vmatprep.mubr.bf16.mxu0 0
    %2267 = vmatmul.mubr.bf16.gmra.mrb[0].mxu0 %v2229
    %v2268 = vpop.f32.mrb[0].mxu0
    %v2269 = vadd.f32 0.0, %v2268
    %v2270 = vpop.f32.mrb[0].mxu0
    %v2271 = vpop.f32.mrb[0].mxu0
    %v2272 = vpop.f32.mrb[0].mxu0
    %2273 = vdwg.mxu0
    %v2274 = vmul.f32 %v2219, 0.35355338
    %v2275 = vmul.f32 %v2269, 0.35355338
    %v2276 = vadd.f32 %v2274, %v264
    %v2277 = vadd.f32 %v2275, %v268
    %v2278 = vsel %vm161, %v2276, -inf
    %2279 = vmax.xlane.f32.xlu0 %v2278
    %v2280 = vpop.xlane.xlu0 %2279
    %v2281 = vsel %vm161, %v2277, -inf
    %2282 = vmax.xlane.f32.xlu0 %v2281
    %v2283 = vpop.xlane.xlu0 %2282
    %v2284 = vsub.f32 %v2276, %v2280
    %v2285 = vsub.f32 %v2277, %v2283
    %v2286 = vmul.f32 %v2284, 1.442695
    %v2287 = vpow.pop %v2286
    %v2288 = vmul.f32 %v2285, 1.442695
    %v2289 = vpow.pop %v2288
    %v2290 = vsel %vm161, %v2287, 0.0
    %2291 = vadd.xlane.f32.xlu0 %v2290
    %v2292 = vpop.xlane.xlu0 %2291
    %v2293 = vsel %vm161, %v2289, 0.0
    %2294 = vadd.xlane.f32.xlu0 %v2293
    %v2295 = vpop.xlane.xlu0 %2294
    %v2296 = vrcp.pop %v2292
    %v2297 = vrcp.pop %v2295
    %v2298 = vmul.f32 %v2287, %v2296
    %v2299 = vmul.f32 %v2289, %v2297
    %v2300 = vpack.c.bf16 %v2298, %v2298
    %v2301 = vpack.c.bf16 %v2299, %v2299
    %2302 = vrot.lane.b32.xlu0 %v1480, 40
    %v2303 = vpop.permute.xlu0 %2302
    %v2305 = vsel %vm161, %v2300, 0
    %v2308 = vsel %vm302, %v2303, 0
    %2310 = vmatprep.subr.bf16.mxu0 0
    %2311 = vmatpush1.bf16.msra.mxu0 %v2308
    %2312 = vmatprep.subr.bf16.mxu0 0
    %2313 = vmatpush1.bf16.msra.mxu0 0
    %2314 = vmatprep.subr.bf16.mxu0 0
    %2315 = vmatpush1.bf16.msra.mxu0 0
    %2316 = vmatprep.subr.bf16.mxu0 0
    %2317 = vmatpush1.bf16.msra.mxu0 0
    %2318 = vmatprep.subr.bf16.mxu0 0
    %2319 = vmatpush1.bf16.msra.mxu0 0
    %2320 = vmatprep.subr.bf16.mxu0 0
    %2321 = vmatpush1.bf16.msra.mxu0 0
    %2322 = vmatprep.subr.bf16.mxu0 0
    %2323 = vmatpush1.bf16.msra.mxu0 0
    %2324 = vmatprep.subr.bf16.mxu0 0
    %2325 = vmatpush1.bf16.msra.mxu0 0
    %2326 = vmatprep.subr.bf16.mxu0 0
    %2327 = vmatpush1.bf16.msra.mxu0 0
    %2328 = vmatprep.subr.bf16.mxu0 0
    %2329 = vmatpush1.bf16.msra.mxu0 0
    %2330 = vmatprep.subr.bf16.mxu0 0
    %2331 = vmatpush1.bf16.msra.mxu0 0
    %2332 = vmatprep.subr.bf16.mxu0 0
    %2333 = vmatpush1.bf16.msra.mxu0 0
    %2334 = vmatprep.subr.bf16.mxu0 0
    %2335 = vmatpush1.bf16.msra.mxu0 0
    %2336 = vmatprep.subr.bf16.mxu0 0
    %2337 = vmatpush1.bf16.msra.mxu0 0
    %2338 = vmatprep.subr.bf16.mxu0 0
    %2339 = vmatpush1.bf16.msra.mxu0 0
    %2340 = vmatprep.subr.bf16.mxu0 0
    %2341 = vmatpush1.bf16.msra.mxu0 0
    %2342 = vmatprep.mubr.bf16.mxu0 0
    %2343 = vmatmul.mubr.bf16.gmra.mrb[0].mxu0 %v2305
    %v2344 = vpop.f32.mrb[0].mxu0
    %v2345 = vadd.f32 0.0, %v2344
    %v2346 = vpop.f32.mrb[0].mxu0
    %v2347 = vpop.f32.mrb[0].mxu0
    %v2348 = vpop.f32.mrb[0].mxu0
    %2349 = vdwg.mxu0
    %2350 = vrot.lane.b32.xlu0 %v1481, 40
    %v2351 = vpop.permute.xlu0 %2350
    %v2353 = vsel %vm161, %v2301, 0
    %v2356 = vsel %vm302, %v2351, 0
    %2358 = vmatprep.subr.bf16.mxu0 0
    %2359 = vmatpush1.bf16.msra.mxu0 %v2356
    %2360 = vmatprep.subr.bf16.mxu0 0
    %2361 = vmatpush1.bf16.msra.mxu0 0
    %2362 = vmatprep.subr.bf16.mxu0 0
    %2363 = vmatpush1.bf16.msra.mxu0 0
    %2364 = vmatprep.subr.bf16.mxu0 0
    %2365 = vmatpush1.bf16.msra.mxu0 0
    %2366 = vmatprep.subr.bf16.mxu0 0
    %2367 = vmatpush1.bf16.msra.mxu0 0
    %2368 = vmatprep.subr.bf16.mxu0 0
    %2369 = vmatpush1.bf16.msra.mxu0 0
    %2370 = vmatprep.subr.bf16.mxu0 0
    %2371 = vmatpush1.bf16.msra.mxu0 0
    %2372 = vmatprep.subr.bf16.mxu0 0
    %2373 = vmatpush1.bf16.msra.mxu0 0
    %2374 = vmatprep.subr.bf16.mxu0 0
    %2375 = vmatpush1.bf16.msra.mxu0 0
    %2376 = vmatprep.subr.bf16.mxu0 0
    %2377 = vmatpush1.bf16.msra.mxu0 0
    %2378 = vmatprep.subr.bf16.mxu0 0
    %2379 = vmatpush1.bf16.msra.mxu0 0
    %2380 = vmatprep.subr.bf16.mxu0 0
    %2381 = vmatpush1.bf16.msra.mxu0 0
    %2382 = vmatprep.subr.bf16.mxu0 0
    %2383 = vmatpush1.bf16.msra.mxu0 0
    %2384 = vmatprep.subr.bf16.mxu0 0
    %2385 = vmatpush1.bf16.msra.mxu0 0
    %2386 = vmatprep.subr.bf16.mxu0 0
    %2387 = vmatpush1.bf16.msra.mxu0 0
    %2388 = vmatprep.subr.bf16.mxu0 0
    %2389 = vmatpush1.bf16.msra.mxu0 0
    %2390 = vmatprep.mubr.bf16.mxu0 0
    %2391 = vmatmul.mubr.bf16.gmra.mrb[0].mxu0 %v2353
    %v2392 = vpop.f32.mrb[0].mxu0
    %v2393 = vadd.f32 0.0, %v2392
    %v2394 = vpop.f32.mrb[0].mxu0
    %v2395 = vpop.f32.mrb[0].mxu0
    %v2396 = vpop.f32.mrb[0].mxu0
    %2397 = vdwg.mxu0
    %2400 = vrot.lane.b32.xlu0 %v2345, 24
    %v2401 = vpop.permute.xlu0 %2400
    %2402 = vrot.lane.b32.xlu0 %v2393, 24
    %v2403 = vpop.permute.xlu0 %2402
    %2406 = vst.msk [vmem:[#allocation2] sm:$0xff] %vm1098, %v2401
    %2407 = vst.msk [vmem:[#allocation2 + $0x8] sm:$0xff] %vm1098, %v2403
    %v2408 = vld [vmem:[#allocation2] sm:$0xff]
    %v2409 = vld [vmem:[#allocation2 + $0x8] sm:$0xff]
    %v2410 = vpack.c.bf16 %v2409, %v2408
    %2411 = vrot.lane.b32.xlu0 %v1432, 32
    %v2412 = vpop.permute.xlu0 %2411
    %2413 = vrot.lane.b32.xlu0 %v1433, 32
    %v2414 = vpop.permute.xlu0 %2413
    %2417 = vrot.lane.b32.xlu0 %v1422, 32
    %v2418 = vpop.permute.xlu0 %2417
    %v2421 = vsel %vm47, %v2410, 0
    %2423 = vmatprep.subr.bf16.mxu0 0
    %2424 = vmatpush1.bf16.msra.mxu0 %v2412
    %2425 = vmatprep.subr.bf16.mxu0 0
    %2426 = vmatpush1.bf16.msra.mxu0 %v2414
    %2427 = vmatprep.subr.bf16.mxu0 0
    %2428 = vmatpush1.bf16.msra.mxu0 0
    %2429 = vmatprep.subr.bf16.mxu0 0
    %2430 = vmatpush1.bf16.msra.mxu0 0
    %2431 = vmatprep.subr.bf16.mxu0 0
    %2432 = vmatpush1.bf16.msra.mxu0 0
    %2433 = vmatprep.subr.bf16.mxu0 0
    %2434 = vmatpush1.bf16.msra.mxu0 0
    %2435 = vmatprep.subr.bf16.mxu0 0
    %2436 = vmatpush1.bf16.msra.mxu0 0
    %2437 = vmatprep.subr.bf16.mxu0 0
    %2438 = vmatpush1.bf16.msra.mxu0 0
    %2439 = vmatprep.subr.bf16.mxu0 0
    %2440 = vmatpush1.bf16.msra.mxu0 0
    %2441 = vmatprep.subr.bf16.mxu0 0
    %2442 = vmatpush1.bf16.msra.mxu0 0
    %2443 = vmatprep.subr.bf16.mxu0 0
    %2444 = vmatpush1.bf16.msra.mxu0 0
    %2445 = vmatprep.subr.bf16.mxu0 0
    %2446 = vmatpush1.bf16.msra.mxu0 0
    %2447 = vmatprep.subr.bf16.mxu0 0
    %2448 = vmatpush1.bf16.msra.mxu0 0
    %2449 = vmatprep.subr.bf16.mxu0 0
    %2450 = vmatpush1.bf16.msra.mxu0 0
    %2451 = vmatprep.subr.bf16.mxu0 0
    %2452 = vmatpush1.bf16.msra.mxu0 0
    %2453 = vmatprep.subr.bf16.mxu0 0
    %2454 = vmatpush1.bf16.msra.mxu0 0
    %2455 = vmatprep.mubr.bf16.mxu0 0
    %2456 = vmatmul.mubr.bf16.gmra.mrb[0].mxu0 %v2421
    %v2457 = vpop.f32.mrb[0].mxu0
    %v2458 = vadd.f32 %v2418, %v2457
    %v2459 = vpop.f32.mrb[0].mxu0
    %v2460 = vpop.f32.mrb[0].mxu0
    %v2461 = vadd.f32 %v2418, %v2460
    %v2462 = vpop.f32.mrb[0].mxu0
    %2463 = vdwg.mxu0
    %v2464 = vadd.f32 %v1406, %v2458
    %v2465 = vadd.f32 %v1407, %v2461
    %v2466 = vsel %vm47, %v2464, 0.0
    %2467 = vadd.xlane.f32.xlu0 %v2466
    %v2468 = vpop.xlane.xlu0 %2467
    %v2469 = vsel %vm47, %v2465, 0.0
    %2470 = vadd.xlane.f32.xlu0 %v2469
    %v2471 = vpop.xlane.xlu0 %2470
    %v2472 = vmul.f32 %v2468, %v54
    %v2473 = vmul.f32 %v2471, %v54
    %v2474 = vsub.f32 %v2464, %v2472
    %v2475 = vsub.f32 %v2465, %v2473
    %v2476 = vmul.f32 %v2474, %v2474
    %v2477 = vmul.f32 %v2475, %v2475
    %v2478 = vsel %vm47, %v2476, 0.0
    %2479 = vadd.xlane.f32.xlu0 %v2478
    %v2480 = vpop.xlane.xlu0 %2479
    %v2481 = vsel %vm47, %v2477, 0.0
    %2482 = vadd.xlane.f32.xlu0 %v2481
    %v2483 = vpop.xlane.xlu0 %2482
    %v2484 = vmul.f32 %v2480, %v54
    %v2485 = vmul.f32 %v2483, %v54
    %v2486 = vadd.f32 %v2484, 1e-12
    %v2487 = vadd.f32 %v2485, 1e-12
    %v2488 = vrsqrt.pop %v2486
    %v2489 = vrsqrt.pop %v2487
    %v2490 = vmul.f32 %v2474, %v2488
    %v2491 = vmul.f32 %v2475, %v2489
    %v2492 = vlaneseq
    %v2493 = vshrl.u32 %v2492, 7
    %v2494 = vsub.s32 0, %v2493
    %v2495 = vrot.slane %v1416, %v2494
    %v2496 = vmul.f32 %v2490, %v2495
    %v2497 = vmul.f32 %v2491, %v2495
    %v2498 = vlaneseq
    %v2499 = vshrl.u32 %v2498, 7
    %v2500 = vsub.s32 1, %v2499
    %v2501 = vrot.slane %v1416, %v2500
    %v2502 = vadd.f32 %v2496, %v2501
    %v2503 = vadd.f32 %v2497, %v2501
    %v2504 = vpack.c.bf16 %v2503, %v2502
    %s2505 = scalar_lea.vmem %s5, 16
    %v2506 = vld [vmem:[%s2505] sm:$0xf]
    %v2507 = vld [vmem:[%s2505 + $0x4] sm:$0xf]
    %v2508 = vld [vmem:[%s2505 + $0x8] sm:$0xf]
    %v2509 = vld [vmem:[%s2505 + $0xc] sm:$0xf]
    %s2510 = scalar_lea.vmem %s6, 1
    %v2511 = vld [vmem:[%s2510] sm:$0x1]
    %v2513 = vlaneseq
    %v2514 = vshrl.u32 %v2513, 7
    %v2515 = vsub.s32 0, %v2514
    %v2516 = vrot.slane %v2511, %v2515
    %v2522 = vunpack.c.l.b16 %v2506
    %v2523 = vunpack.c.l.b16 %v2507
    %v2524 = vunpack.c.l.b16 %v2508
    %v2525 = vunpack.c.l.b16 %v2509
    %v2526 = vpack.c.b16 %v2523, %v2522
    %v2527 = vpack.c.b16 %v2525, %v2524
    %v2531 = vsel %vm47, %v2504, 0
    %2533 = vmatprep.subr.bf16.mxu0 0
    %2534 = vmatpush1.bf16.msra.mxu0 %v2526
    %2535 = vmatprep.subr.bf16.mxu0 0
    %2536 = vmatpush1.bf16.msra.mxu0 %v2527
    %2537 = vmatprep.subr.bf16.mxu0 0
    %2538 = vmatpush1.bf16.msra.mxu0 0
    %2539 = vmatprep.subr.bf16.mxu0 0
    %2540 = vmatpush1.bf16.msra.mxu0 0
    %2541 = vmatprep.subr.bf16.mxu0 0
    %2542 = vmatpush1.bf16.msra.mxu0 0
    %2543 = vmatprep.subr.bf16.mxu0 0
    %2544 = vmatpush1.bf16.msra.mxu0 0
    %2545 = vmatprep.subr.bf16.mxu0 0
    %2546 = vmatpush1.bf16.msra.mxu0 0
    %2547 = vmatprep.subr.bf16.mxu0 0
    %2548 = vmatpush1.bf16.msra.mxu0 0
    %2549 = vmatprep.subr.bf16.mxu0 0
    %2550 = vmatpush1.bf16.msra.mxu0 0
    %2551 = vmatprep.subr.bf16.mxu0 0
    %2552 = vmatpush1.bf16.msra.mxu0 0
    %2553 = vmatprep.subr.bf16.mxu0 0
    %2554 = vmatpush1.bf16.msra.mxu0 0
    %2555 = vmatprep.subr.bf16.mxu0 0
    %2556 = vmatpush1.bf16.msra.mxu0 0
    %2557 = vmatprep.subr.bf16.mxu0 0
    %2558 = vmatpush1.bf16.msra.mxu0 0
    %2559 = vmatprep.subr.bf16.mxu0 0
    %2560 = vmatpush1.bf16.msra.mxu0 0
    %2561 = vmatprep.subr.bf16.mxu0 0
    %2562 = vmatpush1.bf16.msra.mxu0 0
    %2563 = vmatprep.subr.bf16.mxu0 0
    %2564 = vmatpush1.bf16.msra.mxu0 0
    %2565 = vmatprep.mubr.bf16.mxu0 0
    %2566 = vmatmul.mubr.bf16.gmra.mrb[0].mxu0 %v2531
    %v2567 = vpop.f32.mrb[0].mxu0
    %v2568 = vadd.f32 %v2516, %v2567
    %v2569 = vpop.f32.mrb[0].mxu0
    %v2570 = vpop.f32.mrb[0].mxu0
    %v2571 = vadd.f32 %v2516, %v2570
    %v2572 = vpop.f32.mrb[0].mxu0
    %2573 = vdwg.mxu0
    %v2574 = vmul.f32 %v2568, %v2568
    %v2575 = vmul.f32 %v2571, %v2571
    %v2576 = vmul.f32 %v2568, %v2574
    %v2577 = vmul.f32 %v2571, %v2575
    %v2578 = vmul.f32 %v2576, 0.044715
    %v2579 = vmul.f32 %v2577, 0.044715
    %v2580 = vadd.f32 %v2568, %v2578
    %v2581 = vadd.f32 %v2571, %v2579
    %v2582 = vmul.f32 %v2580, 0.7978846
    %v2583 = vmul.f32 %v2581, 0.7978846
    %v2584 = vtanh.pop %v2582
    %v2585 = vtanh.pop %v2583
    %v2586 = vadd.f32 %v2584, 1.0
    %v2587 = vadd.f32 %v2585, 1.0
    %v2588 = vmul.f32 %v2586, 0.5
    %v2589 = vmul.f32 %v2587, 0.5
    %v2590 = vmul.f32 %v2568, %v2588
    %v2591 = vmul.f32 %v2571, %v2589
    %v2592 = vpack.c.bf16 %v2591, %v2590
    %s2593 = scalar_lea.vmem %s7, 32
    %v2594 = vld [vmem:[%s2593] sm:$0xf]
    %v2595 = vld [vmem:[%s2593 + $0x4] sm:$0xf]
    %v2596 = vld [vmem:[%s2593 + $0x8] sm:$0xf]
    %v2597 = vld [vmem:[%s2593 + $0xc] sm:$0xf]
    %v2598 = vld [vmem:[%s2593 + $0x10] sm:$0xf]
    %v2599 = vld [vmem:[%s2593 + $0x14] sm:$0xf]
    %v2600 = vld [vmem:[%s2593 + $0x18] sm:$0xf]
    %v2601 = vld [vmem:[%s2593 + $0x1c] sm:$0xf]
    %s2602 = scalar_lea.vmem %s8, 1
    %v2603 = vld [vmem:[%s2602] sm:$0x1]
    %v2605 = vlaneseq
    %v2606 = vshrl.u32 %v2605, 7
    %v2607 = vsub.s32 0, %v2606
    %v2608 = vrot.slane %v2603, %v2607
    %v2618 = vunpack.c.l.b16 %v2594
    %v2619 = vunpack.c.l.b16 %v2595
    %v2620 = vunpack.c.l.b16 %v2596
    %v2621 = vunpack.c.l.b16 %v2597
    %v2622 = vunpack.c.l.b16 %v2598
    %v2623 = vunpack.c.l.b16 %v2599
    %v2624 = vunpack.c.l.b16 %v2600
    %v2625 = vunpack.c.l.b16 %v2601
    %v2626 = vpack.c.b16 %v2619, %v2618
    %v2627 = vpack.c.b16 %v2621, %v2620
    %v2628 = vpack.c.b16 %v2623, %v2622
    %v2629 = vpack.c.b16 %v2625, %v2624
    %v2635 = vsel %vm1323, %v2592, 0
    %2637 = vmatprep.subr.bf16.mxu0 0
    %2638 = vmatpush1.bf16.msra.mxu0 %v2626
    %2639 = vmatprep.subr.bf16.mxu0 0
    %2640 = vmatpush1.bf16.msra.mxu0 %v2627
    %2641 = vmatprep.subr.bf16.mxu0 0
    %2642 = vmatpush1.bf16.msra.mxu0 %v2628
    %2643 = vmatprep.subr.bf16.mxu0 0
    %2644 = vmatpush1.bf16.msra.mxu0 %v2629
    %2645 = vmatprep.subr.bf16.mxu0 0
    %2646 = vmatpush1.bf16.msra.mxu0 0
    %2647 = vmatprep.subr.bf16.mxu0 0
    %2648 = vmatpush1.bf16.msra.mxu0 0
    %2649 = vmatprep.subr.bf16.mxu0 0
    %2650 = vmatpush1.bf16.msra.mxu0 0
    %2651 = vmatprep.subr.bf16.mxu0 0
    %2652 = vmatpush1.bf16.msra.mxu0 0
    %2653 = vmatprep.subr.bf16.mxu0 0
    %2654 = vmatpush1.bf16.msra.mxu0 0
    %2655 = vmatprep.subr.bf16.mxu0 0
    %2656 = vmatpush1.bf16.msra.mxu0 0
    %2657 = vmatprep.subr.bf16.mxu0 0
    %2658 = vmatpush1.bf16.msra.mxu0 0
    %2659 = vmatprep.subr.bf16.mxu0 0
    %2660 = vmatpush1.bf16.msra.mxu0 0
    %2661 = vmatprep.subr.bf16.mxu0 0
    %2662 = vmatpush1.bf16.msra.mxu0 0
    %2663 = vmatprep.subr.bf16.mxu0 0
    %2664 = vmatpush1.bf16.msra.mxu0 0
    %2665 = vmatprep.subr.bf16.mxu0 0
    %2666 = vmatpush1.bf16.msra.mxu0 0
    %2667 = vmatprep.subr.bf16.mxu0 0
    %2668 = vmatpush1.bf16.msra.mxu0 0
    %2669 = vmatprep.mubr.bf16.mxu0 0
    %2670 = vmatmul.mubr.bf16.gmra.mrb[0].mxu0 %v2635
    %v2671 = vpop.f32.mrb[0].mxu0
    %v2672 = vadd.f32 %v2608, %v2671
    %v2673 = vpop.f32.mrb[0].mxu0
    %v2674 = vpop.f32.mrb[0].mxu0
    %v2675 = vadd.f32 %v2608, %v2674
    %v2676 = vpop.f32.mrb[0].mxu0
    %2677 = vdwg.mxu0
    %v2678 = vadd.f32 %v2502, %v2672
    %v2679 = vadd.f32 %v2503, %v2675
    %v2680 = vsel %vm47, %v2678, 0.0
    %2681 = vadd.xlane.f32.xlu0 %v2680
    %v2682 = vpop.xlane.xlu0 %2681
    %v2683 = vsel %vm47, %v2679, 0.0
    %2684 = vadd.xlane.f32.xlu0 %v2683
    %v2685 = vpop.xlane.xlu0 %2684
    %v2686 = vmul.f32 %v2682, %v54
    %v2687 = vmul.f32 %v2685, %v54
    %v2688 = vsub.f32 %v2678, %v2686
    %v2689 = vsub.f32 %v2679, %v2687
    %v2690 = vmul.f32 %v2688, %v2688
    %v2691 = vmul.f32 %v2689, %v2689
    %v2692 = vsel %vm47, %v2690, 0.0
    %2693 = vadd.xlane.f32.xlu0 %v2692
    %v2694 = vpop.xlane.xlu0 %2693
    %v2695 = vsel %vm47, %v2691, 0.0
    %2696 = vadd.xlane.f32.xlu0 %v2695
    %v2697 = vpop.xlane.xlu0 %2696
    %v2698 = vmul.f32 %v2694, %v54
    %v2699 = vmul.f32 %v2697, %v54
    %v2700 = vadd.f32 %v2698, 1e-12
    %v2701 = vadd.f32 %v2699, 1e-12
    %v2702 = vrsqrt.pop %v2700
    %v2703 = vrsqrt.pop %v2701
    %v2704 = vmul.f32 %v2688, %v2702
    %v2705 = vmul.f32 %v2689, %v2703
    %v2706 = vlaneseq
    %v2707 = vshrl.u32 %v2706, 7
    %v2708 = vsub.s32 2, %v2707
    %v2709 = vrot.slane %v1416, %v2708
    %v2710 = vmul.f32 %v2704, %v2709
    %v2711 = vmul.f32 %v2705, %v2709
    %v2712 = vlaneseq
    %v2713 = vshrl.u32 %v2712, 7
    %v2714 = vsub.s32 3, %v2713
    %v2715 = vrot.slane %v1416, %v2714
    %v2716 = vadd.f32 %v2710, %v2715
    %v2717 = vadd.f32 %v2711, %v2715
    %2718 = vst.msk [vmem:[#allocation3] sm:$0xff] %vm47, %v2716
    %2719 = vst.msk [vmem:[#allocation3 + $0x8] sm:$0xff] %vm47, %v2717
    // Predicated region
    $region42: #{bert_model_wrapper_forward.1} parent=1 // pred_check
      _
    $region43: #{bert_model_wrapper_forward.1} parent=1 // pred_check_branch
      %2721 = sbr.rel (0) target = $region45
    $region44: #{bert_model_wrapper_forward.1} parent=1 // pred_region
      %s2723 = ssub.s32 256, 256
      %2724 = vsyncadd [#allocation4], %s2723
      %s2725 = sshll.u32 [#allocation3], 4
      %s2726 = int_to_ptr.vmem [resolvable:$true] %s2725
      %2731 = dma.vmem_to_hbm [thread:$0]  %s2726, 256, %s10, [#allocation4], 128, 128, 8
    $region45: #{bert_model_wrapper_forward.1} parent=1 // pred_fallthru
      _
    // Predicated region
    $region46: #{bert_model_wrapper_forward.1} parent=1 // pred_check
      _
    $region47: #{bert_model_wrapper_forward.1} parent=1 // pred_check_branch
      %2733 = sbr.rel (0) target = $region49
    $region48: #{bert_model_wrapper_forward.1} parent=1 // pred_region
      %2734 = dma.done [#allocation4], 256
    $region49: #{bert_model_wrapper_forward.1} parent=1 // pred_fallthru
      _
    %2735 = vsyncpa [#allocation4], 1

</llo_original>
